<compile_context>
chip_gen: v5e
topology: v5e:2x2
jax: 0.10.0
libtpu: 0.0.40
codegen_flags: <defaults>
</compile_context>

<pallas_src>
import math

import numpy as np
import jax
import jax.numpy as jnp
from jax import lax
from jax.experimental import pallas as pl

# ---------------------------------------------------------------------------
# Configuration (consistent with the module's __init__)
# ---------------------------------------------------------------------------
N = 2                 # batch (hard-wired into the 2x64 = 128-lane packing)
P = 128               # number of background sample points ("spatial" axis)
Z_DIM = 32            # latent dim
W_DIM = 32            # style dim
C_DIM = 0             # no conditioning (MappingNetwork embed branch disabled)
IMG_CH = 3            # img_channels
HIDDEN = 32           # hidden_channels
L = 10                # positional-encoding frequencies (fixed by the module)
PE_CH = 4 * L         # 40 = first layer in_channels
CP = 64               # padded per-sample channel width
CP2 = N * CP          # 128 = full lane width (both samples side by side)
NUM_WS = 5            # 5 SynthesisLayers -> num_ws = 5
MAP_LAYERS = 8        # StyleGAN2 MappingNetwork default num_layers
LRELU_GAIN = math.sqrt(2.0)   # bias_act 'lrelu' def_gain

IN_CHS = [PE_CH, HIDDEN, HIDDEN, HIDDEN, HIDDEN]
OUT_CHS = [HIDDEN, HIDDEN, HIDDEN, HIDDEN, IMG_CH]


# ---------------------------------------------------------------------------
# Fused kernel: mapping (z -> w)  +  PE  +  5 modulated 1x1 convs
# ---------------------------------------------------------------------------
def bg_kernel(z_ref, p_ref, map_w_ref, map_b_ref, pe_sel_ref, pe_phase_ref,
              aff_w_ref, aff_b_ref, conv_w_ref, conv_b_ref, out_ref):
    # ---- positional encoding (VPU FMAs + EUP sin; independent of mapping) --
    # p_ref: [P, 2N] = per point [p0x, p0y, p1x, p1y]
    pvals = p_ref[...]
    arg = pe_phase_ref[...]                                  # [1, 128]
    for k in range(2 * N):
        arg = arg + pvals[:, k:k + 1] * pe_sel_ref[k:k + 1, :]
    x = jnp.sin(arg)                                         # [P, 128]; pads=0

    # ---- mapping network: z -> w (serial MXU chain, hidden under the PE) ---
    z = z_ref[...]                                           # [N, Z]
    wlat = z * lax.rsqrt(jnp.mean(z * z, axis=1, keepdims=True) + 1e-8)
    for l in range(MAP_LAYERS):
        y = jnp.dot(wlat, map_w_ref[l],
                    preferred_element_type=jnp.float32) + map_b_ref[l]
        wlat = jnp.where(y >= 0.0, y, 0.2 * y) * LRELU_GAIN  # bias_act 'lrelu'
    # truncation_psi=1, update_emas=False -> w used directly for all 5 layers.
    # TODO(synk): w_avg EMA tracking (update_emas=True path) not implemented.

    # ---- all layer styles in ONE matmul (hoisted affine, +1 bias folded) ---
    styles = jnp.dot(wlat, aff_w_ref[...],
                     preferred_element_type=jnp.float32) + aff_b_ref[...]  # [N, 640]
    lane = lax.broadcasted_iota(jnp.int32, (1, NUM_WS * CP2), 1)
    take0 = (lane & CP) == 0                                 # low half of each 128-block
    s_sel = jnp.where(take0, styles[0:1, :], styles[1:2, :])  # [1, 640] per-sample styles

    # ---- per-layer style slice + demod coeff (off the critical x-chain) ----
    s_list, d_list = [], []
    for l in range(NUM_WS):
        s_big = s_sel[:, l * CP2:(l + 1) * CP2]              # [1, 128]
        wsq = conv_w_ref[l] * conv_w_ref[l]                  # static W^2 (block-diag)
        dsum = jnp.dot(s_big * s_big, wsq, preferred_element_type=jnp.float32)
        d_list.append(lax.rsqrt(dsum + 1e-8))                # [1, 128]
        s_list.append(s_big)

    # ---- 5 modulated 1x1 convs: one 128x128x128 MXU matmul per layer -------
    for l in range(NUM_WS):
        y = jnp.dot(x * s_list[l], conv_w_ref[l],
                    preferred_element_type=jnp.float32)      # [P, 128]
        y = y * d_list[l] + conv_b_ref[l]
        if l < NUM_WS - 1:
            x = jnp.where(y >= 0.0, y, 0.2 * y) * LRELU_GAIN  # lrelu * sqrt(2)
        else:
            x = jax.nn.sigmoid(y)                             # last layer, gain 1

    # ---- lane-dense output: [N, IMG_CH, P] with P=128 on the lane axis -----
    xt = x.T                                                  # [128(ch), P] XLU transpose
    for m in range(N):
        out_ref[m, :, :] = xt[m * CP:m * CP + IMG_CH, :]


# ---------------------------------------------------------------------------
# Deterministic parameter construction (equalized-lr gains folded into the
# effective weights; packed into the 2-sample block-diagonal lane layout)
# ---------------------------------------------------------------------------
def build_params(key):
    keys = jax.random.split(key, MAP_LAYERS + 2 * NUM_WS)
    ki = 0

    # Mapping: 8 FC layers w_dim->w_dim; effective weight = randn/sqrt(fan_in),
    # bias init 0.  Stored transposed ([in, out]) for x @ W.
    map_w = []
    for _ in range(MAP_LAYERS):
        wm = jax.random.normal(keys[ki], (W_DIM, W_DIM)) / np.sqrt(W_DIM)
        ki += 1
        map_w.append(wm.T)
    map_w = jnp.stack(map_w).astype(jnp.float32)              # [8, W, W]
    map_b = jnp.zeros((MAP_LAYERS, 1, W_DIM), jnp.float32)

    # Synthesis layers in the "big" (2-sample side-by-side) layout.
    aff_w = np.zeros((W_DIM, NUM_WS * CP2), np.float32)       # [32, 640]
    aff_b = np.zeros((1, NUM_WS * CP2), np.float32)
    conv_w = np.zeros((NUM_WS, CP2, CP2), np.float32)         # block-diag W^T
    conv_b = np.zeros((NUM_WS, 1, CP2), np.float32)
    for l in range(NUM_WS):
        ic, oc = IN_CHS[l], OUT_CHS[l]
        # affine: FullyConnectedLayer(w_dim, in_channels, bias_init=1)
        aw = np.asarray(jax.random.normal(keys[ki], (ic, W_DIM)))
        ki += 1
        # conv weight: randn([out, in, 1, 1]); bias: zeros([out])
        cw = np.asarray(jax.random.normal(keys[ki], (oc, ic)))
        ki += 1
        for m in range(N):  # same params duplicated into each sample's block
            cs = l * CP2 + m * CP
            aff_w[:, cs:cs + ic] = aw.T / np.sqrt(W_DIM)
            aff_b[0, cs:cs + ic] = 1.0
            conv_w[l, m * CP:m * CP + ic, m * CP:m * CP + oc] = cw.T
            # conv bias init is zeros -> conv_b stays zero

    # Positional-encoding scale rows (per sample, per coordinate) + phase.
    # PE channel j = 4*i + r: r%2 picks coordinate, r<2 -> sin, r>=2 -> cos.
    pe_sel = np.zeros((2 * N, CP2), np.float32)               # [4, 128]
    pe_phase = np.zeros((1, CP2), np.float32)
    for m in range(N):
        for j in range(PE_CH):
            i, r = j // 4, j % 4
            pe_sel[2 * m + (r % 2), m * CP + j] = (2.0 ** i) * np.pi
            pe_phase[0, m * CP + j] = 0.0 if r < 2 else np.pi / 2.0

    return (map_w, map_b,
            jnp.asarray(pe_sel), jnp.asarray(pe_phase),
            jnp.asarray(aff_w), jnp.asarray(aff_b),
            jnp.asarray(conv_w), jnp.asarray(conv_b))


# ---------------------------------------------------------------------------
# Full BGGenerator forward
# ---------------------------------------------------------------------------
def bg_generator_forward(z, c, x, params):
    del c  # c_dim = 0 -> conditioning embed branch disabled
    (map_w, map_b, pe_sel, pe_phase, aff_w, aff_b, conv_w, conv_b) = params
    # Layout plumbing only: per point row, both samples' (x, y) coordinates
    # side by side -> [P, 2N] so the PE can run as lane-broadcast FMAs.
    p_cat = jnp.transpose(x, (1, 0, 2)).reshape(P, 2 * N)     # [128, 4]
    img = pl.pallas_call(
        bg_kernel,
        out_shape=jax.ShapeDtypeStruct((N, IMG_CH, P), jnp.float32),
    )(z, p_cat, map_w, map_b, pe_sel, pe_phase, aff_w, aff_b, conv_w, conv_b)
    # back to the PyTorch NCHW convention: [N, img_channels, P, 1]
    return img[..., None]


if __name__ == "__main__":
    key = jax.random.PRNGKey(0)
    kp, kz, kx = jax.random.split(key, 3)

    params = build_params(kp)
    z = jax.random.normal(kz, (N, Z_DIM), dtype=jnp.float32)
    c = jnp.zeros((N, C_DIM), dtype=jnp.float32)
    x = jax.random.uniform(kx, (N, P, 2), dtype=jnp.float32,
                           minval=-1.0, maxval=1.0)

    fwd = jax.jit(bg_generator_forward)
    img = jax.block_until_ready(fwd(z, c, x, params))

    assert img.shape == (N, IMG_CH, P, 1), img.shape
    assert bool(jnp.all(jnp.isfinite(img)))
    assert bool(jnp.all((img >= 0.0) & (img <= 1.0)))  # sigmoid output
    print("KERNEL_OK")
</pallas_src>

<mosaic_0001>
module attributes {stable_mosaic.version = 11 : i64} {
  func.func @bg_kernel(%arg0: memref<2x32xf32, #tpu.memory_space<vmem>>, %arg1: memref<128x4xf32, #tpu.memory_space<vmem>>, %arg2: memref<8x32x32xf32, #tpu.memory_space<vmem>>, %arg3: memref<8x1x32xf32, #tpu.memory_space<vmem>>, %arg4: memref<4x128xf32, #tpu.memory_space<vmem>>, %arg5: memref<1x128xf32, #tpu.memory_space<vmem>>, %arg6: memref<32x640xf32, #tpu.memory_space<vmem>>, %arg7: memref<1x640xf32, #tpu.memory_space<vmem>>, %arg8: memref<5x128x128xf32, #tpu.memory_space<vmem>>, %arg9: memref<5x1x128xf32, #tpu.memory_space<vmem>>, %arg10: memref<2x3x128xf32, #tpu.memory_space<vmem>>) attributes {dimension_semantics = [], scalar_prefetch = 0 : i64, scratch_operands = 0 : i64, tpu.core_type = #tpu.core_type<tc>} {
    %c0 = arith.constant 0 : index
    %c0_0 = arith.constant 0 : index
    %0 = vector.load %arg1[%c0, %c0_0] : memref<128x4xf32, #tpu.memory_space<vmem>>, vector<128x4xf32>
    %c0_1 = arith.constant 0 : index
    %c0_2 = arith.constant 0 : index
    %1 = vector.load %arg5[%c0_1, %c0_2] : memref<1x128xf32, #tpu.memory_space<vmem>>, vector<1x128xf32>
    %2 = vector.extract_strided_slice %0 {offsets = [0, 0], sizes = [128, 1], strides = [1, 1]} : vector<128x4xf32> to vector<128x1xf32>
    %c0_3 = arith.constant 0 : index
    %c0_4 = arith.constant 0 : index
    %3 = vector.load %arg4[%c0_3, %c0_4] : memref<4x128xf32, #tpu.memory_space<vmem>>, vector<1x128xf32>
    %4 = vector.broadcast %2 : vector<128x1xf32> to vector<128x128xf32>
    %5 = vector.broadcast %3 : vector<1x128xf32> to vector<128x128xf32>
    %6 = arith.mulf %4, %5 : vector<128x128xf32>
    %7 = vector.broadcast %1 : vector<1x128xf32> to vector<128x128xf32>
    %8 = arith.addf %7, %6 : vector<128x128xf32>
    %9 = vector.extract_strided_slice %0 {offsets = [0, 1], sizes = [128, 1], strides = [1, 1]} : vector<128x4xf32> to vector<128x1xf32>
    %c1 = arith.constant 1 : index
    %c0_5 = arith.constant 0 : index
    %10 = vector.load %arg4[%c1, %c0_5] : memref<4x128xf32, #tpu.memory_space<vmem>>, vector<1x128xf32>
    %11 = vector.broadcast %9 : vector<128x1xf32> to vector<128x128xf32>
    %12 = vector.broadcast %10 : vector<1x128xf32> to vector<128x128xf32>
    %13 = arith.mulf %11, %12 : vector<128x128xf32>
    %14 = arith.addf %8, %13 : vector<128x128xf32>
    %15 = vector.extract_strided_slice %0 {offsets = [0, 2], sizes = [128, 1], strides = [1, 1]} : vector<128x4xf32> to vector<128x1xf32>
    %c2 = arith.constant 2 : index
    %c0_6 = arith.constant 0 : index
    %16 = vector.load %arg4[%c2, %c0_6] : memref<4x128xf32, #tpu.memory_space<vmem>>, vector<1x128xf32>
    %17 = vector.broadcast %15 : vector<128x1xf32> to vector<128x128xf32>
    %18 = vector.broadcast %16 : vector<1x128xf32> to vector<128x128xf32>
    %19 = arith.mulf %17, %18 : vector<128x128xf32>
    %20 = arith.addf %14, %19 : vector<128x128xf32>
    %21 = vector.extract_strided_slice %0 {offsets = [0, 3], sizes = [128, 1], strides = [1, 1]} : vector<128x4xf32> to vector<128x1xf32>
    %c3 = arith.constant 3 : index
    %c0_7 = arith.constant 0 : index
    %22 = vector.load %arg4[%c3, %c0_7] : memref<4x128xf32, #tpu.memory_space<vmem>>, vector<1x128xf32>
    %23 = vector.broadcast %21 : vector<128x1xf32> to vector<128x128xf32>
    %24 = vector.broadcast %22 : vector<1x128xf32> to vector<128x128xf32>
    %25 = arith.mulf %23, %24 : vector<128x128xf32>
    %26 = arith.addf %20, %25 : vector<128x128xf32>
    %27 = math.sin %26 : vector<128x128xf32>
    %c0_8 = arith.constant 0 : index
    %c0_9 = arith.constant 0 : index
    %28 = vector.load %arg0[%c0_8, %c0_9] : memref<2x32xf32, #tpu.memory_space<vmem>>, vector<2x32xf32>
    %29 = arith.mulf %28, %28 : vector<2x32xf32>
    %cst = arith.constant dense<0.000000e+00> : vector<2xf32>
    %30 = vector.multi_reduction <add>, %29, %cst [1] : vector<2x32xf32> to vector<2xf32>
    %31 = vector.shape_cast %30 : vector<2xf32> to vector<2x1xf32>
    %cst_10 = arith.constant 3.200000e+01 : f32
    %32 = vector.broadcast %cst_10 : f32 to vector<2x1xf32>
    %33 = arith.divf %31, %32 : vector<2x1xf32>
    %cst_11 = arith.constant 9.99999993E-9 : f32
    %34 = vector.broadcast %cst_11 : f32 to vector<2x1xf32>
    %35 = arith.addf %33, %34 : vector<2x1xf32>
    %36 = math.rsqrt %35 : vector<2x1xf32>
    %37 = vector.broadcast %36 : vector<2x1xf32> to vector<2x32xf32>
    %38 = arith.mulf %28, %37 : vector<2x32xf32>
    %c0_12 = arith.constant 0 : index
    %c0_13 = arith.constant 0 : index
    %c0_14 = arith.constant 0 : index
    %39 = vector.load %arg2[%c0_12, %c0_13, %c0_14] : memref<8x32x32xf32, #tpu.memory_space<vmem>>, vector<1x32x32xf32>
    %40 = vector.shape_cast %39 : vector<1x32x32xf32> to vector<32x32xf32>
    %cst_15 = arith.constant dense<0.000000e+00> : vector<2x32xf32>
    %41 = tpu.matmul %38, %40, %cst_15 {dimension_numbers = #tpu.dot_dimension_numbers<[1], [0], [0], [1], [0, 0, 1, 1], [], []>} : vector<2x32xf32>, vector<32x32xf32>, vector<2x32xf32> -> vector<2x32xf32>
    %c0_16 = arith.constant 0 : index
    %c0_17 = arith.constant 0 : index
    %c0_18 = arith.constant 0 : index
    %42 = vector.load %arg3[%c0_16, %c0_17, %c0_18] : memref<8x1x32xf32, #tpu.memory_space<vmem>>, vector<1x1x32xf32>
    %43 = vector.shape_cast %42 : vector<1x1x32xf32> to vector<1x32xf32>
    %44 = vector.broadcast %43 : vector<1x32xf32> to vector<2x32xf32>
    %45 = arith.addf %41, %44 : vector<2x32xf32>
    %cst_19 = arith.constant 0.000000e+00 : f32
    %46 = vector.broadcast %cst_19 : f32 to vector<2x32xf32>
    %47 = arith.cmpf oge, %45, %46 : vector<2x32xf32>
    %cst_20 = arith.constant 2.000000e-01 : f32
    %48 = vector.broadcast %cst_20 : f32 to vector<2x32xf32>
    %49 = arith.mulf %48, %45 : vector<2x32xf32>
    %50 = arith.select %47, %45, %49 : vector<2x32xi1>, vector<2x32xf32>
    %cst_21 = arith.constant 1.41421354 : f32
    %51 = vector.broadcast %cst_21 : f32 to vector<2x32xf32>
    %52 = arith.mulf %50, %51 : vector<2x32xf32>
    %c1_22 = arith.constant 1 : index
    %c0_23 = arith.constant 0 : index
    %c0_24 = arith.constant 0 : index
    %53 = vector.load %arg2[%c1_22, %c0_23, %c0_24] : memref<8x32x32xf32, #tpu.memory_space<vmem>>, vector<1x32x32xf32>
    %54 = vector.shape_cast %53 : vector<1x32x32xf32> to vector<32x32xf32>
    %cst_25 = arith.constant dense<0.000000e+00> : vector<2x32xf32>
    %55 = tpu.matmul %52, %54, %cst_25 {dimension_numbers = #tpu.dot_dimension_numbers<[1], [0], [0], [1], [0, 0, 1, 1], [], []>} : vector<2x32xf32>, vector<32x32xf32>, vector<2x32xf32> -> vector<2x32xf32>
    %c1_26 = arith.constant 1 : index
    %c0_27 = arith.constant 0 : index
    %c0_28 = arith.constant 0 : index
    %56 = vector.load %arg3[%c1_26, %c0_27, %c0_28] : memref<8x1x32xf32, #tpu.memory_space<vmem>>, vector<1x1x32xf32>
    %57 = vector.shape_cast %56 : vector<1x1x32xf32> to vector<1x32xf32>
    %58 = vector.broadcast %57 : vector<1x32xf32> to vector<2x32xf32>
    %59 = arith.addf %55, %58 : vector<2x32xf32>
    %cst_29 = arith.constant 0.000000e+00 : f32
    %60 = vector.broadcast %cst_29 : f32 to vector<2x32xf32>
    %61 = arith.cmpf oge, %59, %60 : vector<2x32xf32>
    %cst_30 = arith.constant 2.000000e-01 : f32
    %62 = vector.broadcast %cst_30 : f32 to vector<2x32xf32>
    %63 = arith.mulf %62, %59 : vector<2x32xf32>
    %64 = arith.select %61, %59, %63 : vector<2x32xi1>, vector<2x32xf32>
    %cst_31 = arith.constant 1.41421354 : f32
    %65 = vector.broadcast %cst_31 : f32 to vector<2x32xf32>
    %66 = arith.mulf %64, %65 : vector<2x32xf32>
    %c2_32 = arith.constant 2 : index
    %c0_33 = arith.constant 0 : index
    %c0_34 = arith.constant 0 : index
    %67 = vector.load %arg2[%c2_32, %c0_33, %c0_34] : memref<8x32x32xf32, #tpu.memory_space<vmem>>, vector<1x32x32xf32>
    %68 = vector.shape_cast %67 : vector<1x32x32xf32> to vector<32x32xf32>
    %cst_35 = arith.constant dense<0.000000e+00> : vector<2x32xf32>
    %69 = tpu.matmul %66, %68, %cst_35 {dimension_numbers = #tpu.dot_dimension_numbers<[1], [0], [0], [1], [0, 0, 1, 1], [], []>} : vector<2x32xf32>, vector<32x32xf32>, vector<2x32xf32> -> vector<2x32xf32>
    %c2_36 = arith.constant 2 : index
    %c0_37 = arith.constant 0 : index
    %c0_38 = arith.constant 0 : index
    %70 = vector.load %arg3[%c2_36, %c0_37, %c0_38] : memref<8x1x32xf32, #tpu.memory_space<vmem>>, vector<1x1x32xf32>
    %71 = vector.shape_cast %70 : vector<1x1x32xf32> to vector<1x32xf32>
    %72 = vector.broadcast %71 : vector<1x32xf32> to vector<2x32xf32>
    %73 = arith.addf %69, %72 : vector<2x32xf32>
    %cst_39 = arith.constant 0.000000e+00 : f32
    %74 = vector.broadcast %cst_39 : f32 to vector<2x32xf32>
    %75 = arith.cmpf oge, %73, %74 : vector<2x32xf32>
    %cst_40 = arith.constant 2.000000e-01 : f32
    %76 = vector.broadcast %cst_40 : f32 to vector<2x32xf32>
    %77 = arith.mulf %76, %73 : vector<2x32xf32>
    %78 = arith.select %75, %73, %77 : vector<2x32xi1>, vector<2x32xf32>
    %cst_41 = arith.constant 1.41421354 : f32
    %79 = vector.broadcast %cst_41 : f32 to vector<2x32xf32>
    %80 = arith.mulf %78, %79 : vector<2x32xf32>
    %c3_42 = arith.constant 3 : index
    %c0_43 = arith.constant 0 : index
    %c0_44 = arith.constant 0 : index
    %81 = vector.load %arg2[%c3_42, %c0_43, %c0_44] : memref<8x32x32xf32, #tpu.memory_space<vmem>>, vector<1x32x32xf32>
    %82 = vector.shape_cast %81 : vector<1x32x32xf32> to vector<32x32xf32>
    %cst_45 = arith.constant dense<0.000000e+00> : vector<2x32xf32>
    %83 = tpu.matmul %80, %82, %cst_45 {dimension_numbers = #tpu.dot_dimension_numbers<[1], [0], [0], [1], [0, 0, 1, 1], [], []>} : vector<2x32xf32>, vector<32x32xf32>, vector<2x32xf32> -> vector<2x32xf32>
    %c3_46 = arith.constant 3 : index
    %c0_47 = arith.constant 0 : index
    %c0_48 = arith.constant 0 : index
    %84 = vector.load %arg3[%c3_46, %c0_47, %c0_48] : memref<8x1x32xf32, #tpu.memory_space<vmem>>, vector<1x1x32xf32>
    %85 = vector.shape_cast %84 : vector<1x1x32xf32> to vector<1x32xf32>
    %86 = vector.broadcast %85 : vector<1x32xf32> to vector<2x32xf32>
    %87 = arith.addf %83, %86 : vector<2x32xf32>
    %cst_49 = arith.constant 0.000000e+00 : f32
    %88 = vector.broadcast %cst_49 : f32 to vector<2x32xf32>
    %89 = arith.cmpf oge, %87, %88 : vector<2x32xf32>
    %cst_50 = arith.constant 2.000000e-01 : f32
    %90 = vector.broadcast %cst_50 : f32 to vector<2x32xf32>
    %91 = arith.mulf %90, %87 : vector<2x32xf32>
    %92 = arith.select %89, %87, %91 : vector<2x32xi1>, vector<2x32xf32>
    %cst_51 = arith.constant 1.41421354 : f32
    %93 = vector.broadcast %cst_51 : f32 to vector<2x32xf32>
    %94 = arith.mulf %92, %93 : vector<2x32xf32>
    %c4 = arith.constant 4 : index
    %c0_52 = arith.constant 0 : index
    %c0_53 = arith.constant 0 : index
    %95 = vector.load %arg2[%c4, %c0_52, %c0_53] : memref<8x32x32xf32, #tpu.memory_space<vmem>>, vector<1x32x32xf32>
    %96 = vector.shape_cast %95 : vector<1x32x32xf32> to vector<32x32xf32>
    %cst_54 = arith.constant dense<0.000000e+00> : vector<2x32xf32>
    %97 = tpu.matmul %94, %96, %cst_54 {dimension_numbers = #tpu.dot_dimension_numbers<[1], [0], [0], [1], [0, 0, 1, 1], [], []>} : vector<2x32xf32>, vector<32x32xf32>, vector<2x32xf32> -> vector<2x32xf32>
    %c4_55 = arith.constant 4 : index
    %c0_56 = arith.constant 0 : index
    %c0_57 = arith.constant 0 : index
    %98 = vector.load %arg3[%c4_55, %c0_56, %c0_57] : memref<8x1x32xf32, #tpu.memory_space<vmem>>, vector<1x1x32xf32>
    %99 = vector.shape_cast %98 : vector<1x1x32xf32> to vector<1x32xf32>
    %100 = vector.broadcast %99 : vector<1x32xf32> to vector<2x32xf32>
    %101 = arith.addf %97, %100 : vector<2x32xf32>
    %cst_58 = arith.constant 0.000000e+00 : f32
    %102 = vector.broadcast %cst_58 : f32 to vector<2x32xf32>
    %103 = arith.cmpf oge, %101, %102 : vector<2x32xf32>
    %cst_59 = arith.constant 2.000000e-01 : f32
    %104 = vector.broadcast %cst_59 : f32 to vector<2x32xf32>
    %105 = arith.mulf %104, %101 : vector<2x32xf32>
    %106 = arith.select %103, %101, %105 : vector<2x32xi1>, vector<2x32xf32>
    %cst_60 = arith.constant 1.41421354 : f32
    %107 = vector.broadcast %cst_60 : f32 to vector<2x32xf32>
    %108 = arith.mulf %106, %107 : vector<2x32xf32>
    %c5 = arith.constant 5 : index
    %c0_61 = arith.constant 0 : index
    %c0_62 = arith.constant 0 : index
    %109 = vector.load %arg2[%c5, %c0_61, %c0_62] : memref<8x32x32xf32, #tpu.memory_space<vmem>>, vector<1x32x32xf32>
    %110 = vector.shape_cast %109 : vector<1x32x32xf32> to vector<32x32xf32>
    %cst_63 = arith.constant dense<0.000000e+00> : vector<2x32xf32>
    %111 = tpu.matmul %108, %110, %cst_63 {dimension_numbers = #tpu.dot_dimension_numbers<[1], [0], [0], [1], [0, 0, 1, 1], [], []>} : vector<2x32xf32>, vector<32x32xf32>, vector<2x32xf32> -> vector<2x32xf32>
    %c5_64 = arith.constant 5 : index
    %c0_65 = arith.constant 0 : index
    %c0_66 = arith.constant 0 : index
    %112 = vector.load %arg3[%c5_64, %c0_65, %c0_66] : memref<8x1x32xf32, #tpu.memory_space<vmem>>, vector<1x1x32xf32>
    %113 = vector.shape_cast %112 : vector<1x1x32xf32> to vector<1x32xf32>
    %114 = vector.broadcast %113 : vector<1x32xf32> to vector<2x32xf32>
    %115 = arith.addf %111, %114 : vector<2x32xf32>
    %cst_67 = arith.constant 0.000000e+00 : f32
    %116 = vector.broadcast %cst_67 : f32 to vector<2x32xf32>
    %117 = arith.cmpf oge, %115, %116 : vector<2x32xf32>
    %cst_68 = arith.constant 2.000000e-01 : f32
    %118 = vector.broadcast %cst_68 : f32 to vector<2x32xf32>
    %119 = arith.mulf %118, %115 : vector<2x32xf32>
    %120 = arith.select %117, %115, %119 : vector<2x32xi1>, vector<2x32xf32>
    %cst_69 = arith.constant 1.41421354 : f32
    %121 = vector.broadcast %cst_69 : f32 to vector<2x32xf32>
    %122 = arith.mulf %120, %121 : vector<2x32xf32>
    %c6 = arith.constant 6 : index
    %c0_70 = arith.constant 0 : index
    %c0_71 = arith.constant 0 : index
    %123 = vector.load %arg2[%c6, %c0_70, %c0_71] : memref<8x32x32xf32, #tpu.memory_space<vmem>>, vector<1x32x32xf32>
    %124 = vector.shape_cast %123 : vector<1x32x32xf32> to vector<32x32xf32>
    %cst_72 = arith.constant dense<0.000000e+00> : vector<2x32xf32>
    %125 = tpu.matmul %122, %124, %cst_72 {dimension_numbers = #tpu.dot_dimension_numbers<[1], [0], [0], [1], [0, 0, 1, 1], [], []>} : vector<2x32xf32>, vector<32x32xf32>, vector<2x32xf32> -> vector<2x32xf32>
    %c6_73 = arith.constant 6 : index
    %c0_74 = arith.constant 0 : index
    %c0_75 = arith.constant 0 : index
    %126 = vector.load %arg3[%c6_73, %c0_74, %c0_75] : memref<8x1x32xf32, #tpu.memory_space<vmem>>, vector<1x1x32xf32>
    %127 = vector.shape_cast %126 : vector<1x1x32xf32> to vector<1x32xf32>
    %128 = vector.broadcast %127 : vector<1x32xf32> to vector<2x32xf32>
    %129 = arith.addf %125, %128 : vector<2x32xf32>
    %cst_76 = arith.constant 0.000000e+00 : f32
    %130 = vector.broadcast %cst_76 : f32 to vector<2x32xf32>
    %131 = arith.cmpf oge, %129, %130 : vector<2x32xf32>
    %cst_77 = arith.constant 2.000000e-01 : f32
    %132 = vector.broadcast %cst_77 : f32 to vector<2x32xf32>
    %133 = arith.mulf %132, %129 : vector<2x32xf32>
    %134 = arith.select %131, %129, %133 : vector<2x32xi1>, vector<2x32xf32>
    %cst_78 = arith.constant 1.41421354 : f32
    %135 = vector.broadcast %cst_78 : f32 to vector<2x32xf32>
    %136 = arith.mulf %134, %135 : vector<2x32xf32>
    %c7 = arith.constant 7 : index
    %c0_79 = arith.constant 0 : index
    %c0_80 = arith.constant 0 : index
    %137 = vector.load %arg2[%c7, %c0_79, %c0_80] : memref<8x32x32xf32, #tpu.memory_space<vmem>>, vector<1x32x32xf32>
    %138 = vector.shape_cast %137 : vector<1x32x32xf32> to vector<32x32xf32>
    %cst_81 = arith.constant dense<0.000000e+00> : vector<2x32xf32>
    %139 = tpu.matmul %136, %138, %cst_81 {dimension_numbers = #tpu.dot_dimension_numbers<[1], [0], [0], [1], [0, 0, 1, 1], [], []>} : vector<2x32xf32>, vector<32x32xf32>, vector<2x32xf32> -> vector<2x32xf32>
    %c7_82 = arith.constant 7 : index
    %c0_83 = arith.constant 0 : index
    %c0_84 = arith.constant 0 : index
    %140 = vector.load %arg3[%c7_82, %c0_83, %c0_84] : memref<8x1x32xf32, #tpu.memory_space<vmem>>, vector<1x1x32xf32>
    %141 = vector.shape_cast %140 : vector<1x1x32xf32> to vector<1x32xf32>
    %142 = vector.broadcast %141 : vector<1x32xf32> to vector<2x32xf32>
    %143 = arith.addf %139, %142 : vector<2x32xf32>
    %cst_85 = arith.constant 0.000000e+00 : f32
    %144 = vector.broadcast %cst_85 : f32 to vector<2x32xf32>
    %145 = arith.cmpf oge, %143, %144 : vector<2x32xf32>
    %cst_86 = arith.constant 2.000000e-01 : f32
    %146 = vector.broadcast %cst_86 : f32 to vector<2x32xf32>
    %147 = arith.mulf %146, %143 : vector<2x32xf32>
    %148 = arith.select %145, %143, %147 : vector<2x32xi1>, vector<2x32xf32>
    %cst_87 = arith.constant 1.41421354 : f32
    %149 = vector.broadcast %cst_87 : f32 to vector<2x32xf32>
    %150 = arith.mulf %148, %149 : vector<2x32xf32>
    %c0_88 = arith.constant 0 : index
    %c0_89 = arith.constant 0 : index
    %151 = vector.load %arg6[%c0_88, %c0_89] : memref<32x640xf32, #tpu.memory_space<vmem>>, vector<32x640xf32>
    %cst_90 = arith.constant dense<0.000000e+00> : vector<2x640xf32>
    %152 = tpu.matmul %150, %151, %cst_90 {dimension_numbers = #tpu.dot_dimension_numbers<[1], [0], [0], [1], [0, 0, 1, 1], [], []>} : vector<2x32xf32>, vector<32x640xf32>, vector<2x640xf32> -> vector<2x640xf32>
    %c0_91 = arith.constant 0 : index
    %c0_92 = arith.constant 0 : index
    %153 = vector.load %arg7[%c0_91, %c0_92] : memref<1x640xf32, #tpu.memory_space<vmem>>, vector<1x640xf32>
    %154 = vector.broadcast %153 : vector<1x640xf32> to vector<2x640xf32>
    %155 = arith.addf %152, %154 : vector<2x640xf32>
    %156 = tpu.iota {dimensions = array<i32: 1>} : vector<1x640xi32>
    %c64_i32 = arith.constant 64 : i32
    %157 = vector.broadcast %c64_i32 : i32 to vector<1x640xi32>
    %158 = arith.andi %156, %157 : vector<1x640xi32>
    %c0_i32 = arith.constant 0 : i32
    %159 = vector.broadcast %c0_i32 : i32 to vector<1x640xi32>
    %160 = arith.cmpi eq, %158, %159 : vector<1x640xi32>
    %161 = vector.extract_strided_slice %155 {offsets = [0, 0], sizes = [1, 640], strides = [1, 1]} : vector<2x640xf32> to vector<1x640xf32>
    %162 = vector.extract_strided_slice %155 {offsets = [1, 0], sizes = [1, 640], strides = [1, 1]} : vector<2x640xf32> to vector<1x640xf32>
    %163 = arith.select %160, %161, %162 : vector<1x640xi1>, vector<1x640xf32>
    %164 = vector.extract_strided_slice %163 {offsets = [0, 0], sizes = [1, 128], strides = [1, 1]} : vector<1x640xf32> to vector<1x128xf32>
    %c0_93 = arith.constant 0 : index
    %c0_94 = arith.constant 0 : index
    %c0_95 = arith.constant 0 : index
    %165 = vector.load %arg8[%c0_93, %c0_94, %c0_95] : memref<5x128x128xf32, #tpu.memory_space<vmem>>, vector<1x128x128xf32>
    %166 = vector.shape_cast %165 : vector<1x128x128xf32> to vector<128x128xf32>
    %c0_96 = arith.constant 0 : index
    %c0_97 = arith.constant 0 : index
    %c0_98 = arith.constant 0 : index
    %167 = vector.load %arg8[%c0_96, %c0_97, %c0_98] : memref<5x128x128xf32, #tpu.memory_space<vmem>>, vector<1x128x128xf32>
    %168 = vector.shape_cast %167 : vector<1x128x128xf32> to vector<128x128xf32>
    %169 = arith.mulf %166, %168 : vector<128x128xf32>
    %170 = arith.mulf %164, %164 : vector<1x128xf32>
    %cst_99 = arith.constant dense<0.000000e+00> : vector<1x128xf32>
    %171 = tpu.matmul %170, %169, %cst_99 {dimension_numbers = #tpu.dot_dimension_numbers<[1], [0], [0], [1], [0, 0, 1, 1], [], []>} : vector<1x128xf32>, vector<128x128xf32>, vector<1x128xf32> -> vector<1x128xf32>
    %cst_100 = arith.constant 9.99999993E-9 : f32
    %172 = vector.broadcast %cst_100 : f32 to vector<1x128xf32>
    %173 = arith.addf %171, %172 : vector<1x128xf32>
    %174 = math.rsqrt %173 : vector<1x128xf32>
    %175 = vector.extract_strided_slice %163 {offsets = [0, 128], sizes = [1, 128], strides = [1, 1]} : vector<1x640xf32> to vector<1x128xf32>
    %c1_101 = arith.constant 1 : index
    %c0_102 = arith.constant 0 : index
    %c0_103 = arith.constant 0 : index
    %176 = vector.load %arg8[%c1_101, %c0_102, %c0_103] : memref<5x128x128xf32, #tpu.memory_space<vmem>>, vector<1x128x128xf32>
    %177 = vector.shape_cast %176 : vector<1x128x128xf32> to vector<128x128xf32>
    %c1_104 = arith.constant 1 : index
    %c0_105 = arith.constant 0 : index
    %c0_106 = arith.constant 0 : index
    %178 = vector.load %arg8[%c1_104, %c0_105, %c0_106] : memref<5x128x128xf32, #tpu.memory_space<vmem>>, vector<1x128x128xf32>
    %179 = vector.shape_cast %178 : vector<1x128x128xf32> to vector<128x128xf32>
    %180 = arith.mulf %177, %179 : vector<128x128xf32>
    %181 = arith.mulf %175, %175 : vector<1x128xf32>
    %cst_107 = arith.constant dense<0.000000e+00> : vector<1x128xf32>
    %182 = tpu.matmul %181, %180, %cst_107 {dimension_numbers = #tpu.dot_dimension_numbers<[1], [0], [0], [1], [0, 0, 1, 1], [], []>} : vector<1x128xf32>, vector<128x128xf32>, vector<1x128xf32> -> vector<1x128xf32>
    %cst_108 = arith.constant 9.99999993E-9 : f32
    %183 = vector.broadcast %cst_108 : f32 to vector<1x128xf32>
    %184 = arith.addf %182, %183 : vector<1x128xf32>
    %185 = math.rsqrt %184 : vector<1x128xf32>
    %186 = vector.extract_strided_slice %163 {offsets = [0, 256], sizes = [1, 128], strides = [1, 1]} : vector<1x640xf32> to vector<1x128xf32>
    %c2_109 = arith.constant 2 : index
    %c0_110 = arith.constant 0 : index
    %c0_111 = arith.constant 0 : index
    %187 = vector.load %arg8[%c2_109, %c0_110, %c0_111] : memref<5x128x128xf32, #tpu.memory_space<vmem>>, vector<1x128x128xf32>
    %188 = vector.shape_cast %187 : vector<1x128x128xf32> to vector<128x128xf32>
    %c2_112 = arith.constant 2 : index
    %c0_113 = arith.constant 0 : index
    %c0_114 = arith.constant 0 : index
    %189 = vector.load %arg8[%c2_112, %c0_113, %c0_114] : memref<5x128x128xf32, #tpu.memory_space<vmem>>, vector<1x128x128xf32>
    %190 = vector.shape_cast %189 : vector<1x128x128xf32> to vector<128x128xf32>
    %191 = arith.mulf %188, %190 : vector<128x128xf32>
    %192 = arith.mulf %186, %186 : vector<1x128xf32>
    %cst_115 = arith.constant dense<0.000000e+00> : vector<1x128xf32>
    %193 = tpu.matmul %192, %191, %cst_115 {dimension_numbers = #tpu.dot_dimension_numbers<[1], [0], [0], [1], [0, 0, 1, 1], [], []>} : vector<1x128xf32>, vector<128x128xf32>, vector<1x128xf32> -> vector<1x128xf32>
    %cst_116 = arith.constant 9.99999993E-9 : f32
    %194 = vector.broadcast %cst_116 : f32 to vector<1x128xf32>
    %195 = arith.addf %193, %194 : vector<1x128xf32>
    %196 = math.rsqrt %195 : vector<1x128xf32>
    %197 = vector.extract_strided_slice %163 {offsets = [0, 384], sizes = [1, 128], strides = [1, 1]} : vector<1x640xf32> to vector<1x128xf32>
    %c3_117 = arith.constant 3 : index
    %c0_118 = arith.constant 0 : index
    %c0_119 = arith.constant 0 : index
    %198 = vector.load %arg8[%c3_117, %c0_118, %c0_119] : memref<5x128x128xf32, #tpu.memory_space<vmem>>, vector<1x128x128xf32>
    %199 = vector.shape_cast %198 : vector<1x128x128xf32> to vector<128x128xf32>
    %c3_120 = arith.constant 3 : index
    %c0_121 = arith.constant 0 : index
    %c0_122 = arith.constant 0 : index
    %200 = vector.load %arg8[%c3_120, %c0_121, %c0_122] : memref<5x128x128xf32, #tpu.memory_space<vmem>>, vector<1x128x128xf32>
    %201 = vector.shape_cast %200 : vector<1x128x128xf32> to vector<128x128xf32>
    %202 = arith.mulf %199, %201 : vector<128x128xf32>
    %203 = arith.mulf %197, %197 : vector<1x128xf32>
    %cst_123 = arith.constant dense<0.000000e+00> : vector<1x128xf32>
    %204 = tpu.matmul %203, %202, %cst_123 {dimension_numbers = #tpu.dot_dimension_numbers<[1], [0], [0], [1], [0, 0, 1, 1], [], []>} : vector<1x128xf32>, vector<128x128xf32>, vector<1x128xf32> -> vector<1x128xf32>
    %cst_124 = arith.constant 9.99999993E-9 : f32
    %205 = vector.broadcast %cst_124 : f32 to vector<1x128xf32>
    %206 = arith.addf %204, %205 : vector<1x128xf32>
    %207 = math.rsqrt %206 : vector<1x128xf32>
    %208 = vector.extract_strided_slice %163 {offsets = [0, 512], sizes = [1, 128], strides = [1, 1]} : vector<1x640xf32> to vector<1x128xf32>
    %c4_125 = arith.constant 4 : index
    %c0_126 = arith.constant 0 : index
    %c0_127 = arith.constant 0 : index
    %209 = vector.load %arg8[%c4_125, %c0_126, %c0_127] : memref<5x128x128xf32, #tpu.memory_space<vmem>>, vector<1x128x128xf32>
    %210 = vector.shape_cast %209 : vector<1x128x128xf32> to vector<128x128xf32>
    %c4_128 = arith.constant 4 : index
    %c0_129 = arith.constant 0 : index
    %c0_130 = arith.constant 0 : index
    %211 = vector.load %arg8[%c4_128, %c0_129, %c0_130] : memref<5x128x128xf32, #tpu.memory_space<vmem>>, vector<1x128x128xf32>
    %212 = vector.shape_cast %211 : vector<1x128x128xf32> to vector<128x128xf32>
    %213 = arith.mulf %210, %212 : vector<128x128xf32>
    %214 = arith.mulf %208, %208 : vector<1x128xf32>
    %cst_131 = arith.constant dense<0.000000e+00> : vector<1x128xf32>
    %215 = tpu.matmul %214, %213, %cst_131 {dimension_numbers = #tpu.dot_dimension_numbers<[1], [0], [0], [1], [0, 0, 1, 1], [], []>} : vector<1x128xf32>, vector<128x128xf32>, vector<1x128xf32> -> vector<1x128xf32>
    %cst_132 = arith.constant 9.99999993E-9 : f32
    %216 = vector.broadcast %cst_132 : f32 to vector<1x128xf32>
    %217 = arith.addf %215, %216 : vector<1x128xf32>
    %218 = math.rsqrt %217 : vector<1x128xf32>
    %219 = vector.broadcast %164 : vector<1x128xf32> to vector<128x128xf32>
    %220 = arith.mulf %27, %219 : vector<128x128xf32>
    %c0_133 = arith.constant 0 : index
    %c0_134 = arith.constant 0 : index
    %c0_135 = arith.constant 0 : index
    %221 = vector.load %arg8[%c0_133, %c0_134, %c0_135] : memref<5x128x128xf32, #tpu.memory_space<vmem>>, vector<1x128x128xf32>
    %222 = vector.shape_cast %221 : vector<1x128x128xf32> to vector<128x128xf32>
    %cst_136 = arith.constant dense<0.000000e+00> : vector<128x128xf32>
    %223 = tpu.matmul %220, %222, %cst_136 {dimension_numbers = #tpu.dot_dimension_numbers<[1], [0], [0], [1], [0, 0, 1, 1], [], []>} : vector<128x128xf32>, vector<128x128xf32>, vector<128x128xf32> -> vector<128x128xf32>
    %224 = vector.broadcast %174 : vector<1x128xf32> to vector<128x128xf32>
    %225 = arith.mulf %223, %224 : vector<128x128xf32>
    %c0_137 = arith.constant 0 : index
    %c0_138 = arith.constant 0 : index
    %c0_139 = arith.constant 0 : index
    %226 = vector.load %arg9[%c0_137, %c0_138, %c0_139] : memref<5x1x128xf32, #tpu.memory_space<vmem>>, vector<1x1x128xf32>
    %227 = vector.shape_cast %226 : vector<1x1x128xf32> to vector<1x128xf32>
    %228 = vector.broadcast %227 : vector<1x128xf32> to vector<128x128xf32>
    %229 = arith.addf %225, %228 : vector<128x128xf32>
    %cst_140 = arith.constant 0.000000e+00 : f32
    %230 = vector.broadcast %cst_140 : f32 to vector<128x128xf32>
    %231 = arith.cmpf oge, %229, %230 : vector<128x128xf32>
    %cst_141 = arith.constant 2.000000e-01 : f32
    %232 = vector.broadcast %cst_141 : f32 to vector<128x128xf32>
    %233 = arith.mulf %232, %229 : vector<128x128xf32>
    %234 = arith.select %231, %229, %233 : vector<128x128xi1>, vector<128x128xf32>
    %cst_142 = arith.constant 1.41421354 : f32
    %235 = vector.broadcast %cst_142 : f32 to vector<128x128xf32>
    %236 = arith.mulf %234, %235 : vector<128x128xf32>
    %237 = vector.broadcast %175 : vector<1x128xf32> to vector<128x128xf32>
    %238 = arith.mulf %236, %237 : vector<128x128xf32>
    %c1_143 = arith.constant 1 : index
    %c0_144 = arith.constant 0 : index
    %c0_145 = arith.constant 0 : index
    %239 = vector.load %arg8[%c1_143, %c0_144, %c0_145] : memref<5x128x128xf32, #tpu.memory_space<vmem>>, vector<1x128x128xf32>
    %240 = vector.shape_cast %239 : vector<1x128x128xf32> to vector<128x128xf32>
    %cst_146 = arith.constant dense<0.000000e+00> : vector<128x128xf32>
    %241 = tpu.matmul %238, %240, %cst_146 {dimension_numbers = #tpu.dot_dimension_numbers<[1], [0], [0], [1], [0, 0, 1, 1], [], []>} : vector<128x128xf32>, vector<128x128xf32>, vector<128x128xf32> -> vector<128x128xf32>
    %242 = vector.broadcast %185 : vector<1x128xf32> to vector<128x128xf32>
    %243 = arith.mulf %241, %242 : vector<128x128xf32>
    %c1_147 = arith.constant 1 : index
    %c0_148 = arith.constant 0 : index
    %c0_149 = arith.constant 0 : index
    %244 = vector.load %arg9[%c1_147, %c0_148, %c0_149] : memref<5x1x128xf32, #tpu.memory_space<vmem>>, vector<1x1x128xf32>
    %245 = vector.shape_cast %244 : vector<1x1x128xf32> to vector<1x128xf32>
    %246 = vector.broadcast %245 : vector<1x128xf32> to vector<128x128xf32>
    %247 = arith.addf %243, %246 : vector<128x128xf32>
    %cst_150 = arith.constant 0.000000e+00 : f32
    %248 = vector.broadcast %cst_150 : f32 to vector<128x128xf32>
    %249 = arith.cmpf oge, %247, %248 : vector<128x128xf32>
    %cst_151 = arith.constant 2.000000e-01 : f32
    %250 = vector.broadcast %cst_151 : f32 to vector<128x128xf32>
    %251 = arith.mulf %250, %247 : vector<128x128xf32>
    %252 = arith.select %249, %247, %251 : vector<128x128xi1>, vector<128x128xf32>
    %cst_152 = arith.constant 1.41421354 : f32
    %253 = vector.broadcast %cst_152 : f32 to vector<128x128xf32>
    %254 = arith.mulf %252, %253 : vector<128x128xf32>
    %255 = vector.broadcast %186 : vector<1x128xf32> to vector<128x128xf32>
    %256 = arith.mulf %254, %255 : vector<128x128xf32>
    %c2_153 = arith.constant 2 : index
    %c0_154 = arith.constant 0 : index
    %c0_155 = arith.constant 0 : index
    %257 = vector.load %arg8[%c2_153, %c0_154, %c0_155] : memref<5x128x128xf32, #tpu.memory_space<vmem>>, vector<1x128x128xf32>
    %258 = vector.shape_cast %257 : vector<1x128x128xf32> to vector<128x128xf32>
    %cst_156 = arith.constant dense<0.000000e+00> : vector<128x128xf32>
    %259 = tpu.matmul %256, %258, %cst_156 {dimension_numbers = #tpu.dot_dimension_numbers<[1], [0], [0], [1], [0, 0, 1, 1], [], []>} : vector<128x128xf32>, vector<128x128xf32>, vector<128x128xf32> -> vector<128x128xf32>
    %260 = vector.broadcast %196 : vector<1x128xf32> to vector<128x128xf32>
    %261 = arith.mulf %259, %260 : vector<128x128xf32>
    %c2_157 = arith.constant 2 : index
    %c0_158 = arith.constant 0 : index
    %c0_159 = arith.constant 0 : index
    %262 = vector.load %arg9[%c2_157, %c0_158, %c0_159] : memref<5x1x128xf32, #tpu.memory_space<vmem>>, vector<1x1x128xf32>
    %263 = vector.shape_cast %262 : vector<1x1x128xf32> to vector<1x128xf32>
    %264 = vector.broadcast %263 : vector<1x128xf32> to vector<128x128xf32>
    %265 = arith.addf %261, %264 : vector<128x128xf32>
    %cst_160 = arith.constant 0.000000e+00 : f32
    %266 = vector.broadcast %cst_160 : f32 to vector<128x128xf32>
    %267 = arith.cmpf oge, %265, %266 : vector<128x128xf32>
    %cst_161 = arith.constant 2.000000e-01 : f32
    %268 = vector.broadcast %cst_161 : f32 to vector<128x128xf32>
    %269 = arith.mulf %268, %265 : vector<128x128xf32>
    %270 = arith.select %267, %265, %269 : vector<128x128xi1>, vector<128x128xf32>
    %cst_162 = arith.constant 1.41421354 : f32
    %271 = vector.broadcast %cst_162 : f32 to vector<128x128xf32>
    %272 = arith.mulf %270, %271 : vector<128x128xf32>
    %273 = vector.broadcast %197 : vector<1x128xf32> to vector<128x128xf32>
    %274 = arith.mulf %272, %273 : vector<128x128xf32>
    %c3_163 = arith.constant 3 : index
    %c0_164 = arith.constant 0 : index
    %c0_165 = arith.constant 0 : index
    %275 = vector.load %arg8[%c3_163, %c0_164, %c0_165] : memref<5x128x128xf32, #tpu.memory_space<vmem>>, vector<1x128x128xf32>
    %276 = vector.shape_cast %275 : vector<1x128x128xf32> to vector<128x128xf32>
    %cst_166 = arith.constant dense<0.000000e+00> : vector<128x128xf32>
    %277 = tpu.matmul %274, %276, %cst_166 {dimension_numbers = #tpu.dot_dimension_numbers<[1], [0], [0], [1], [0, 0, 1, 1], [], []>} : vector<128x128xf32>, vector<128x128xf32>, vector<128x128xf32> -> vector<128x128xf32>
    %278 = vector.broadcast %207 : vector<1x128xf32> to vector<128x128xf32>
    %279 = arith.mulf %277, %278 : vector<128x128xf32>
    %c3_167 = arith.constant 3 : index
    %c0_168 = arith.constant 0 : index
    %c0_169 = arith.constant 0 : index
    %280 = vector.load %arg9[%c3_167, %c0_168, %c0_169] : memref<5x1x128xf32, #tpu.memory_space<vmem>>, vector<1x1x128xf32>
    %281 = vector.shape_cast %280 : vector<1x1x128xf32> to vector<1x128xf32>
    %282 = vector.broadcast %281 : vector<1x128xf32> to vector<128x128xf32>
    %283 = arith.addf %279, %282 : vector<128x128xf32>
    %cst_170 = arith.constant 0.000000e+00 : f32
    %284 = vector.broadcast %cst_170 : f32 to vector<128x128xf32>
    %285 = arith.cmpf oge, %283, %284 : vector<128x128xf32>
    %cst_171 = arith.constant 2.000000e-01 : f32
    %286 = vector.broadcast %cst_171 : f32 to vector<128x128xf32>
    %287 = arith.mulf %286, %283 : vector<128x128xf32>
    %288 = arith.select %285, %283, %287 : vector<128x128xi1>, vector<128x128xf32>
    %cst_172 = arith.constant 1.41421354 : f32
    %289 = vector.broadcast %cst_172 : f32 to vector<128x128xf32>
    %290 = arith.mulf %288, %289 : vector<128x128xf32>
    %291 = vector.broadcast %208 : vector<1x128xf32> to vector<128x128xf32>
    %292 = arith.mulf %290, %291 : vector<128x128xf32>
    %c4_173 = arith.constant 4 : index
    %c0_174 = arith.constant 0 : index
    %c0_175 = arith.constant 0 : index
    %293 = vector.load %arg8[%c4_173, %c0_174, %c0_175] : memref<5x128x128xf32, #tpu.memory_space<vmem>>, vector<1x128x128xf32>
    %294 = vector.shape_cast %293 : vector<1x128x128xf32> to vector<128x128xf32>
    %cst_176 = arith.constant dense<0.000000e+00> : vector<128x128xf32>
    %295 = tpu.matmul %292, %294, %cst_176 {dimension_numbers = #tpu.dot_dimension_numbers<[1], [0], [0], [1], [0, 0, 1, 1], [], []>} : vector<128x128xf32>, vector<128x128xf32>, vector<128x128xf32> -> vector<128x128xf32>
    %296 = vector.broadcast %218 : vector<1x128xf32> to vector<128x128xf32>
    %297 = arith.mulf %295, %296 : vector<128x128xf32>
    %c4_177 = arith.constant 4 : index
    %c0_178 = arith.constant 0 : index
    %c0_179 = arith.constant 0 : index
    %298 = vector.load %arg9[%c4_177, %c0_178, %c0_179] : memref<5x1x128xf32, #tpu.memory_space<vmem>>, vector<1x1x128xf32>
    %299 = vector.shape_cast %298 : vector<1x1x128xf32> to vector<1x128xf32>
    %300 = vector.broadcast %299 : vector<1x128xf32> to vector<128x128xf32>
    %301 = arith.addf %297, %300 : vector<128x128xf32>
    %302 = arith.negf %301 : vector<128x128xf32>
    %303 = math.exp %302 : vector<128x128xf32>
    %cst_180 = arith.constant 1.000000e+00 : f32
    %304 = vector.broadcast %cst_180 : f32 to vector<128x128xf32>
    %305 = arith.addf %304, %303 : vector<128x128xf32>
    %306 = arith.divf %304, %305 : vector<128x128xf32>
    %307 = tpu.transpose %306, [1, 0] : vector<128x128xf32> -> vector<128x128xf32>
    %308 = vector.extract_strided_slice %307 {offsets = [0, 0], sizes = [3, 128], strides = [1, 1]} : vector<128x128xf32> to vector<3x128xf32>
    %c0_181 = arith.constant 0 : index
    %c0_182 = arith.constant 0 : index
    %c0_183 = arith.constant 0 : index
    %309 = vector.load %arg10[%c0_181, %c0_182, %c0_183] : memref<2x3x128xf32, #tpu.memory_space<vmem>>, vector<1x3x128xf32>
    %310 = vector.shape_cast %309 : vector<1x3x128xf32> to vector<3x128xf32>
    %311 = vector.shape_cast %308 : vector<3x128xf32> to vector<1x3x128xf32>
    tpu.vector_store %arg10[%c0_181, %c0_182, %c0_183], %311 {strides = array<i32>} : memref<2x3x128xf32, #tpu.memory_space<vmem>>, vector<1x3x128xf32>,
    %312 = vector.extract_strided_slice %307 {offsets = [64, 0], sizes = [3, 128], strides = [1, 1]} : vector<128x128xf32> to vector<3x128xf32>
    %c1_184 = arith.constant 1 : index
    %c0_185 = arith.constant 0 : index
    %c0_186 = arith.constant 0 : index
    %313 = vector.load %arg10[%c1_184, %c0_185, %c0_186] : memref<2x3x128xf32, #tpu.memory_space<vmem>>, vector<1x3x128xf32>
    %314 = vector.shape_cast %313 : vector<1x3x128xf32> to vector<3x128xf32>
    %315 = vector.shape_cast %312 : vector<3x128xf32> to vector<1x3x128xf32>
    tpu.vector_store %arg10[%c1_184, %c0_185, %c0_186], %315 {strides = array<i32>} : memref<2x3x128xf32, #tpu.memory_space<vmem>>, vector<1x3x128xf32>,
    return
  }
}

</mosaic_0001>

<llo_original>
// kernel: bg_generator_forward.1
$region0: #{bg_generator_forward.1}
  #allocation0 [shape = 'u32[]', space=smem, size = 0x4, offset = 0x4, fixed_abs, tag = 'smem constant byte address 0x4 - core index']
  #allocation1 [shape = 'u32[72,128]{1,0:T(1,128)}', space=vmem, size = 0x9000, scoped, tag = 'internal scratch']
  %s0 = inlined_call_operand.vmem [shape: f32[2,32], index: 0, kind: input, shape index: {}]
  %s1 = inlined_call_operand.vmem [shape: f32[128,4], index: 1, kind: input, shape index: {}]
  %s2 = inlined_call_operand.hbm [shape: f32[8,32,32], index: 2, kind: input, shape index: {}]
  %s3 = inlined_call_operand.vmem [shape: f32[8,1,32], index: 3, kind: input, shape index: {}]
  %s4 = inlined_call_operand.vmem [shape: f32[4,128], index: 4, kind: input, shape index: {}]
  %s5 = inlined_call_operand.vmem [shape: f32[1,128], index: 5, kind: input, shape index: {}]
  %s6 = inlined_call_operand.hbm [shape: f32[32,640], index: 6, kind: input, shape index: {}]
  %s7 = inlined_call_operand.vmem [shape: f32[1,640], index: 7, kind: input, shape index: {}]
  %s8 = inlined_call_operand.hbm [shape: f32[5,128,128], index: 8, kind: input, shape index: {}]
  %s9 = inlined_call_operand.vmem [shape: f32[5,1,128], index: 9, kind: input, shape index: {}]
  %s10 = inlined_call_operand.vmem [shape: f32[2,3,128], index: 10, kind: output, shape index: {}]
  %s11 = sld [smem:[#allocation0]]
  $region62: #{bg_generator_forward.1} parent=0
    _
  %s13 = ssub.s32 1, %s11
  %s14 = scalar_select 0, %s13, %s11
  $region1: #{bg_generator_forward.1} parent=0
    #allocation2 [shape = 'u8[131072]{0}', space=vmem, size = 0x20000, scoped, tag = 'input window, operand 2, single buffered']
    #allocation3 [shape = 's32[1]{0}', space=sflag, size = 0x4, scoped, tag = 'scoped memory for bg_generator_forward.1']
    #allocation4 [shape = 'u8[81920]{0}', space=vmem, size = 0x14000, scoped, tag = 'input window, operand 6, single buffered']
    #allocation5 [shape = 's32[1]{0}', space=sflag, size = 0x4, scoped, tag = 'scoped memory for bg_generator_forward.1']
    #allocation6 [shape = 'u8[327680]{0}', space=vmem, size = 0x50000, scoped, tag = 'input window, operand 8, single buffered']
    %15 = vsyncpa [#allocation3], 0
    %16 = vsyncpa [#allocation5], 0
    // Predicated region
    $region2: #{bg_generator_forward.1} parent=1 // pred_check
      _
    $region3: #{bg_generator_forward.1} parent=1 // pred_check_branch
      %18 = sbr.rel (0) target = $region5
    $region4: #{bg_generator_forward.1} parent=1 // pred_region
      _
    $region5: #{bg_generator_forward.1} parent=1 // pred_fallthru
      _
    // Predicated region
    $region6: #{bg_generator_forward.1} parent=1 // pred_check
      _
    $region7: #{bg_generator_forward.1} parent=1 // pred_check_branch
      %20 = sbr.rel (0) target = $region9
    $region8: #{bg_generator_forward.1} parent=1 // pred_region
      _
    $region9: #{bg_generator_forward.1} parent=1 // pred_fallthru
      _
    // Predicated region
    $region10: #{bg_generator_forward.1} parent=1 // pred_check
      _
    $region11: #{bg_generator_forward.1} parent=1 // pred_check_branch
      %22 = sbr.rel (0) target = $region13
    $region12: #{bg_generator_forward.1} parent=1 // pred_region
      %24 = vsyncadd [#allocation3], 0
      %s25 = sshll.u32 %s2, 4
      %s26 = int_to_ptr.hbm [resolvable:$true] %s25
      %s27 = sshll.u32 [#allocation2], 4
      %s28 = int_to_ptr.vmem [resolvable:$true] %s27
      %33 = dma.hbm_to_vmem [thread:$0]  %s26, 4096, %s28, [#allocation3], 128, 128, 8
    $region13: #{bg_generator_forward.1} parent=1 // pred_fallthru
      _
    // Predicated region
    $region14: #{bg_generator_forward.1} parent=1 // pred_check
      _
    $region15: #{bg_generator_forward.1} parent=1 // pred_check_branch
      %35 = sbr.rel (0) target = $region17
    $region16: #{bg_generator_forward.1} parent=1 // pred_region
      _
    $region17: #{bg_generator_forward.1} parent=1 // pred_fallthru
      _
    // Predicated region
    $region18: #{bg_generator_forward.1} parent=1 // pred_check
      _
    $region19: #{bg_generator_forward.1} parent=1 // pred_check_branch
      %37 = sbr.rel (0) target = $region21
    $region20: #{bg_generator_forward.1} parent=1 // pred_region
      _
    $region21: #{bg_generator_forward.1} parent=1 // pred_fallthru
      _
    // Predicated region
    $region22: #{bg_generator_forward.1} parent=1 // pred_check
      _
    $region23: #{bg_generator_forward.1} parent=1 // pred_check_branch
      %39 = sbr.rel (0) target = $region25
    $region24: #{bg_generator_forward.1} parent=1 // pred_region
      _
    $region25: #{bg_generator_forward.1} parent=1 // pred_fallthru
      _
    // Predicated region
    $region26: #{bg_generator_forward.1} parent=1 // pred_check
      _
    $region27: #{bg_generator_forward.1} parent=1 // pred_check_branch
      %41 = sbr.rel (0) target = $region29
    $region28: #{bg_generator_forward.1} parent=1 // pred_region
      %43 = vsyncadd [#allocation5], 0
      %s44 = sshll.u32 %s6, 4
      %s45 = int_to_ptr.hbm [resolvable:$true] %s44
      %s46 = sshll.u32 [#allocation4], 4
      %s47 = int_to_ptr.vmem [resolvable:$true] %s46
      %52 = dma.hbm_to_vmem [thread:$0]  %s45, 2560, %s47, [#allocation5], 640, 640, 40
    $region29: #{bg_generator_forward.1} parent=1 // pred_fallthru
      _
    // Predicated region
    $region30: #{bg_generator_forward.1} parent=1 // pred_check
      _
    $region31: #{bg_generator_forward.1} parent=1 // pred_check_branch
      %54 = sbr.rel (0) target = $region33
    $region32: #{bg_generator_forward.1} parent=1 // pred_region
      _
    $region33: #{bg_generator_forward.1} parent=1 // pred_fallthru
      _
    // Predicated region
    $region34: #{bg_generator_forward.1} parent=1 // pred_check
      _
    $region35: #{bg_generator_forward.1} parent=1 // pred_check_branch
      %56 = sbr.rel (0) target = $region37
    $region36: #{bg_generator_forward.1} parent=1 // pred_region
      %58 = vsyncadd [#allocation5], 0
      %s59 = sshll.u32 %s8, 4
      %s60 = int_to_ptr.hbm [resolvable:$true] %s59
      %s61 = sshll.u32 [#allocation6], 4
      %s62 = int_to_ptr.vmem [resolvable:$true] %s61
      %67 = dma.hbm_to_vmem [thread:$0]  %s60, 10240, %s62, [#allocation5], 128, 128, 8
    $region37: #{bg_generator_forward.1} parent=1 // pred_fallthru
      _
    // Predicated region
    $region38: #{bg_generator_forward.1} parent=1 // pred_check
      _
    $region39: #{bg_generator_forward.1} parent=1 // pred_check_branch
      %69 = sbr.rel (0) target = $region41
    $region40: #{bg_generator_forward.1} parent=1 // pred_region
      _
    $region41: #{bg_generator_forward.1} parent=1 // pred_fallthru
      _
    // Predicated region
    $region42: #{bg_generator_forward.1} parent=1 // pred_check
      _
    $region43: #{bg_generator_forward.1} parent=1 // pred_check_branch
      %71 = sbr.rel (0) target = $region45
    $region44: #{bg_generator_forward.1} parent=1 // pred_region
      %73 = dma.done [#allocation3], 4096
    $region45: #{bg_generator_forward.1} parent=1 // pred_fallthru
      _
    // Predicated region
    $region46: #{bg_generator_forward.1} parent=1 // pred_check
      _
    $region47: #{bg_generator_forward.1} parent=1 // pred_check_branch
      %75 = sbr.rel (0) target = $region49
    $region48: #{bg_generator_forward.1} parent=1 // pred_region
      %77 = dma.done [#allocation5], 2560
    $region49: #{bg_generator_forward.1} parent=1 // pred_fallthru
      _
    // Predicated region
    $region50: #{bg_generator_forward.1} parent=1 // pred_check
      _
    $region51: #{bg_generator_forward.1} parent=1 // pred_check_branch
      %79 = sbr.rel (0) target = $region53
    $region52: #{bg_generator_forward.1} parent=1 // pred_region
      %81 = dma.done [#allocation5], 10240
    $region53: #{bg_generator_forward.1} parent=1 // pred_fallthru
      _
    %v82 = vld [vmem:[%s1] sm:$0xff]
    %v83 = vld [vmem:[%s1 + $0x8] sm:$0xff]
    %v84 = vld [vmem:[%s1 + $0x10] sm:$0xff]
    %v85 = vld [vmem:[%s1 + $0x18] sm:$0xff]
    %v86 = vld [vmem:[%s1 + $0x20] sm:$0xff]
    %v87 = vld [vmem:[%s1 + $0x28] sm:$0xff]
    %v88 = vld [vmem:[%s1 + $0x30] sm:$0xff]
    %v89 = vld [vmem:[%s1 + $0x38] sm:$0xff]
    %v90 = vld [vmem:[%s1 + $0x40] sm:$0xff]
    %v91 = vld [vmem:[%s1 + $0x48] sm:$0xff]
    %v92 = vld [vmem:[%s1 + $0x50] sm:$0xff]
    %v93 = vld [vmem:[%s1 + $0x58] sm:$0xff]
    %v94 = vld [vmem:[%s1 + $0x60] sm:$0xff]
    %v95 = vld [vmem:[%s1 + $0x68] sm:$0xff]
    %v96 = vld [vmem:[%s1 + $0x70] sm:$0xff]
    %v97 = vld [vmem:[%s1 + $0x78] sm:$0xff]
    %v98 = vld [vmem:[%s5] sm:$0x1]
    %v99 = vld [vmem:[%s4] sm:$0x1]
    %101 = vset.pattern.permute.xlu0 0
    %102 = vperm.xlu0 %101, %v82
    %v103 = vpop.permute.xlu0 %102
    %106 = vset.pattern.permute.xlu0 0
    %107 = vperm.xlu0 %106, %v83
    %v108 = vpop.permute.xlu0 %107
    %111 = vset.pattern.permute.xlu0 0
    %112 = vperm.xlu0 %111, %v84
    %v113 = vpop.permute.xlu0 %112
    %116 = vset.pattern.permute.xlu0 0
    %117 = vperm.xlu0 %116, %v85
    %v118 = vpop.permute.xlu0 %117
    %121 = vset.pattern.permute.xlu0 0
    %122 = vperm.xlu0 %121, %v86
    %v123 = vpop.permute.xlu0 %122
    %126 = vset.pattern.permute.xlu0 0
    %127 = vperm.xlu0 %126, %v87
    %v128 = vpop.permute.xlu0 %127
    %131 = vset.pattern.permute.xlu0 0
    %132 = vperm.xlu0 %131, %v88
    %v133 = vpop.permute.xlu0 %132
    %136 = vset.pattern.permute.xlu0 0
    %137 = vperm.xlu0 %136, %v89
    %v138 = vpop.permute.xlu0 %137
    %141 = vset.pattern.permute.xlu0 0
    %142 = vperm.xlu0 %141, %v90
    %v143 = vpop.permute.xlu0 %142
    %146 = vset.pattern.permute.xlu0 0
    %147 = vperm.xlu0 %146, %v91
    %v148 = vpop.permute.xlu0 %147
    %151 = vset.pattern.permute.xlu0 0
    %152 = vperm.xlu0 %151, %v92
    %v153 = vpop.permute.xlu0 %152
    %156 = vset.pattern.permute.xlu0 0
    %157 = vperm.xlu0 %156, %v93
    %v158 = vpop.permute.xlu0 %157
    %161 = vset.pattern.permute.xlu0 0
    %162 = vperm.xlu0 %161, %v94
    %v163 = vpop.permute.xlu0 %162
    %166 = vset.pattern.permute.xlu0 0
    %167 = vperm.xlu0 %166, %v95
    %v168 = vpop.permute.xlu0 %167
    %171 = vset.pattern.permute.xlu0 0
    %172 = vperm.xlu0 %171, %v96
    %v173 = vpop.permute.xlu0 %172
    %176 = vset.pattern.permute.xlu0 0
    %177 = vperm.xlu0 %176, %v97
    %v178 = vpop.permute.xlu0 %177
    %v180 = vperm.slane %v99, 0
    %v181 = vmul.f32 %v103, %v180
    %v182 = vmul.f32 %v108, %v180
    %v183 = vmul.f32 %v113, %v180
    %v184 = vmul.f32 %v118, %v180
    %v185 = vmul.f32 %v123, %v180
    %v186 = vmul.f32 %v128, %v180
    %v187 = vmul.f32 %v133, %v180
    %v188 = vmul.f32 %v138, %v180
    %v189 = vmul.f32 %v143, %v180
    %v190 = vmul.f32 %v148, %v180
    %v191 = vmul.f32 %v153, %v180
    %v192 = vmul.f32 %v158, %v180
    %v193 = vmul.f32 %v163, %v180
    %v194 = vmul.f32 %v168, %v180
    %v195 = vmul.f32 %v173, %v180
    %v196 = vmul.f32 %v178, %v180
    %v198 = vperm.slane %v98, 0
    %v200 = vadd.f32 %v198, %v181
    %v201 = vadd.f32 %v198, %v182
    %v202 = vadd.f32 %v198, %v183
    %v203 = vadd.f32 %v198, %v184
    %v204 = vadd.f32 %v198, %v185
    %v205 = vadd.f32 %v198, %v186
    %v206 = vadd.f32 %v198, %v187
    %v207 = vadd.f32 %v198, %v188
    %v208 = vadd.f32 %v198, %v189
    %v209 = vadd.f32 %v198, %v190
    %v210 = vadd.f32 %v198, %v191
    %v211 = vadd.f32 %v198, %v192
    %v212 = vadd.f32 %v198, %v193
    %v213 = vadd.f32 %v198, %v194
    %v214 = vadd.f32 %v198, %v195
    %v215 = vadd.f32 %v198, %v196
    %v216 = vld [vmem:[%s4 + $0x1] sm:$0x1]
    %217 = vset.pattern.permute.xlu0 1
    %218 = vperm.xlu0 %217, %v82
    %v219 = vpop.permute.xlu0 %218
    %221 = vset.pattern.permute.xlu0 1
    %222 = vperm.xlu0 %221, %v83
    %v223 = vpop.permute.xlu0 %222
    %225 = vset.pattern.permute.xlu0 1
    %226 = vperm.xlu0 %225, %v84
    %v227 = vpop.permute.xlu0 %226
    %229 = vset.pattern.permute.xlu0 1
    %230 = vperm.xlu0 %229, %v85
    %v231 = vpop.permute.xlu0 %230
    %233 = vset.pattern.permute.xlu0 1
    %234 = vperm.xlu0 %233, %v86
    %v235 = vpop.permute.xlu0 %234
    %237 = vset.pattern.permute.xlu0 1
    %238 = vperm.xlu0 %237, %v87
    %v239 = vpop.permute.xlu0 %238
    %241 = vset.pattern.permute.xlu0 1
    %242 = vperm.xlu0 %241, %v88
    %v243 = vpop.permute.xlu0 %242
    %245 = vset.pattern.permute.xlu0 1
    %246 = vperm.xlu0 %245, %v89
    %v247 = vpop.permute.xlu0 %246
    %249 = vset.pattern.permute.xlu0 1
    %250 = vperm.xlu0 %249, %v90
    %v251 = vpop.permute.xlu0 %250
    %253 = vset.pattern.permute.xlu0 1
    %254 = vperm.xlu0 %253, %v91
    %v255 = vpop.permute.xlu0 %254
    %257 = vset.pattern.permute.xlu0 1
    %258 = vperm.xlu0 %257, %v92
    %v259 = vpop.permute.xlu0 %258
    %261 = vset.pattern.permute.xlu0 1
    %262 = vperm.xlu0 %261, %v93
    %v263 = vpop.permute.xlu0 %262
    %265 = vset.pattern.permute.xlu0 1
    %266 = vperm.xlu0 %265, %v94
    %v267 = vpop.permute.xlu0 %266
    %269 = vset.pattern.permute.xlu0 1
    %270 = vperm.xlu0 %269, %v95
    %v271 = vpop.permute.xlu0 %270
    %273 = vset.pattern.permute.xlu0 1
    %274 = vperm.xlu0 %273, %v96
    %v275 = vpop.permute.xlu0 %274
    %277 = vset.pattern.permute.xlu0 1
    %278 = vperm.xlu0 %277, %v97
    %v279 = vpop.permute.xlu0 %278
    %v281 = vperm.slane %v216, 0
    %v282 = vmul.f32 %v219, %v281
    %v283 = vmul.f32 %v223, %v281
    %v284 = vmul.f32 %v227, %v281
    %v285 = vmul.f32 %v231, %v281
    %v286 = vmul.f32 %v235, %v281
    %v287 = vmul.f32 %v239, %v281
    %v288 = vmul.f32 %v243, %v281
    %v289 = vmul.f32 %v247, %v281
    %v290 = vmul.f32 %v251, %v281
    %v291 = vmul.f32 %v255, %v281
    %v292 = vmul.f32 %v259, %v281
    %v293 = vmul.f32 %v263, %v281
    %v294 = vmul.f32 %v267, %v281
    %v295 = vmul.f32 %v271, %v281
    %v296 = vmul.f32 %v275, %v281
    %v297 = vmul.f32 %v279, %v281
    %v298 = vadd.f32 %v200, %v282
    %v299 = vadd.f32 %v201, %v283
    %v300 = vadd.f32 %v202, %v284
    %v301 = vadd.f32 %v203, %v285
    %v302 = vadd.f32 %v204, %v286
    %v303 = vadd.f32 %v205, %v287
    %v304 = vadd.f32 %v206, %v288
    %v305 = vadd.f32 %v207, %v289
    %v306 = vadd.f32 %v208, %v290
    %v307 = vadd.f32 %v209, %v291
    %v308 = vadd.f32 %v210, %v292
    %v309 = vadd.f32 %v211, %v293
    %v310 = vadd.f32 %v212, %v294
    %v311 = vadd.f32 %v213, %v295
    %v312 = vadd.f32 %v214, %v296
    %v313 = vadd.f32 %v215, %v297
    %v314 = vld [vmem:[%s4 + $0x2] sm:$0x1]
    %315 = vset.pattern.permute.xlu0 2
    %316 = vperm.xlu0 %315, %v82
    %v317 = vpop.permute.xlu0 %316
    %319 = vset.pattern.permute.xlu0 2
    %320 = vperm.xlu0 %319, %v83
    %v321 = vpop.permute.xlu0 %320
    %323 = vset.pattern.permute.xlu0 2
    %324 = vperm.xlu0 %323, %v84
    %v325 = vpop.permute.xlu0 %324
    %327 = vset.pattern.permute.xlu0 2
    %328 = vperm.xlu0 %327, %v85
    %v329 = vpop.permute.xlu0 %328
    %331 = vset.pattern.permute.xlu0 2
    %332 = vperm.xlu0 %331, %v86
    %v333 = vpop.permute.xlu0 %332
    %335 = vset.pattern.permute.xlu0 2
    %336 = vperm.xlu0 %335, %v87
    %v337 = vpop.permute.xlu0 %336
    %339 = vset.pattern.permute.xlu0 2
    %340 = vperm.xlu0 %339, %v88
    %v341 = vpop.permute.xlu0 %340
    %343 = vset.pattern.permute.xlu0 2
    %344 = vperm.xlu0 %343, %v89
    %v345 = vpop.permute.xlu0 %344
    %347 = vset.pattern.permute.xlu0 2
    %348 = vperm.xlu0 %347, %v90
    %v349 = vpop.permute.xlu0 %348
    %351 = vset.pattern.permute.xlu0 2
    %352 = vperm.xlu0 %351, %v91
    %v353 = vpop.permute.xlu0 %352
    %355 = vset.pattern.permute.xlu0 2
    %356 = vperm.xlu0 %355, %v92
    %v357 = vpop.permute.xlu0 %356
    %359 = vset.pattern.permute.xlu0 2
    %360 = vperm.xlu0 %359, %v93
    %v361 = vpop.permute.xlu0 %360
    %363 = vset.pattern.permute.xlu0 2
    %364 = vperm.xlu0 %363, %v94
    %v365 = vpop.permute.xlu0 %364
    %367 = vset.pattern.permute.xlu0 2
    %368 = vperm.xlu0 %367, %v95
    %v369 = vpop.permute.xlu0 %368
    %371 = vset.pattern.permute.xlu0 2
    %372 = vperm.xlu0 %371, %v96
    %v373 = vpop.permute.xlu0 %372
    %375 = vset.pattern.permute.xlu0 2
    %376 = vperm.xlu0 %375, %v97
    %v377 = vpop.permute.xlu0 %376
    %v379 = vperm.slane %v314, 0
    %v380 = vmul.f32 %v317, %v379
    %v381 = vmul.f32 %v321, %v379
    %v382 = vmul.f32 %v325, %v379
    %v383 = vmul.f32 %v329, %v379
    %v384 = vmul.f32 %v333, %v379
    %v385 = vmul.f32 %v337, %v379
    %v386 = vmul.f32 %v341, %v379
    %v387 = vmul.f32 %v345, %v379
    %v388 = vmul.f32 %v349, %v379
    %v389 = vmul.f32 %v353, %v379
    %v390 = vmul.f32 %v357, %v379
    %v391 = vmul.f32 %v361, %v379
    %v392 = vmul.f32 %v365, %v379
    %v393 = vmul.f32 %v369, %v379
    %v394 = vmul.f32 %v373, %v379
    %v395 = vmul.f32 %v377, %v379
    %v396 = vadd.f32 %v298, %v380
    %v397 = vadd.f32 %v299, %v381
    %v398 = vadd.f32 %v300, %v382
    %v399 = vadd.f32 %v301, %v383
    %v400 = vadd.f32 %v302, %v384
    %v401 = vadd.f32 %v303, %v385
    %v402 = vadd.f32 %v304, %v386
    %v403 = vadd.f32 %v305, %v387
    %v404 = vadd.f32 %v306, %v388
    %v405 = vadd.f32 %v307, %v389
    %v406 = vadd.f32 %v308, %v390
    %v407 = vadd.f32 %v309, %v391
    %v408 = vadd.f32 %v310, %v392
    %v409 = vadd.f32 %v311, %v393
    %v410 = vadd.f32 %v312, %v394
    %v411 = vadd.f32 %v313, %v395
    %v412 = vld [vmem:[%s4 + $0x3] sm:$0x1]
    %413 = vset.pattern.permute.xlu0 3
    %414 = vperm.xlu0 %413, %v82
    %v415 = vpop.permute.xlu0 %414
    %417 = vset.pattern.permute.xlu0 3
    %418 = vperm.xlu0 %417, %v83
    %v419 = vpop.permute.xlu0 %418
    %421 = vset.pattern.permute.xlu0 3
    %422 = vperm.xlu0 %421, %v84
    %v423 = vpop.permute.xlu0 %422
    %425 = vset.pattern.permute.xlu0 3
    %426 = vperm.xlu0 %425, %v85
    %v427 = vpop.permute.xlu0 %426
    %429 = vset.pattern.permute.xlu0 3
    %430 = vperm.xlu0 %429, %v86
    %v431 = vpop.permute.xlu0 %430
    %433 = vset.pattern.permute.xlu0 3
    %434 = vperm.xlu0 %433, %v87
    %v435 = vpop.permute.xlu0 %434
    %437 = vset.pattern.permute.xlu0 3
    %438 = vperm.xlu0 %437, %v88
    %v439 = vpop.permute.xlu0 %438
    %441 = vset.pattern.permute.xlu0 3
    %442 = vperm.xlu0 %441, %v89
    %v443 = vpop.permute.xlu0 %442
    %445 = vset.pattern.permute.xlu0 3
    %446 = vperm.xlu0 %445, %v90
    %v447 = vpop.permute.xlu0 %446
    %449 = vset.pattern.permute.xlu0 3
    %450 = vperm.xlu0 %449, %v91
    %v451 = vpop.permute.xlu0 %450
    %453 = vset.pattern.permute.xlu0 3
    %454 = vperm.xlu0 %453, %v92
    %v455 = vpop.permute.xlu0 %454
    %457 = vset.pattern.permute.xlu0 3
    %458 = vperm.xlu0 %457, %v93
    %v459 = vpop.permute.xlu0 %458
    %461 = vset.pattern.permute.xlu0 3
    %462 = vperm.xlu0 %461, %v94
    %v463 = vpop.permute.xlu0 %462
    %465 = vset.pattern.permute.xlu0 3
    %466 = vperm.xlu0 %465, %v95
    %v467 = vpop.permute.xlu0 %466
    %469 = vset.pattern.permute.xlu0 3
    %470 = vperm.xlu0 %469, %v96
    %v471 = vpop.permute.xlu0 %470
    %473 = vset.pattern.permute.xlu0 3
    %474 = vperm.xlu0 %473, %v97
    %v475 = vpop.permute.xlu0 %474
    %v477 = vperm.slane %v412, 0
    %v478 = vmul.f32 %v415, %v477
    %v479 = vmul.f32 %v419, %v477
    %v480 = vmul.f32 %v423, %v477
    %v481 = vmul.f32 %v427, %v477
    %v482 = vmul.f32 %v431, %v477
    %v483 = vmul.f32 %v435, %v477
    %v484 = vmul.f32 %v439, %v477
    %v485 = vmul.f32 %v443, %v477
    %v486 = vmul.f32 %v447, %v477
    %v487 = vmul.f32 %v451, %v477
    %v488 = vmul.f32 %v455, %v477
    %v489 = vmul.f32 %v459, %v477
    %v490 = vmul.f32 %v463, %v477
    %v491 = vmul.f32 %v467, %v477
    %v492 = vmul.f32 %v471, %v477
    %v493 = vmul.f32 %v475, %v477
    %v494 = vadd.f32 %v396, %v478
    %v495 = vadd.f32 %v397, %v479
    %v496 = vadd.f32 %v398, %v480
    %v497 = vadd.f32 %v399, %v481
    %v498 = vadd.f32 %v400, %v482
    %v499 = vadd.f32 %v401, %v483
    %v500 = vadd.f32 %v402, %v484
    %v501 = vadd.f32 %v403, %v485
    %v502 = vadd.f32 %v404, %v486
    %v503 = vadd.f32 %v405, %v487
    %v504 = vadd.f32 %v406, %v488
    %v505 = vadd.f32 %v407, %v489
    %v506 = vadd.f32 %v408, %v490
    %v507 = vadd.f32 %v409, %v491
    %v508 = vadd.f32 %v410, %v492
    %v509 = vadd.f32 %v411, %v493
    %v510 = vand.u32 2147483647, %v494
    %vm511 = vcmp.le.f32.partialorder %v510, 0.7853982
    %vm512 = vcmp.lt.s32.totalorder %v494, 0
    %v513 = vand.u32 %v494, 2139095040
    %v514 = vshrl.u32 %v513, 23
    %v515 = vsub.s32 %v514, 127
    %v516 = vand.u32 2147483647, %v494
    %v517 = vand.u32 %v516, 8388607
    %v518 = vor.u32 %v517, 8388608
    %v519 = vsub.s32 0, %v518
    %v520 = vadd.s32 %v515, 1
    %vm521 = vcmp.gt.s32.totalorder %v520, 0
    %v522 = vsel %vm521, %v520, 0
    %v523 = vshrl.u32 %v522, 5
    %v524 = vand.u32 %v522, 31
    %v525 = vsub.s32 32, %v524
    %v526 = vshrl.u32 683565275, %v525
    %v527 = vshll.u32 683565275, %v524
    %v528 = vshrl.u32 2475754826, %v525
    %v529 = vor.u32 %v527, %v528
    %v530 = vshll.u32 2475754826, %v524
    %v531 = vshrl.u32 2131351028, %v525
    %v532 = vor.u32 %v530, %v531
    %v533 = vshll.u32 2131351028, %v524
    %v534 = vshrl.u32 2102212464, %v525
    %v535 = vor.u32 %v533, %v534
    %v536 = vshll.u32 2102212464, %v524
    %v537 = vshrl.u32 920167782, %v525
    %v538 = vor.u32 %v536, %v537
    %v539 = vshll.u32 920167782, %v524
    %v540 = vshrl.u32 1326507024, %v525
    %v541 = vor.u32 %v539, %v540
    %vm542 = vcmp.lt.s32.totalorder %v523, 1
    %vm543 = vcmp.lt.s32.totalorder %v523, 2
    %vm544 = vcmp.lt.s32.totalorder %v523, 3
    %vm545 = vcmp.lt.s32.totalorder %v523, 4
    %v546 = vsel %vm542, %v526, %v529
    %v547 = vsel %vm545, %v535, 2102212464
    %v548 = vsel %vm544, %v532, %v547
    %v549 = vsel %vm543, %v546, %v548
    %v550 = vsel %vm542, %v529, %v532
    %v551 = vsel %vm545, %v538, 920167782
    %v552 = vsel %vm544, %v535, %v551
    %v553 = vsel %vm543, %v550, %v552
    %v554 = vsel %vm542, %v532, %v535
    %v555 = vsel %vm545, %v541, 1326507024
    %v556 = vsel %vm544, %v538, %v555
    %v557 = vsel %vm543, %v554, %v556
    %v558 = vshll.u32 %v518, 8
    %v559 = vand.u32 %v558, 65535
    %v560 = vshrl.u32 %v558, 16
    %v561 = vand.u32 %v557, 65535
    %v562 = vshrl.u32 %v557, 16
    %v563 = vmul.u32 %v559, %v561
    %v564 = vmul.u32 %v559, %v562
    %v565 = vmul.u32 %v560, %v561
    %v566 = vmul.u32 %v560, %v562
    %v567 = vshll.u32 %v564, 16
    %v568 = vshrl.u32 %v564, 16
    %v569 = vshll.u32 %v565, 16
    %v570 = vshrl.u32 %v565, 16
    %vm571 = vc.u32 %v563, %v567
    %v572 = vsel %vm571, 1, 0
    %v573 = vadd.s32 %v563, %v567
    %v574 = vadd.s32 %v566, %v572
    %vm575 = vc.u32 %v573, %v569
    %v576 = vsel %vm575, 1, 0
    %v577 = vadd.s32 %v573, %v569
    %v578 = vadd.s32 %v574, %v576
    %v579 = vadd.s32 %v578, %v568
    %v580 = vadd.s32 %v579, %v570
    %v581 = vand.u32 %v558, 65535
    %v582 = vshrl.u32 %v558, 16
    %v583 = vand.u32 %v553, 65535
    %v584 = vshrl.u32 %v553, 16
    %v585 = vmul.u32 %v581, %v583
    %v586 = vmul.u32 %v581, %v584
    %v587 = vmul.u32 %v582, %v583
    %v588 = vmul.u32 %v582, %v584
    %v589 = vshll.u32 %v586, 16
    %v590 = vshrl.u32 %v586, 16
    %v591 = vshll.u32 %v587, 16
    %v592 = vshrl.u32 %v587, 16
    %vm593 = vc.u32 %v585, %v589
    %v594 = vsel %vm593, 1, 0
    %v595 = vadd.s32 %v585, %v589
    %v596 = vadd.s32 %v588, %v594
    %vm597 = vc.u32 %v595, %v591
    %v598 = vsel %vm597, 1, 0
    %v599 = vadd.s32 %v595, %v591
    %v600 = vadd.s32 %v596, %v598
    %v601 = vadd.s32 %v600, %v590
    %v602 = vadd.s32 %v601, %v592
    %v603 = vmul.u32 %v558, %v549
    %v604 = vadd.s32 %v580, %v599
    %vm605 = vc.u32 %v580, %v599
    %v606 = vadd.s32 %v602, 1
    %v607 = vsel %vm605, %v606, %v602
    %v608 = vadd.s32 %v603, %v607
    %v609 = vadd.s32 %v608, 536870912
    %v610 = vshrl.u32 %v609, 30
    %v611 = vshll.u32 %v610, 30
    %v612 = vsub.s32 %v608, %v611
    %vm613 = vcmp.lt.s32.totalorder %v612, 0
    %v614 = vsub.s32 0, %v612
    %v615 = vsel %vm613, %v614, %v612
    %v616 = vclz %v615
    %v617 = vsub.s32 %v616, 2
    %vm618 = vcmp.gt.s32.totalorder 0, %v617
    %v619 = vsel %vm618, 0, %v617
    %v620 = vsub.s32 32, %v619
    %v621 = vshll.u32 %v612, %v619
    %v622 = vshrl.u32 %v604, %v620
    %v623 = vor.u32 %v621, %v622
    %v624 = vsub.s32 4294967266, %v619
    %v625 = vadd.s32 %v624, 127
    %v626 = vshll.u32 %v625, 23
    %v627 = vor.u32 4788187, %v626
    %v628 = vand.u32 2147483647, %v627
    %v630 = vcvt.s32.f32 %v623
    %v631 = vmul.f32 %v630, %v628
    %v632 = vxor.u32 %v631, 2147483648
    %v633 = vsel %vm512, %v632, %v631
    %v634 = vsub.s32 4, %v610
    %v635 = vsel %vm512, %v634, %v610
    %v636 = vsel %vm511, %v494, %v633
    %v637 = vsel %vm511, 0, %v635
    %v638 = vmul.f32 %v636, %v636
    %v639 = vmul.f32 %v638, -0.001358992
    %v640 = vadd.f32 %v639, 0.041655596
    %v641 = vmul.f32 %v638, %v640
    %v642 = vadd.f32 %v641, -0.4999988
    %v643 = vmul.f32 %v638, %v642
    %v644 = vadd.f32 1.0, %v643
    %v645 = vmul.f32 %v636, %v636
    %v646 = vmul.f32 %v645, -0.00019511016
    %v647 = vadd.f32 %v646, 0.008332121
    %v648 = vmul.f32 %v645, %v647
    %v649 = vadd.f32 %v648, -0.16666654
    %v650 = vmul.f32 %v645, %v649
    %v651 = vadd.f32 %v650, 1.0
    %v652 = vmul.f32 %v651, %v636
    %vm653 = vweird.f32 %v494
    %v654 = vadd.s32 %v637, 3
    %v655 = vand.u32 %v654, 3
    %vm656 = vcmp.lt.s32.totalorder %v655, 2
    %vm657 = vcmp.eq.s32.totalorder %v655, 0
    %v658 = vxor.u32 %v652, 2147483648
    %v659 = vsel %vm657, %v644, %v658
    %vm660 = vcmp.eq.s32.totalorder %v655, 2
    %v661 = vxor.u32 %v644, 2147483648
    %v662 = vsel %vm660, %v661, %v652
    %v663 = vsel %vm656, %v659, %v662
    %v664 = vsel %vm653, nan, %v663
    %v665 = vand.u32 2147483647, %v495
    %vm666 = vcmp.le.f32.partialorder %v665, 0.7853982
    %vm667 = vcmp.lt.s32.totalorder %v495, 0
    %v668 = vand.u32 %v495, 2139095040
    %v669 = vshrl.u32 %v668, 23
    %v670 = vsub.s32 %v669, 127
    %v671 = vand.u32 2147483647, %v495
    %v672 = vand.u32 %v671, 8388607
    %v673 = vor.u32 %v672, 8388608
    %v674 = vsub.s32 0, %v673
    %v675 = vadd.s32 %v670, 1
    %vm676 = vcmp.gt.s32.totalorder %v675, 0
    %v677 = vsel %vm676, %v675, 0
    %v678 = vshrl.u32 %v677, 5
    %v679 = vand.u32 %v677, 31
    %v680 = vsub.s32 32, %v679
    %v681 = vshrl.u32 683565275, %v680
    %v682 = vshll.u32 683565275, %v679
    %v683 = vshrl.u32 2475754826, %v680
    %v684 = vor.u32 %v682, %v683
    %v685 = vshll.u32 2475754826, %v679
    %v686 = vshrl.u32 2131351028, %v680
    %v687 = vor.u32 %v685, %v686
    %v688 = vshll.u32 2131351028, %v679
    %v689 = vshrl.u32 2102212464, %v680
    %v690 = vor.u32 %v688, %v689
    %v691 = vshll.u32 2102212464, %v679
    %v692 = vshrl.u32 920167782, %v680
    %v693 = vor.u32 %v691, %v692
    %v694 = vshll.u32 920167782, %v679
    %v695 = vshrl.u32 1326507024, %v680
    %v696 = vor.u32 %v694, %v695
    %vm697 = vcmp.lt.s32.totalorder %v678, 1
    %vm698 = vcmp.lt.s32.totalorder %v678, 2
    %vm699 = vcmp.lt.s32.totalorder %v678, 3
    %vm700 = vcmp.lt.s32.totalorder %v678, 4
    %v701 = vsel %vm697, %v681, %v684
    %v702 = vsel %vm700, %v690, 2102212464
    %v703 = vsel %vm699, %v687, %v702
    %v704 = vsel %vm698, %v701, %v703
    %v705 = vsel %vm697, %v684, %v687
    %v706 = vsel %vm700, %v693, 920167782
    %v707 = vsel %vm699, %v690, %v706
    %v708 = vsel %vm698, %v705, %v707
    %v709 = vsel %vm697, %v687, %v690
    %v710 = vsel %vm700, %v696, 1326507024
    %v711 = vsel %vm699, %v693, %v710
    %v712 = vsel %vm698, %v709, %v711
    %v713 = vshll.u32 %v673, 8
    %v714 = vand.u32 %v713, 65535
    %v715 = vshrl.u32 %v713, 16
    %v716 = vand.u32 %v712, 65535
    %v717 = vshrl.u32 %v712, 16
    %v718 = vmul.u32 %v714, %v716
    %v719 = vmul.u32 %v714, %v717
    %v720 = vmul.u32 %v715, %v716
    %v721 = vmul.u32 %v715, %v717
    %v722 = vshll.u32 %v719, 16
    %v723 = vshrl.u32 %v719, 16
    %v724 = vshll.u32 %v720, 16
    %v725 = vshrl.u32 %v720, 16
    %vm726 = vc.u32 %v718, %v722
    %v727 = vsel %vm726, 1, 0
    %v728 = vadd.s32 %v718, %v722
    %v729 = vadd.s32 %v721, %v727
    %vm730 = vc.u32 %v728, %v724
    %v731 = vsel %vm730, 1, 0
    %v732 = vadd.s32 %v728, %v724
    %v733 = vadd.s32 %v729, %v731
    %v734 = vadd.s32 %v733, %v723
    %v735 = vadd.s32 %v734, %v725
    %v736 = vand.u32 %v713, 65535
    %v737 = vshrl.u32 %v713, 16
    %v738 = vand.u32 %v708, 65535
    %v739 = vshrl.u32 %v708, 16
    %v740 = vmul.u32 %v736, %v738
    %v741 = vmul.u32 %v736, %v739
    %v742 = vmul.u32 %v737, %v738
    %v743 = vmul.u32 %v737, %v739
    %v744 = vshll.u32 %v741, 16
    %v745 = vshrl.u32 %v741, 16
    %v746 = vshll.u32 %v742, 16
    %v747 = vshrl.u32 %v742, 16
    %vm748 = vc.u32 %v740, %v744
    %v749 = vsel %vm748, 1, 0
    %v750 = vadd.s32 %v740, %v744
    %v751 = vadd.s32 %v743, %v749
    %vm752 = vc.u32 %v750, %v746
    %v753 = vsel %vm752, 1, 0
    %v754 = vadd.s32 %v750, %v746
    %v755 = vadd.s32 %v751, %v753
    %v756 = vadd.s32 %v755, %v745
    %v757 = vadd.s32 %v756, %v747
    %v758 = vmul.u32 %v713, %v704
    %v759 = vadd.s32 %v735, %v754
    %vm760 = vc.u32 %v735, %v754
    %v761 = vadd.s32 %v757, 1
    %v762 = vsel %vm760, %v761, %v757
    %v763 = vadd.s32 %v758, %v762
    %v764 = vadd.s32 %v763, 536870912
    %v765 = vshrl.u32 %v764, 30
    %v766 = vshll.u32 %v765, 30
    %v767 = vsub.s32 %v763, %v766
    %vm768 = vcmp.lt.s32.totalorder %v767, 0
    %v769 = vsub.s32 0, %v767
    %v770 = vsel %vm768, %v769, %v767
    %v771 = vclz %v770
    %v772 = vsub.s32 %v771, 2
    %vm773 = vcmp.gt.s32.totalorder 0, %v772
    %v774 = vsel %vm773, 0, %v772
    %v775 = vsub.s32 32, %v774
    %v776 = vshll.u32 %v767, %v774
    %v777 = vshrl.u32 %v759, %v775
    %v778 = vor.u32 %v776, %v777
    %v779 = vsub.s32 4294967266, %v774
    %v780 = vadd.s32 %v779, 127
    %v781 = vshll.u32 %v780, 23
    %v782 = vor.u32 4788187, %v781
    %v783 = vand.u32 2147483647, %v782
    %v785 = vcvt.s32.f32 %v778
    %v786 = vmul.f32 %v785, %v783
    %v787 = vxor.u32 %v786, 2147483648
    %v788 = vsel %vm667, %v787, %v786
    %v789 = vsub.s32 4, %v765
    %v790 = vsel %vm667, %v789, %v765
    %v791 = vsel %vm666, %v495, %v788
    %v792 = vsel %vm666, 0, %v790
    %v793 = vmul.f32 %v791, %v791
    %v794 = vmul.f32 %v793, -0.001358992
    %v795 = vadd.f32 %v794, 0.041655596
    %v796 = vmul.f32 %v793, %v795
    %v797 = vadd.f32 %v796, -0.4999988
    %v798 = vmul.f32 %v793, %v797
    %v799 = vadd.f32 1.0, %v798
    %v800 = vmul.f32 %v791, %v791
    %v801 = vmul.f32 %v800, -0.00019511016
    %v802 = vadd.f32 %v801, 0.008332121
    %v803 = vmul.f32 %v800, %v802
    %v804 = vadd.f32 %v803, -0.16666654
    %v805 = vmul.f32 %v800, %v804
    %v806 = vadd.f32 %v805, 1.0
    %v807 = vmul.f32 %v806, %v791
    %vm808 = vweird.f32 %v495
    %v809 = vadd.s32 %v792, 3
    %v810 = vand.u32 %v809, 3
    %vm811 = vcmp.lt.s32.totalorder %v810, 2
    %vm812 = vcmp.eq.s32.totalorder %v810, 0
    %v813 = vxor.u32 %v807, 2147483648
    %v814 = vsel %vm812, %v799, %v813
    %vm815 = vcmp.eq.s32.totalorder %v810, 2
    %v816 = vxor.u32 %v799, 2147483648
    %v817 = vsel %vm815, %v816, %v807
    %v818 = vsel %vm811, %v814, %v817
    %v819 = vsel %vm808, nan, %v818
    %v820 = vand.u32 2147483647, %v496
    %vm821 = vcmp.le.f32.partialorder %v820, 0.7853982
    %vm822 = vcmp.lt.s32.totalorder %v496, 0
    %v823 = vand.u32 %v496, 2139095040
    %v824 = vshrl.u32 %v823, 23
    %v825 = vsub.s32 %v824, 127
    %v826 = vand.u32 2147483647, %v496
    %v827 = vand.u32 %v826, 8388607
    %v828 = vor.u32 %v827, 8388608
    %v829 = vsub.s32 0, %v828
    %v830 = vadd.s32 %v825, 1
    %vm831 = vcmp.gt.s32.totalorder %v830, 0
    %v832 = vsel %vm831, %v830, 0
    %v833 = vshrl.u32 %v832, 5
    %v834 = vand.u32 %v832, 31
    %v835 = vsub.s32 32, %v834
    %v836 = vshrl.u32 683565275, %v835
    %v837 = vshll.u32 683565275, %v834
    %v838 = vshrl.u32 2475754826, %v835
    %v839 = vor.u32 %v837, %v838
    %v840 = vshll.u32 2475754826, %v834
    %v841 = vshrl.u32 2131351028, %v835
    %v842 = vor.u32 %v840, %v841
    %v843 = vshll.u32 2131351028, %v834
    %v844 = vshrl.u32 2102212464, %v835
    %v845 = vor.u32 %v843, %v844
    %v846 = vshll.u32 2102212464, %v834
    %v847 = vshrl.u32 920167782, %v835
    %v848 = vor.u32 %v846, %v847
    %v849 = vshll.u32 920167782, %v834
    %v850 = vshrl.u32 1326507024, %v835
    %v851 = vor.u32 %v849, %v850
    %vm852 = vcmp.lt.s32.totalorder %v833, 1
    %vm853 = vcmp.lt.s32.totalorder %v833, 2
    %vm854 = vcmp.lt.s32.totalorder %v833, 3
    %vm855 = vcmp.lt.s32.totalorder %v833, 4
    %v856 = vsel %vm852, %v836, %v839
    %v857 = vsel %vm855, %v845, 2102212464
    %v858 = vsel %vm854, %v842, %v857
    %v859 = vsel %vm853, %v856, %v858
    %v860 = vsel %vm852, %v839, %v842
    %v861 = vsel %vm855, %v848, 920167782
    %v862 = vsel %vm854, %v845, %v861
    %v863 = vsel %vm853, %v860, %v862
    %v864 = vsel %vm852, %v842, %v845
    %v865 = vsel %vm855, %v851, 1326507024
    %v866 = vsel %vm854, %v848, %v865
    %v867 = vsel %vm853, %v864, %v866
    %v868 = vshll.u32 %v828, 8
    %v869 = vand.u32 %v868, 65535
    %v870 = vshrl.u32 %v868, 16
    %v871 = vand.u32 %v867, 65535
    %v872 = vshrl.u32 %v867, 16
    %v873 = vmul.u32 %v869, %v871
    %v874 = vmul.u32 %v869, %v872
    %v875 = vmul.u32 %v870, %v871
    %v876 = vmul.u32 %v870, %v872
    %v877 = vshll.u32 %v874, 16
    %v878 = vshrl.u32 %v874, 16
    %v879 = vshll.u32 %v875, 16
    %v880 = vshrl.u32 %v875, 16
    %vm881 = vc.u32 %v873, %v877
    %v882 = vsel %vm881, 1, 0
    %v883 = vadd.s32 %v873, %v877
    %v884 = vadd.s32 %v876, %v882
    %vm885 = vc.u32 %v883, %v879
    %v886 = vsel %vm885, 1, 0
    %v887 = vadd.s32 %v883, %v879
    %v888 = vadd.s32 %v884, %v886
    %v889 = vadd.s32 %v888, %v878
    %v890 = vadd.s32 %v889, %v880
    %v891 = vand.u32 %v868, 65535
    %v892 = vshrl.u32 %v868, 16
    %v893 = vand.u32 %v863, 65535
    %v894 = vshrl.u32 %v863, 16
    %v895 = vmul.u32 %v891, %v893
    %v896 = vmul.u32 %v891, %v894
    %v897 = vmul.u32 %v892, %v893
    %v898 = vmul.u32 %v892, %v894
    %v899 = vshll.u32 %v896, 16
    %v900 = vshrl.u32 %v896, 16
    %v901 = vshll.u32 %v897, 16
    %v902 = vshrl.u32 %v897, 16
    %vm903 = vc.u32 %v895, %v899
    %v904 = vsel %vm903, 1, 0
    %v905 = vadd.s32 %v895, %v899
    %v906 = vadd.s32 %v898, %v904
    %vm907 = vc.u32 %v905, %v901
    %v908 = vsel %vm907, 1, 0
    %v909 = vadd.s32 %v905, %v901
    %v910 = vadd.s32 %v906, %v908
    %v911 = vadd.s32 %v910, %v900
    %v912 = vadd.s32 %v911, %v902
    %v913 = vmul.u32 %v868, %v859
    %v914 = vadd.s32 %v890, %v909
    %vm915 = vc.u32 %v890, %v909
    %v916 = vadd.s32 %v912, 1
    %v917 = vsel %vm915, %v916, %v912
    %v918 = vadd.s32 %v913, %v917
    %v919 = vadd.s32 %v918, 536870912
    %v920 = vshrl.u32 %v919, 30
    %v921 = vshll.u32 %v920, 30
    %v922 = vsub.s32 %v918, %v921
    %vm923 = vcmp.lt.s32.totalorder %v922, 0
    %v924 = vsub.s32 0, %v922
    %v925 = vsel %vm923, %v924, %v922
    %v926 = vclz %v925
    %v927 = vsub.s32 %v926, 2
    %vm928 = vcmp.gt.s32.totalorder 0, %v927
    %v929 = vsel %vm928, 0, %v927
    %v930 = vsub.s32 32, %v929
    %v931 = vshll.u32 %v922, %v929
    %v932 = vshrl.u32 %v914, %v930
    %v933 = vor.u32 %v931, %v932
    %v934 = vsub.s32 4294967266, %v929
    %v935 = vadd.s32 %v934, 127
    %v936 = vshll.u32 %v935, 23
    %v937 = vor.u32 4788187, %v936
    %v938 = vand.u32 2147483647, %v937
    %v940 = vcvt.s32.f32 %v933
    %v941 = vmul.f32 %v940, %v938
    %v942 = vxor.u32 %v941, 2147483648
    %v943 = vsel %vm822, %v942, %v941
    %v944 = vsub.s32 4, %v920
    %v945 = vsel %vm822, %v944, %v920
    %v946 = vsel %vm821, %v496, %v943
    %v947 = vsel %vm821, 0, %v945
    %v948 = vmul.f32 %v946, %v946
    %v949 = vmul.f32 %v948, -0.001358992
    %v950 = vadd.f32 %v949, 0.041655596
    %v951 = vmul.f32 %v948, %v950
    %v952 = vadd.f32 %v951, -0.4999988
    %v953 = vmul.f32 %v948, %v952
    %v954 = vadd.f32 1.0, %v953
    %v955 = vmul.f32 %v946, %v946
    %v956 = vmul.f32 %v955, -0.00019511016
    %v957 = vadd.f32 %v956, 0.008332121
    %v958 = vmul.f32 %v955, %v957
    %v959 = vadd.f32 %v958, -0.16666654
    %v960 = vmul.f32 %v955, %v959
    %v961 = vadd.f32 %v960, 1.0
    %v962 = vmul.f32 %v961, %v946
    %vm963 = vweird.f32 %v496
    %v964 = vadd.s32 %v947, 3
    %v965 = vand.u32 %v964, 3
    %vm966 = vcmp.lt.s32.totalorder %v965, 2
    %vm967 = vcmp.eq.s32.totalorder %v965, 0
    %v968 = vxor.u32 %v962, 2147483648
    %v969 = vsel %vm967, %v954, %v968
    %vm970 = vcmp.eq.s32.totalorder %v965, 2
    %v971 = vxor.u32 %v954, 2147483648
    %v972 = vsel %vm970, %v971, %v962
    %v973 = vsel %vm966, %v969, %v972
    %v974 = vsel %vm963, nan, %v973
    %v975 = vand.u32 2147483647, %v497
    %vm976 = vcmp.le.f32.partialorder %v975, 0.7853982
    %vm977 = vcmp.lt.s32.totalorder %v497, 0
    %v978 = vand.u32 %v497, 2139095040
    %v979 = vshrl.u32 %v978, 23
    %v980 = vsub.s32 %v979, 127
    %v981 = vand.u32 2147483647, %v497
    %v982 = vand.u32 %v981, 8388607
    %v983 = vor.u32 %v982, 8388608
    %v984 = vsub.s32 0, %v983
    %v985 = vadd.s32 %v980, 1
    %vm986 = vcmp.gt.s32.totalorder %v985, 0
    %v987 = vsel %vm986, %v985, 0
    %v988 = vshrl.u32 %v987, 5
    %v989 = vand.u32 %v987, 31
    %v990 = vsub.s32 32, %v989
    %v991 = vshrl.u32 683565275, %v990
    %v992 = vshll.u32 683565275, %v989
    %v993 = vshrl.u32 2475754826, %v990
    %v994 = vor.u32 %v992, %v993
    %v995 = vshll.u32 2475754826, %v989
    %v996 = vshrl.u32 2131351028, %v990
    %v997 = vor.u32 %v995, %v996
    %v998 = vshll.u32 2131351028, %v989
    %v999 = vshrl.u32 2102212464, %v990
    %v1000 = vor.u32 %v998, %v999
    %v1001 = vshll.u32 2102212464, %v989
    %v1002 = vshrl.u32 920167782, %v990
    %v1003 = vor.u32 %v1001, %v1002
    %v1004 = vshll.u32 920167782, %v989
    %v1005 = vshrl.u32 1326507024, %v990
    %v1006 = vor.u32 %v1004, %v1005
    %vm1007 = vcmp.lt.s32.totalorder %v988, 1
    %vm1008 = vcmp.lt.s32.totalorder %v988, 2
    %vm1009 = vcmp.lt.s32.totalorder %v988, 3
    %vm1010 = vcmp.lt.s32.totalorder %v988, 4
    %v1011 = vsel %vm1007, %v991, %v994
    %v1012 = vsel %vm1010, %v1000, 2102212464
    %v1013 = vsel %vm1009, %v997, %v1012
    %v1014 = vsel %vm1008, %v1011, %v1013
    %v1015 = vsel %vm1007, %v994, %v997
    %v1016 = vsel %vm1010, %v1003, 920167782
    %v1017 = vsel %vm1009, %v1000, %v1016
    %v1018 = vsel %vm1008, %v1015, %v1017
    %v1019 = vsel %vm1007, %v997, %v1000
    %v1020 = vsel %vm1010, %v1006, 1326507024
    %v1021 = vsel %vm1009, %v1003, %v1020
    %v1022 = vsel %vm1008, %v1019, %v1021
    %v1023 = vshll.u32 %v983, 8
    %v1024 = vand.u32 %v1023, 65535
    %v1025 = vshrl.u32 %v1023, 16
    %v1026 = vand.u32 %v1022, 65535
    %v1027 = vshrl.u32 %v1022, 16
    %v1028 = vmul.u32 %v1024, %v1026
    %v1029 = vmul.u32 %v1024, %v1027
    %v1030 = vmul.u32 %v1025, %v1026
    %v1031 = vmul.u32 %v1025, %v1027
    %v1032 = vshll.u32 %v1029, 16
    %v1033 = vshrl.u32 %v1029, 16
    %v1034 = vshll.u32 %v1030, 16
    %v1035 = vshrl.u32 %v1030, 16
    %vm1036 = vc.u32 %v1028, %v1032
    %v1037 = vsel %vm1036, 1, 0
    %v1038 = vadd.s32 %v1028, %v1032
    %v1039 = vadd.s32 %v1031, %v1037
    %vm1040 = vc.u32 %v1038, %v1034
    %v1041 = vsel %vm1040, 1, 0
    %v1042 = vadd.s32 %v1038, %v1034
    %v1043 = vadd.s32 %v1039, %v1041
    %v1044 = vadd.s32 %v1043, %v1033
    %v1045 = vadd.s32 %v1044, %v1035
    %v1046 = vand.u32 %v1023, 65535
    %v1047 = vshrl.u32 %v1023, 16
    %v1048 = vand.u32 %v1018, 65535
    %v1049 = vshrl.u32 %v1018, 16
    %v1050 = vmul.u32 %v1046, %v1048
    %v1051 = vmul.u32 %v1046, %v1049
    %v1052 = vmul.u32 %v1047, %v1048
    %v1053 = vmul.u32 %v1047, %v1049
    %v1054 = vshll.u32 %v1051, 16
    %v1055 = vshrl.u32 %v1051, 16
    %v1056 = vshll.u32 %v1052, 16
    %v1057 = vshrl.u32 %v1052, 16
    %vm1058 = vc.u32 %v1050, %v1054
    %v1059 = vsel %vm1058, 1, 0
    %v1060 = vadd.s32 %v1050, %v1054
    %v1061 = vadd.s32 %v1053, %v1059
    %vm1062 = vc.u32 %v1060, %v1056
    %v1063 = vsel %vm1062, 1, 0
    %v1064 = vadd.s32 %v1060, %v1056
    %v1065 = vadd.s32 %v1061, %v1063
    %v1066 = vadd.s32 %v1065, %v1055
    %v1067 = vadd.s32 %v1066, %v1057
    %v1068 = vmul.u32 %v1023, %v1014
    %v1069 = vadd.s32 %v1045, %v1064
    %vm1070 = vc.u32 %v1045, %v1064
    %v1071 = vadd.s32 %v1067, 1
    %v1072 = vsel %vm1070, %v1071, %v1067
    %v1073 = vadd.s32 %v1068, %v1072
    %v1074 = vadd.s32 %v1073, 536870912
    %v1075 = vshrl.u32 %v1074, 30
    %v1076 = vshll.u32 %v1075, 30
    %v1077 = vsub.s32 %v1073, %v1076
    %vm1078 = vcmp.lt.s32.totalorder %v1077, 0
    %v1079 = vsub.s32 0, %v1077
    %v1080 = vsel %vm1078, %v1079, %v1077
    %v1081 = vclz %v1080
    %v1082 = vsub.s32 %v1081, 2
    %vm1083 = vcmp.gt.s32.totalorder 0, %v1082
    %v1084 = vsel %vm1083, 0, %v1082
    %v1085 = vsub.s32 32, %v1084
    %v1086 = vshll.u32 %v1077, %v1084
    %v1087 = vshrl.u32 %v1069, %v1085
    %v1088 = vor.u32 %v1086, %v1087
    %v1089 = vsub.s32 4294967266, %v1084
    %v1090 = vadd.s32 %v1089, 127
    %v1091 = vshll.u32 %v1090, 23
    %v1092 = vor.u32 4788187, %v1091
    %v1093 = vand.u32 2147483647, %v1092
    %v1095 = vcvt.s32.f32 %v1088
    %v1096 = vmul.f32 %v1095, %v1093
    %v1097 = vxor.u32 %v1096, 2147483648
    %v1098 = vsel %vm977, %v1097, %v1096
    %v1099 = vsub.s32 4, %v1075
    %v1100 = vsel %vm977, %v1099, %v1075
    %v1101 = vsel %vm976, %v497, %v1098
    %v1102 = vsel %vm976, 0, %v1100
    %v1103 = vmul.f32 %v1101, %v1101
    %v1104 = vmul.f32 %v1103, -0.001358992
    %v1105 = vadd.f32 %v1104, 0.041655596
    %v1106 = vmul.f32 %v1103, %v1105
    %v1107 = vadd.f32 %v1106, -0.4999988
    %v1108 = vmul.f32 %v1103, %v1107
    %v1109 = vadd.f32 1.0, %v1108
    %v1110 = vmul.f32 %v1101, %v1101
    %v1111 = vmul.f32 %v1110, -0.00019511016
    %v1112 = vadd.f32 %v1111, 0.008332121
    %v1113 = vmul.f32 %v1110, %v1112
    %v1114 = vadd.f32 %v1113, -0.16666654
    %v1115 = vmul.f32 %v1110, %v1114
    %v1116 = vadd.f32 %v1115, 1.0
    %v1117 = vmul.f32 %v1116, %v1101
    %vm1118 = vweird.f32 %v497
    %v1119 = vadd.s32 %v1102, 3
    %v1120 = vand.u32 %v1119, 3
    %vm1121 = vcmp.lt.s32.totalorder %v1120, 2
    %vm1122 = vcmp.eq.s32.totalorder %v1120, 0
    %v1123 = vxor.u32 %v1117, 2147483648
    %v1124 = vsel %vm1122, %v1109, %v1123
    %vm1125 = vcmp.eq.s32.totalorder %v1120, 2
    %v1126 = vxor.u32 %v1109, 2147483648
    %v1127 = vsel %vm1125, %v1126, %v1117
    %v1128 = vsel %vm1121, %v1124, %v1127
    %v1129 = vsel %vm1118, nan, %v1128
    %v1130 = vand.u32 2147483647, %v498
    %vm1131 = vcmp.le.f32.partialorder %v1130, 0.7853982
    %vm1132 = vcmp.lt.s32.totalorder %v498, 0
    %v1133 = vand.u32 %v498, 2139095040
    %v1134 = vshrl.u32 %v1133, 23
    %v1135 = vsub.s32 %v1134, 127
    %v1136 = vand.u32 2147483647, %v498
    %v1137 = vand.u32 %v1136, 8388607
    %v1138 = vor.u32 %v1137, 8388608
    %v1139 = vsub.s32 0, %v1138
    %v1140 = vadd.s32 %v1135, 1
    %vm1141 = vcmp.gt.s32.totalorder %v1140, 0
    %v1142 = vsel %vm1141, %v1140, 0
    %v1143 = vshrl.u32 %v1142, 5
    %v1144 = vand.u32 %v1142, 31
    %v1145 = vsub.s32 32, %v1144
    %v1146 = vshrl.u32 683565275, %v1145
    %v1147 = vshll.u32 683565275, %v1144
    %v1148 = vshrl.u32 2475754826, %v1145
    %v1149 = vor.u32 %v1147, %v1148
    %v1150 = vshll.u32 2475754826, %v1144
    %v1151 = vshrl.u32 2131351028, %v1145
    %v1152 = vor.u32 %v1150, %v1151
    %v1153 = vshll.u32 2131351028, %v1144
    %v1154 = vshrl.u32 2102212464, %v1145
    %v1155 = vor.u32 %v1153, %v1154
    %v1156 = vshll.u32 2102212464, %v1144
    %v1157 = vshrl.u32 920167782, %v1145
    %v1158 = vor.u32 %v1156, %v1157
    %v1159 = vshll.u32 920167782, %v1144
    %v1160 = vshrl.u32 1326507024, %v1145
    %v1161 = vor.u32 %v1159, %v1160
    %vm1162 = vcmp.lt.s32.totalorder %v1143, 1
    %vm1163 = vcmp.lt.s32.totalorder %v1143, 2
    %vm1164 = vcmp.lt.s32.totalorder %v1143, 3
    %vm1165 = vcmp.lt.s32.totalorder %v1143, 4
    %v1166 = vsel %vm1162, %v1146, %v1149
    %v1167 = vsel %vm1165, %v1155, 2102212464
    %v1168 = vsel %vm1164, %v1152, %v1167
    %v1169 = vsel %vm1163, %v1166, %v1168
    %v1170 = vsel %vm1162, %v1149, %v1152
    %v1171 = vsel %vm1165, %v1158, 920167782
    %v1172 = vsel %vm1164, %v1155, %v1171
    %v1173 = vsel %vm1163, %v1170, %v1172
    %v1174 = vsel %vm1162, %v1152, %v1155
    %v1175 = vsel %vm1165, %v1161, 1326507024
    %v1176 = vsel %vm1164, %v1158, %v1175
    %v1177 = vsel %vm1163, %v1174, %v1176
    %v1178 = vshll.u32 %v1138, 8
    %v1179 = vand.u32 %v1178, 65535
    %v1180 = vshrl.u32 %v1178, 16
    %v1181 = vand.u32 %v1177, 65535
    %v1182 = vshrl.u32 %v1177, 16
    %v1183 = vmul.u32 %v1179, %v1181
    %v1184 = vmul.u32 %v1179, %v1182
    %v1185 = vmul.u32 %v1180, %v1181
    %v1186 = vmul.u32 %v1180, %v1182
    %v1187 = vshll.u32 %v1184, 16
    %v1188 = vshrl.u32 %v1184, 16
    %v1189 = vshll.u32 %v1185, 16
    %v1190 = vshrl.u32 %v1185, 16
    %vm1191 = vc.u32 %v1183, %v1187
    %v1192 = vsel %vm1191, 1, 0
    %v1193 = vadd.s32 %v1183, %v1187
    %v1194 = vadd.s32 %v1186, %v1192
    %vm1195 = vc.u32 %v1193, %v1189
    %v1196 = vsel %vm1195, 1, 0
    %v1197 = vadd.s32 %v1193, %v1189
    %v1198 = vadd.s32 %v1194, %v1196
    %v1199 = vadd.s32 %v1198, %v1188
    %v1200 = vadd.s32 %v1199, %v1190
    %v1201 = vand.u32 %v1178, 65535
    %v1202 = vshrl.u32 %v1178, 16
    %v1203 = vand.u32 %v1173, 65535
    %v1204 = vshrl.u32 %v1173, 16
    %v1205 = vmul.u32 %v1201, %v1203
    %v1206 = vmul.u32 %v1201, %v1204
    %v1207 = vmul.u32 %v1202, %v1203
    %v1208 = vmul.u32 %v1202, %v1204
    %v1209 = vshll.u32 %v1206, 16
    %v1210 = vshrl.u32 %v1206, 16
    %v1211 = vshll.u32 %v1207, 16
    %v1212 = vshrl.u32 %v1207, 16
    %vm1213 = vc.u32 %v1205, %v1209
    %v1214 = vsel %vm1213, 1, 0
    %v1215 = vadd.s32 %v1205, %v1209
    %v1216 = vadd.s32 %v1208, %v1214
    %vm1217 = vc.u32 %v1215, %v1211
    %v1218 = vsel %vm1217, 1, 0
    %v1219 = vadd.s32 %v1215, %v1211
    %v1220 = vadd.s32 %v1216, %v1218
    %v1221 = vadd.s32 %v1220, %v1210
    %v1222 = vadd.s32 %v1221, %v1212
    %v1223 = vmul.u32 %v1178, %v1169
    %v1224 = vadd.s32 %v1200, %v1219
    %vm1225 = vc.u32 %v1200, %v1219
    %v1226 = vadd.s32 %v1222, 1
    %v1227 = vsel %vm1225, %v1226, %v1222
    %v1228 = vadd.s32 %v1223, %v1227
    %v1229 = vadd.s32 %v1228, 536870912
    %v1230 = vshrl.u32 %v1229, 30
    %v1231 = vshll.u32 %v1230, 30
    %v1232 = vsub.s32 %v1228, %v1231
    %vm1233 = vcmp.lt.s32.totalorder %v1232, 0
    %v1234 = vsub.s32 0, %v1232
    %v1235 = vsel %vm1233, %v1234, %v1232
    %v1236 = vclz %v1235
    %v1237 = vsub.s32 %v1236, 2
    %vm1238 = vcmp.gt.s32.totalorder 0, %v1237
    %v1239 = vsel %vm1238, 0, %v1237
    %v1240 = vsub.s32 32, %v1239
    %v1241 = vshll.u32 %v1232, %v1239
    %v1242 = vshrl.u32 %v1224, %v1240
    %v1243 = vor.u32 %v1241, %v1242
    %v1244 = vsub.s32 4294967266, %v1239
    %v1245 = vadd.s32 %v1244, 127
    %v1246 = vshll.u32 %v1245, 23
    %v1247 = vor.u32 4788187, %v1246
    %v1248 = vand.u32 2147483647, %v1247
    %v1250 = vcvt.s32.f32 %v1243
    %v1251 = vmul.f32 %v1250, %v1248
    %v1252 = vxor.u32 %v1251, 2147483648
    %v1253 = vsel %vm1132, %v1252, %v1251
    %v1254 = vsub.s32 4, %v1230
    %v1255 = vsel %vm1132, %v1254, %v1230
    %v1256 = vsel %vm1131, %v498, %v1253
    %v1257 = vsel %vm1131, 0, %v1255
    %v1258 = vmul.f32 %v1256, %v1256
    %v1259 = vmul.f32 %v1258, -0.001358992
    %v1260 = vadd.f32 %v1259, 0.041655596
    %v1261 = vmul.f32 %v1258, %v1260
    %v1262 = vadd.f32 %v1261, -0.4999988
    %v1263 = vmul.f32 %v1258, %v1262
    %v1264 = vadd.f32 1.0, %v1263
    %v1265 = vmul.f32 %v1256, %v1256
    %v1266 = vmul.f32 %v1265, -0.00019511016
    %v1267 = vadd.f32 %v1266, 0.008332121
    %v1268 = vmul.f32 %v1265, %v1267
    %v1269 = vadd.f32 %v1268, -0.16666654
    %v1270 = vmul.f32 %v1265, %v1269
    %v1271 = vadd.f32 %v1270, 1.0
    %v1272 = vmul.f32 %v1271, %v1256
    %vm1273 = vweird.f32 %v498
    %v1274 = vadd.s32 %v1257, 3
    %v1275 = vand.u32 %v1274, 3
    %vm1276 = vcmp.lt.s32.totalorder %v1275, 2
    %vm1277 = vcmp.eq.s32.totalorder %v1275, 0
    %v1278 = vxor.u32 %v1272, 2147483648
    %v1279 = vsel %vm1277, %v1264, %v1278
    %vm1280 = vcmp.eq.s32.totalorder %v1275, 2
    %v1281 = vxor.u32 %v1264, 2147483648
    %v1282 = vsel %vm1280, %v1281, %v1272
    %v1283 = vsel %vm1276, %v1279, %v1282
    %v1284 = vsel %vm1273, nan, %v1283
    %v1285 = vand.u32 2147483647, %v499
    %vm1286 = vcmp.le.f32.partialorder %v1285, 0.7853982
    %vm1287 = vcmp.lt.s32.totalorder %v499, 0
    %v1288 = vand.u32 %v499, 2139095040
    %v1289 = vshrl.u32 %v1288, 23
    %v1290 = vsub.s32 %v1289, 127
    %v1291 = vand.u32 2147483647, %v499
    %v1292 = vand.u32 %v1291, 8388607
    %v1293 = vor.u32 %v1292, 8388608
    %v1294 = vsub.s32 0, %v1293
    %v1295 = vadd.s32 %v1290, 1
    %vm1296 = vcmp.gt.s32.totalorder %v1295, 0
    %v1297 = vsel %vm1296, %v1295, 0
    %v1298 = vshrl.u32 %v1297, 5
    %v1299 = vand.u32 %v1297, 31
    %v1300 = vsub.s32 32, %v1299
    %v1301 = vshrl.u32 683565275, %v1300
    %v1302 = vshll.u32 683565275, %v1299
    %v1303 = vshrl.u32 2475754826, %v1300
    %v1304 = vor.u32 %v1302, %v1303
    %v1305 = vshll.u32 2475754826, %v1299
    %v1306 = vshrl.u32 2131351028, %v1300
    %v1307 = vor.u32 %v1305, %v1306
    %v1308 = vshll.u32 2131351028, %v1299
    %v1309 = vshrl.u32 2102212464, %v1300
    %v1310 = vor.u32 %v1308, %v1309
    %v1311 = vshll.u32 2102212464, %v1299
    %v1312 = vshrl.u32 920167782, %v1300
    %v1313 = vor.u32 %v1311, %v1312
    %v1314 = vshll.u32 920167782, %v1299
    %v1315 = vshrl.u32 1326507024, %v1300
    %v1316 = vor.u32 %v1314, %v1315
    %vm1317 = vcmp.lt.s32.totalorder %v1298, 1
    %vm1318 = vcmp.lt.s32.totalorder %v1298, 2
    %vm1319 = vcmp.lt.s32.totalorder %v1298, 3
    %vm1320 = vcmp.lt.s32.totalorder %v1298, 4
    %v1321 = vsel %vm1317, %v1301, %v1304
    %v1322 = vsel %vm1320, %v1310, 2102212464
    %v1323 = vsel %vm1319, %v1307, %v1322
    %v1324 = vsel %vm1318, %v1321, %v1323
    %v1325 = vsel %vm1317, %v1304, %v1307
    %v1326 = vsel %vm1320, %v1313, 920167782
    %v1327 = vsel %vm1319, %v1310, %v1326
    %v1328 = vsel %vm1318, %v1325, %v1327
    %v1329 = vsel %vm1317, %v1307, %v1310
    %v1330 = vsel %vm1320, %v1316, 1326507024
    %v1331 = vsel %vm1319, %v1313, %v1330
    %v1332 = vsel %vm1318, %v1329, %v1331
    %v1333 = vshll.u32 %v1293, 8
    %v1334 = vand.u32 %v1333, 65535
    %v1335 = vshrl.u32 %v1333, 16
    %v1336 = vand.u32 %v1332, 65535
    %v1337 = vshrl.u32 %v1332, 16
    %v1338 = vmul.u32 %v1334, %v1336
    %v1339 = vmul.u32 %v1334, %v1337
    %v1340 = vmul.u32 %v1335, %v1336
    %v1341 = vmul.u32 %v1335, %v1337
    %v1342 = vshll.u32 %v1339, 16
    %v1343 = vshrl.u32 %v1339, 16
    %v1344 = vshll.u32 %v1340, 16
    %v1345 = vshrl.u32 %v1340, 16
    %vm1346 = vc.u32 %v1338, %v1342
    %v1347 = vsel %vm1346, 1, 0
    %v1348 = vadd.s32 %v1338, %v1342
    %v1349 = vadd.s32 %v1341, %v1347
    %vm1350 = vc.u32 %v1348, %v1344
    %v1351 = vsel %vm1350, 1, 0
    %v1352 = vadd.s32 %v1348, %v1344
    %v1353 = vadd.s32 %v1349, %v1351
    %v1354 = vadd.s32 %v1353, %v1343
    %v1355 = vadd.s32 %v1354, %v1345
    %v1356 = vand.u32 %v1333, 65535
    %v1357 = vshrl.u32 %v1333, 16
    %v1358 = vand.u32 %v1328, 65535
    %v1359 = vshrl.u32 %v1328, 16
    %v1360 = vmul.u32 %v1356, %v1358
    %v1361 = vmul.u32 %v1356, %v1359
    %v1362 = vmul.u32 %v1357, %v1358
    %v1363 = vmul.u32 %v1357, %v1359
    %v1364 = vshll.u32 %v1361, 16
    %v1365 = vshrl.u32 %v1361, 16
    %v1366 = vshll.u32 %v1362, 16
    %v1367 = vshrl.u32 %v1362, 16
    %vm1368 = vc.u32 %v1360, %v1364
    %v1369 = vsel %vm1368, 1, 0
    %v1370 = vadd.s32 %v1360, %v1364
    %v1371 = vadd.s32 %v1363, %v1369
    %vm1372 = vc.u32 %v1370, %v1366
    %v1373 = vsel %vm1372, 1, 0
    %v1374 = vadd.s32 %v1370, %v1366
    %v1375 = vadd.s32 %v1371, %v1373
    %v1376 = vadd.s32 %v1375, %v1365
    %v1377 = vadd.s32 %v1376, %v1367
    %v1378 = vmul.u32 %v1333, %v1324
    %v1379 = vadd.s32 %v1355, %v1374
    %vm1380 = vc.u32 %v1355, %v1374
    %v1381 = vadd.s32 %v1377, 1
    %v1382 = vsel %vm1380, %v1381, %v1377
    %v1383 = vadd.s32 %v1378, %v1382
    %v1384 = vadd.s32 %v1383, 536870912
    %v1385 = vshrl.u32 %v1384, 30
    %v1386 = vshll.u32 %v1385, 30
    %v1387 = vsub.s32 %v1383, %v1386
    %vm1388 = vcmp.lt.s32.totalorder %v1387, 0
    %v1389 = vsub.s32 0, %v1387
    %v1390 = vsel %vm1388, %v1389, %v1387
    %v1391 = vclz %v1390
    %v1392 = vsub.s32 %v1391, 2
    %vm1393 = vcmp.gt.s32.totalorder 0, %v1392
    %v1394 = vsel %vm1393, 0, %v1392
    %v1395 = vsub.s32 32, %v1394
    %v1396 = vshll.u32 %v1387, %v1394
    %v1397 = vshrl.u32 %v1379, %v1395
    %v1398 = vor.u32 %v1396, %v1397
    %v1399 = vsub.s32 4294967266, %v1394
    %v1400 = vadd.s32 %v1399, 127
    %v1401 = vshll.u32 %v1400, 23
    %v1402 = vor.u32 4788187, %v1401
    %v1403 = vand.u32 2147483647, %v1402
    %v1405 = vcvt.s32.f32 %v1398
    %v1406 = vmul.f32 %v1405, %v1403
    %v1407 = vxor.u32 %v1406, 2147483648
    %v1408 = vsel %vm1287, %v1407, %v1406
    %v1409 = vsub.s32 4, %v1385
    %v1410 = vsel %vm1287, %v1409, %v1385
    %v1411 = vsel %vm1286, %v499, %v1408
    %v1412 = vsel %vm1286, 0, %v1410
    %v1413 = vmul.f32 %v1411, %v1411
    %v1414 = vmul.f32 %v1413, -0.001358992
    %v1415 = vadd.f32 %v1414, 0.041655596
    %v1416 = vmul.f32 %v1413, %v1415
    %v1417 = vadd.f32 %v1416, -0.4999988
    %v1418 = vmul.f32 %v1413, %v1417
    %v1419 = vadd.f32 1.0, %v1418
    %v1420 = vmul.f32 %v1411, %v1411
    %v1421 = vmul.f32 %v1420, -0.00019511016
    %v1422 = vadd.f32 %v1421, 0.008332121
    %v1423 = vmul.f32 %v1420, %v1422
    %v1424 = vadd.f32 %v1423, -0.16666654
    %v1425 = vmul.f32 %v1420, %v1424
    %v1426 = vadd.f32 %v1425, 1.0
    %v1427 = vmul.f32 %v1426, %v1411
    %vm1428 = vweird.f32 %v499
    %v1429 = vadd.s32 %v1412, 3
    %v1430 = vand.u32 %v1429, 3
    %vm1431 = vcmp.lt.s32.totalorder %v1430, 2
    %vm1432 = vcmp.eq.s32.totalorder %v1430, 0
    %v1433 = vxor.u32 %v1427, 2147483648
    %v1434 = vsel %vm1432, %v1419, %v1433
    %vm1435 = vcmp.eq.s32.totalorder %v1430, 2
    %v1436 = vxor.u32 %v1419, 2147483648
    %v1437 = vsel %vm1435, %v1436, %v1427
    %v1438 = vsel %vm1431, %v1434, %v1437
    %v1439 = vsel %vm1428, nan, %v1438
    %v1440 = vand.u32 2147483647, %v500
    %vm1441 = vcmp.le.f32.partialorder %v1440, 0.7853982
    %vm1442 = vcmp.lt.s32.totalorder %v500, 0
    %v1443 = vand.u32 %v500, 2139095040
    %v1444 = vshrl.u32 %v1443, 23
    %v1445 = vsub.s32 %v1444, 127
    %v1446 = vand.u32 2147483647, %v500
    %v1447 = vand.u32 %v1446, 8388607
    %v1448 = vor.u32 %v1447, 8388608
    %v1449 = vsub.s32 0, %v1448
    %v1450 = vadd.s32 %v1445, 1
    %vm1451 = vcmp.gt.s32.totalorder %v1450, 0
    %v1452 = vsel %vm1451, %v1450, 0
    %v1453 = vshrl.u32 %v1452, 5
    %v1454 = vand.u32 %v1452, 31
    %v1455 = vsub.s32 32, %v1454
    %v1456 = vshrl.u32 683565275, %v1455
    %v1457 = vshll.u32 683565275, %v1454
    %v1458 = vshrl.u32 2475754826, %v1455
    %v1459 = vor.u32 %v1457, %v1458
    %v1460 = vshll.u32 2475754826, %v1454
    %v1461 = vshrl.u32 2131351028, %v1455
    %v1462 = vor.u32 %v1460, %v1461
    %v1463 = vshll.u32 2131351028, %v1454
    %v1464 = vshrl.u32 2102212464, %v1455
    %v1465 = vor.u32 %v1463, %v1464
    %v1466 = vshll.u32 2102212464, %v1454
    %v1467 = vshrl.u32 920167782, %v1455
    %v1468 = vor.u32 %v1466, %v1467
    %v1469 = vshll.u32 920167782, %v1454
    %v1470 = vshrl.u32 1326507024, %v1455
    %v1471 = vor.u32 %v1469, %v1470
    %vm1472 = vcmp.lt.s32.totalorder %v1453, 1
    %vm1473 = vcmp.lt.s32.totalorder %v1453, 2
    %vm1474 = vcmp.lt.s32.totalorder %v1453, 3
    %vm1475 = vcmp.lt.s32.totalorder %v1453, 4
    %v1476 = vsel %vm1472, %v1456, %v1459
    %v1477 = vsel %vm1475, %v1465, 2102212464
    %v1478 = vsel %vm1474, %v1462, %v1477
    %v1479 = vsel %vm1473, %v1476, %v1478
    %v1480 = vsel %vm1472, %v1459, %v1462
    %v1481 = vsel %vm1475, %v1468, 920167782
    %v1482 = vsel %vm1474, %v1465, %v1481
    %v1483 = vsel %vm1473, %v1480, %v1482
    %v1484 = vsel %vm1472, %v1462, %v1465
    %v1485 = vsel %vm1475, %v1471, 1326507024
    %v1486 = vsel %vm1474, %v1468, %v1485
    %v1487 = vsel %vm1473, %v1484, %v1486
    %v1488 = vshll.u32 %v1448, 8
    %v1489 = vand.u32 %v1488, 65535
    %v1490 = vshrl.u32 %v1488, 16
    %v1491 = vand.u32 %v1487, 65535
    %v1492 = vshrl.u32 %v1487, 16
    %v1493 = vmul.u32 %v1489, %v1491
    %v1494 = vmul.u32 %v1489, %v1492
    %v1495 = vmul.u32 %v1490, %v1491
    %v1496 = vmul.u32 %v1490, %v1492
    %v1497 = vshll.u32 %v1494, 16
    %v1498 = vshrl.u32 %v1494, 16
    %v1499 = vshll.u32 %v1495, 16
    %v1500 = vshrl.u32 %v1495, 16
    %vm1501 = vc.u32 %v1493, %v1497
    %v1502 = vsel %vm1501, 1, 0
    %v1503 = vadd.s32 %v1493, %v1497
    %v1504 = vadd.s32 %v1496, %v1502
    %vm1505 = vc.u32 %v1503, %v1499
    %v1506 = vsel %vm1505, 1, 0
    %v1507 = vadd.s32 %v1503, %v1499
    %v1508 = vadd.s32 %v1504, %v1506
    %v1509 = vadd.s32 %v1508, %v1498
    %v1510 = vadd.s32 %v1509, %v1500
    %v1511 = vand.u32 %v1488, 65535
    %v1512 = vshrl.u32 %v1488, 16
    %v1513 = vand.u32 %v1483, 65535
    %v1514 = vshrl.u32 %v1483, 16
    %v1515 = vmul.u32 %v1511, %v1513
    %v1516 = vmul.u32 %v1511, %v1514
    %v1517 = vmul.u32 %v1512, %v1513
    %v1518 = vmul.u32 %v1512, %v1514
    %v1519 = vshll.u32 %v1516, 16
    %v1520 = vshrl.u32 %v1516, 16
    %v1521 = vshll.u32 %v1517, 16
    %v1522 = vshrl.u32 %v1517, 16
    %vm1523 = vc.u32 %v1515, %v1519
    %v1524 = vsel %vm1523, 1, 0
    %v1525 = vadd.s32 %v1515, %v1519
    %v1526 = vadd.s32 %v1518, %v1524
    %vm1527 = vc.u32 %v1525, %v1521
    %v1528 = vsel %vm1527, 1, 0
    %v1529 = vadd.s32 %v1525, %v1521
    %v1530 = vadd.s32 %v1526, %v1528
    %v1531 = vadd.s32 %v1530, %v1520
    %v1532 = vadd.s32 %v1531, %v1522
    %v1533 = vmul.u32 %v1488, %v1479
    %v1534 = vadd.s32 %v1510, %v1529
    %vm1535 = vc.u32 %v1510, %v1529
    %v1536 = vadd.s32 %v1532, 1
    %v1537 = vsel %vm1535, %v1536, %v1532
    %v1538 = vadd.s32 %v1533, %v1537
    %v1539 = vadd.s32 %v1538, 536870912
    %v1540 = vshrl.u32 %v1539, 30
    %v1541 = vshll.u32 %v1540, 30
    %v1542 = vsub.s32 %v1538, %v1541
    %vm1543 = vcmp.lt.s32.totalorder %v1542, 0
    %v1544 = vsub.s32 0, %v1542
    %v1545 = vsel %vm1543, %v1544, %v1542
    %v1546 = vclz %v1545
    %v1547 = vsub.s32 %v1546, 2
    %vm1548 = vcmp.gt.s32.totalorder 0, %v1547
    %v1549 = vsel %vm1548, 0, %v1547
    %v1550 = vsub.s32 32, %v1549
    %v1551 = vshll.u32 %v1542, %v1549
    %v1552 = vshrl.u32 %v1534, %v1550
    %v1553 = vor.u32 %v1551, %v1552
    %v1554 = vsub.s32 4294967266, %v1549
    %v1555 = vadd.s32 %v1554, 127
    %v1556 = vshll.u32 %v1555, 23
    %v1557 = vor.u32 4788187, %v1556
    %v1558 = vand.u32 2147483647, %v1557
    %v1560 = vcvt.s32.f32 %v1553
    %v1561 = vmul.f32 %v1560, %v1558
    %v1562 = vxor.u32 %v1561, 2147483648
    %v1563 = vsel %vm1442, %v1562, %v1561
    %v1564 = vsub.s32 4, %v1540
    %v1565 = vsel %vm1442, %v1564, %v1540
    %v1566 = vsel %vm1441, %v500, %v1563
    %v1567 = vsel %vm1441, 0, %v1565
    %v1568 = vmul.f32 %v1566, %v1566
    %v1569 = vmul.f32 %v1568, -0.001358992
    %v1570 = vadd.f32 %v1569, 0.041655596
    %v1571 = vmul.f32 %v1568, %v1570
    %v1572 = vadd.f32 %v1571, -0.4999988
    %v1573 = vmul.f32 %v1568, %v1572
    %v1574 = vadd.f32 1.0, %v1573
    %v1575 = vmul.f32 %v1566, %v1566
    %v1576 = vmul.f32 %v1575, -0.00019511016
    %v1577 = vadd.f32 %v1576, 0.008332121
    %v1578 = vmul.f32 %v1575, %v1577
    %v1579 = vadd.f32 %v1578, -0.16666654
    %v1580 = vmul.f32 %v1575, %v1579
    %v1581 = vadd.f32 %v1580, 1.0
    %v1582 = vmul.f32 %v1581, %v1566
    %vm1583 = vweird.f32 %v500
    %v1584 = vadd.s32 %v1567, 3
    %v1585 = vand.u32 %v1584, 3
    %vm1586 = vcmp.lt.s32.totalorder %v1585, 2
    %vm1587 = vcmp.eq.s32.totalorder %v1585, 0
    %v1588 = vxor.u32 %v1582, 2147483648
    %v1589 = vsel %vm1587, %v1574, %v1588
    %vm1590 = vcmp.eq.s32.totalorder %v1585, 2
    %v1591 = vxor.u32 %v1574, 2147483648
    %v1592 = vsel %vm1590, %v1591, %v1582
    %v1593 = vsel %vm1586, %v1589, %v1592
    %v1594 = vsel %vm1583, nan, %v1593
    %v1595 = vand.u32 2147483647, %v501
    %vm1596 = vcmp.le.f32.partialorder %v1595, 0.7853982
    %vm1597 = vcmp.lt.s32.totalorder %v501, 0
    %v1598 = vand.u32 %v501, 2139095040
    %v1599 = vshrl.u32 %v1598, 23
    %v1600 = vsub.s32 %v1599, 127
    %v1601 = vand.u32 2147483647, %v501
    %v1602 = vand.u32 %v1601, 8388607
    %v1603 = vor.u32 %v1602, 8388608
    %v1604 = vsub.s32 0, %v1603
    %v1605 = vadd.s32 %v1600, 1
    %vm1606 = vcmp.gt.s32.totalorder %v1605, 0
    %v1607 = vsel %vm1606, %v1605, 0
    %v1608 = vshrl.u32 %v1607, 5
    %v1609 = vand.u32 %v1607, 31
    %v1610 = vsub.s32 32, %v1609
    %v1611 = vshrl.u32 683565275, %v1610
    %v1612 = vshll.u32 683565275, %v1609
    %v1613 = vshrl.u32 2475754826, %v1610
    %v1614 = vor.u32 %v1612, %v1613
    %v1615 = vshll.u32 2475754826, %v1609
    %v1616 = vshrl.u32 2131351028, %v1610
    %v1617 = vor.u32 %v1615, %v1616
    %v1618 = vshll.u32 2131351028, %v1609
    %v1619 = vshrl.u32 2102212464, %v1610
    %v1620 = vor.u32 %v1618, %v1619
    %v1621 = vshll.u32 2102212464, %v1609
    %v1622 = vshrl.u32 920167782, %v1610
    %v1623 = vor.u32 %v1621, %v1622
    %v1624 = vshll.u32 920167782, %v1609
    %v1625 = vshrl.u32 1326507024, %v1610
    %v1626 = vor.u32 %v1624, %v1625
    %vm1627 = vcmp.lt.s32.totalorder %v1608, 1
    %vm1628 = vcmp.lt.s32.totalorder %v1608, 2
    %vm1629 = vcmp.lt.s32.totalorder %v1608, 3
    %vm1630 = vcmp.lt.s32.totalorder %v1608, 4
    %v1631 = vsel %vm1627, %v1611, %v1614
    %v1632 = vsel %vm1630, %v1620, 2102212464
    %v1633 = vsel %vm1629, %v1617, %v1632
    %v1634 = vsel %vm1628, %v1631, %v1633
    %v1635 = vsel %vm1627, %v1614, %v1617
    %v1636 = vsel %vm1630, %v1623, 920167782
    %v1637 = vsel %vm1629, %v1620, %v1636
    %v1638 = vsel %vm1628, %v1635, %v1637
    %v1639 = vsel %vm1627, %v1617, %v1620
    %v1640 = vsel %vm1630, %v1626, 1326507024
    %v1641 = vsel %vm1629, %v1623, %v1640
    %v1642 = vsel %vm1628, %v1639, %v1641
    %v1643 = vshll.u32 %v1603, 8
    %v1644 = vand.u32 %v1643, 65535
    %v1645 = vshrl.u32 %v1643, 16
    %v1646 = vand.u32 %v1642, 65535
    %v1647 = vshrl.u32 %v1642, 16
    %v1648 = vmul.u32 %v1644, %v1646
    %v1649 = vmul.u32 %v1644, %v1647
    %v1650 = vmul.u32 %v1645, %v1646
    %v1651 = vmul.u32 %v1645, %v1647
    %v1652 = vshll.u32 %v1649, 16
    %v1653 = vshrl.u32 %v1649, 16
    %v1654 = vshll.u32 %v1650, 16
    %v1655 = vshrl.u32 %v1650, 16
    %vm1656 = vc.u32 %v1648, %v1652
    %v1657 = vsel %vm1656, 1, 0
    %v1658 = vadd.s32 %v1648, %v1652
    %v1659 = vadd.s32 %v1651, %v1657
    %vm1660 = vc.u32 %v1658, %v1654
    %v1661 = vsel %vm1660, 1, 0
    %v1662 = vadd.s32 %v1658, %v1654
    %v1663 = vadd.s32 %v1659, %v1661
    %v1664 = vadd.s32 %v1663, %v1653
    %v1665 = vadd.s32 %v1664, %v1655
    %v1666 = vand.u32 %v1643, 65535
    %v1667 = vshrl.u32 %v1643, 16
    %v1668 = vand.u32 %v1638, 65535
    %v1669 = vshrl.u32 %v1638, 16
    %v1670 = vmul.u32 %v1666, %v1668
    %v1671 = vmul.u32 %v1666, %v1669
    %v1672 = vmul.u32 %v1667, %v1668
    %v1673 = vmul.u32 %v1667, %v1669
    %v1674 = vshll.u32 %v1671, 16
    %v1675 = vshrl.u32 %v1671, 16
    %v1676 = vshll.u32 %v1672, 16
    %v1677 = vshrl.u32 %v1672, 16
    %vm1678 = vc.u32 %v1670, %v1674
    %v1679 = vsel %vm1678, 1, 0
    %v1680 = vadd.s32 %v1670, %v1674
    %v1681 = vadd.s32 %v1673, %v1679
    %vm1682 = vc.u32 %v1680, %v1676
    %v1683 = vsel %vm1682, 1, 0
    %v1684 = vadd.s32 %v1680, %v1676
    %v1685 = vadd.s32 %v1681, %v1683
    %v1686 = vadd.s32 %v1685, %v1675
    %v1687 = vadd.s32 %v1686, %v1677
    %v1688 = vmul.u32 %v1643, %v1634
    %v1689 = vadd.s32 %v1665, %v1684
    %vm1690 = vc.u32 %v1665, %v1684
    %v1691 = vadd.s32 %v1687, 1
    %v1692 = vsel %vm1690, %v1691, %v1687
    %v1693 = vadd.s32 %v1688, %v1692
    %v1694 = vadd.s32 %v1693, 536870912
    %v1695 = vshrl.u32 %v1694, 30
    %v1696 = vshll.u32 %v1695, 30
    %v1697 = vsub.s32 %v1693, %v1696
    %vm1698 = vcmp.lt.s32.totalorder %v1697, 0
    %v1699 = vsub.s32 0, %v1697
    %v1700 = vsel %vm1698, %v1699, %v1697
    %v1701 = vclz %v1700
    %v1702 = vsub.s32 %v1701, 2
    %vm1703 = vcmp.gt.s32.totalorder 0, %v1702
    %v1704 = vsel %vm1703, 0, %v1702
    %v1705 = vsub.s32 32, %v1704
    %v1706 = vshll.u32 %v1697, %v1704
    %v1707 = vshrl.u32 %v1689, %v1705
    %v1708 = vor.u32 %v1706, %v1707
    %v1709 = vsub.s32 4294967266, %v1704
    %v1710 = vadd.s32 %v1709, 127
    %v1711 = vshll.u32 %v1710, 23
    %v1712 = vor.u32 4788187, %v1711
    %v1713 = vand.u32 2147483647, %v1712
    %v1715 = vcvt.s32.f32 %v1708
    %v1716 = vmul.f32 %v1715, %v1713
    %v1717 = vxor.u32 %v1716, 2147483648
    %v1718 = vsel %vm1597, %v1717, %v1716
    %v1719 = vsub.s32 4, %v1695
    %v1720 = vsel %vm1597, %v1719, %v1695
    %v1721 = vsel %vm1596, %v501, %v1718
    %v1722 = vsel %vm1596, 0, %v1720
    %v1723 = vmul.f32 %v1721, %v1721
    %v1724 = vmul.f32 %v1723, -0.001358992
    %v1725 = vadd.f32 %v1724, 0.041655596
    %v1726 = vmul.f32 %v1723, %v1725
    %v1727 = vadd.f32 %v1726, -0.4999988
    %v1728 = vmul.f32 %v1723, %v1727
    %v1729 = vadd.f32 1.0, %v1728
    %v1730 = vmul.f32 %v1721, %v1721
    %v1731 = vmul.f32 %v1730, -0.00019511016
    %v1732 = vadd.f32 %v1731, 0.008332121
    %v1733 = vmul.f32 %v1730, %v1732
    %v1734 = vadd.f32 %v1733, -0.16666654
    %v1735 = vmul.f32 %v1730, %v1734
    %v1736 = vadd.f32 %v1735, 1.0
    %v1737 = vmul.f32 %v1736, %v1721
    %vm1738 = vweird.f32 %v501
    %v1739 = vadd.s32 %v1722, 3
    %v1740 = vand.u32 %v1739, 3
    %vm1741 = vcmp.lt.s32.totalorder %v1740, 2
    %vm1742 = vcmp.eq.s32.totalorder %v1740, 0
    %v1743 = vxor.u32 %v1737, 2147483648
    %v1744 = vsel %vm1742, %v1729, %v1743
    %vm1745 = vcmp.eq.s32.totalorder %v1740, 2
    %v1746 = vxor.u32 %v1729, 2147483648
    %v1747 = vsel %vm1745, %v1746, %v1737
    %v1748 = vsel %vm1741, %v1744, %v1747
    %v1749 = vsel %vm1738, nan, %v1748
    %v1750 = vand.u32 2147483647, %v502
    %vm1751 = vcmp.le.f32.partialorder %v1750, 0.7853982
    %vm1752 = vcmp.lt.s32.totalorder %v502, 0
    %v1753 = vand.u32 %v502, 2139095040
    %v1754 = vshrl.u32 %v1753, 23
    %v1755 = vsub.s32 %v1754, 127
    %v1756 = vand.u32 2147483647, %v502
    %v1757 = vand.u32 %v1756, 8388607
    %v1758 = vor.u32 %v1757, 8388608
    %v1759 = vsub.s32 0, %v1758
    %v1760 = vadd.s32 %v1755, 1
    %vm1761 = vcmp.gt.s32.totalorder %v1760, 0
    %v1762 = vsel %vm1761, %v1760, 0
    %v1763 = vshrl.u32 %v1762, 5
    %v1764 = vand.u32 %v1762, 31
    %v1765 = vsub.s32 32, %v1764
    %v1766 = vshrl.u32 683565275, %v1765
    %v1767 = vshll.u32 683565275, %v1764
    %v1768 = vshrl.u32 2475754826, %v1765
    %v1769 = vor.u32 %v1767, %v1768
    %v1770 = vshll.u32 2475754826, %v1764
    %v1771 = vshrl.u32 2131351028, %v1765
    %v1772 = vor.u32 %v1770, %v1771
    %v1773 = vshll.u32 2131351028, %v1764
    %v1774 = vshrl.u32 2102212464, %v1765
    %v1775 = vor.u32 %v1773, %v1774
    %v1776 = vshll.u32 2102212464, %v1764
    %v1777 = vshrl.u32 920167782, %v1765
    %v1778 = vor.u32 %v1776, %v1777
    %v1779 = vshll.u32 920167782, %v1764
    %v1780 = vshrl.u32 1326507024, %v1765
    %v1781 = vor.u32 %v1779, %v1780
    %vm1782 = vcmp.lt.s32.totalorder %v1763, 1
    %vm1783 = vcmp.lt.s32.totalorder %v1763, 2
    %vm1784 = vcmp.lt.s32.totalorder %v1763, 3
    %vm1785 = vcmp.lt.s32.totalorder %v1763, 4
    %v1786 = vsel %vm1782, %v1766, %v1769
    %v1787 = vsel %vm1785, %v1775, 2102212464
    %v1788 = vsel %vm1784, %v1772, %v1787
    %v1789 = vsel %vm1783, %v1786, %v1788
    %v1790 = vsel %vm1782, %v1769, %v1772
    %v1791 = vsel %vm1785, %v1778, 920167782
    %v1792 = vsel %vm1784, %v1775, %v1791
    %v1793 = vsel %vm1783, %v1790, %v1792
    %v1794 = vsel %vm1782, %v1772, %v1775
    %v1795 = vsel %vm1785, %v1781, 1326507024
    %v1796 = vsel %vm1784, %v1778, %v1795
    %v1797 = vsel %vm1783, %v1794, %v1796
    %v1798 = vshll.u32 %v1758, 8
    %v1799 = vand.u32 %v1798, 65535
    %v1800 = vshrl.u32 %v1798, 16
    %v1801 = vand.u32 %v1797, 65535
    %v1802 = vshrl.u32 %v1797, 16
    %v1803 = vmul.u32 %v1799, %v1801
    %v1804 = vmul.u32 %v1799, %v1802
    %v1805 = vmul.u32 %v1800, %v1801
    %v1806 = vmul.u32 %v1800, %v1802
    %v1807 = vshll.u32 %v1804, 16
    %v1808 = vshrl.u32 %v1804, 16
    %v1809 = vshll.u32 %v1805, 16
    %v1810 = vshrl.u32 %v1805, 16
    %vm1811 = vc.u32 %v1803, %v1807
    %v1812 = vsel %vm1811, 1, 0
    %v1813 = vadd.s32 %v1803, %v1807
    %v1814 = vadd.s32 %v1806, %v1812
    %vm1815 = vc.u32 %v1813, %v1809
    %v1816 = vsel %vm1815, 1, 0
    %v1817 = vadd.s32 %v1813, %v1809
    %v1818 = vadd.s32 %v1814, %v1816
    %v1819 = vadd.s32 %v1818, %v1808
    %v1820 = vadd.s32 %v1819, %v1810
    %v1821 = vand.u32 %v1798, 65535
    %v1822 = vshrl.u32 %v1798, 16
    %v1823 = vand.u32 %v1793, 65535
    %v1824 = vshrl.u32 %v1793, 16
    %v1825 = vmul.u32 %v1821, %v1823
    %v1826 = vmul.u32 %v1821, %v1824
    %v1827 = vmul.u32 %v1822, %v1823
    %v1828 = vmul.u32 %v1822, %v1824
    %v1829 = vshll.u32 %v1826, 16
    %v1830 = vshrl.u32 %v1826, 16
    %v1831 = vshll.u32 %v1827, 16
    %v1832 = vshrl.u32 %v1827, 16
    %vm1833 = vc.u32 %v1825, %v1829
    %v1834 = vsel %vm1833, 1, 0
    %v1835 = vadd.s32 %v1825, %v1829
    %v1836 = vadd.s32 %v1828, %v1834
    %vm1837 = vc.u32 %v1835, %v1831
    %v1838 = vsel %vm1837, 1, 0
    %v1839 = vadd.s32 %v1835, %v1831
    %v1840 = vadd.s32 %v1836, %v1838
    %v1841 = vadd.s32 %v1840, %v1830
    %v1842 = vadd.s32 %v1841, %v1832
    %v1843 = vmul.u32 %v1798, %v1789
    %v1844 = vadd.s32 %v1820, %v1839
    %vm1845 = vc.u32 %v1820, %v1839
    %v1846 = vadd.s32 %v1842, 1
    %v1847 = vsel %vm1845, %v1846, %v1842
    %v1848 = vadd.s32 %v1843, %v1847
    %v1849 = vadd.s32 %v1848, 536870912
    %v1850 = vshrl.u32 %v1849, 30
    %v1851 = vshll.u32 %v1850, 30
    %v1852 = vsub.s32 %v1848, %v1851
    %vm1853 = vcmp.lt.s32.totalorder %v1852, 0
    %v1854 = vsub.s32 0, %v1852
    %v1855 = vsel %vm1853, %v1854, %v1852
    %v1856 = vclz %v1855
    %v1857 = vsub.s32 %v1856, 2
    %vm1858 = vcmp.gt.s32.totalorder 0, %v1857
    %v1859 = vsel %vm1858, 0, %v1857
    %v1860 = vsub.s32 32, %v1859
    %v1861 = vshll.u32 %v1852, %v1859
    %v1862 = vshrl.u32 %v1844, %v1860
    %v1863 = vor.u32 %v1861, %v1862
    %v1864 = vsub.s32 4294967266, %v1859
    %v1865 = vadd.s32 %v1864, 127
    %v1866 = vshll.u32 %v1865, 23
    %v1867 = vor.u32 4788187, %v1866
    %v1868 = vand.u32 2147483647, %v1867
    %v1870 = vcvt.s32.f32 %v1863
    %v1871 = vmul.f32 %v1870, %v1868
    %v1872 = vxor.u32 %v1871, 2147483648
    %v1873 = vsel %vm1752, %v1872, %v1871
    %v1874 = vsub.s32 4, %v1850
    %v1875 = vsel %vm1752, %v1874, %v1850
    %v1876 = vsel %vm1751, %v502, %v1873
    %v1877 = vsel %vm1751, 0, %v1875
    %v1878 = vmul.f32 %v1876, %v1876
    %v1879 = vmul.f32 %v1878, -0.001358992
    %v1880 = vadd.f32 %v1879, 0.041655596
    %v1881 = vmul.f32 %v1878, %v1880
    %v1882 = vadd.f32 %v1881, -0.4999988
    %v1883 = vmul.f32 %v1878, %v1882
    %v1884 = vadd.f32 1.0, %v1883
    %v1885 = vmul.f32 %v1876, %v1876
    %v1886 = vmul.f32 %v1885, -0.00019511016
    %v1887 = vadd.f32 %v1886, 0.008332121
    %v1888 = vmul.f32 %v1885, %v1887
    %v1889 = vadd.f32 %v1888, -0.16666654
    %v1890 = vmul.f32 %v1885, %v1889
    %v1891 = vadd.f32 %v1890, 1.0
    %v1892 = vmul.f32 %v1891, %v1876
    %vm1893 = vweird.f32 %v502
    %v1894 = vadd.s32 %v1877, 3
    %v1895 = vand.u32 %v1894, 3
    %vm1896 = vcmp.lt.s32.totalorder %v1895, 2
    %vm1897 = vcmp.eq.s32.totalorder %v1895, 0
    %v1898 = vxor.u32 %v1892, 2147483648
    %v1899 = vsel %vm1897, %v1884, %v1898
    %vm1900 = vcmp.eq.s32.totalorder %v1895, 2
    %v1901 = vxor.u32 %v1884, 2147483648
    %v1902 = vsel %vm1900, %v1901, %v1892
    %v1903 = vsel %vm1896, %v1899, %v1902
    %v1904 = vsel %vm1893, nan, %v1903
    %v1905 = vand.u32 2147483647, %v503
    %vm1906 = vcmp.le.f32.partialorder %v1905, 0.7853982
    %vm1907 = vcmp.lt.s32.totalorder %v503, 0
    %v1908 = vand.u32 %v503, 2139095040
    %v1909 = vshrl.u32 %v1908, 23
    %v1910 = vsub.s32 %v1909, 127
    %v1911 = vand.u32 2147483647, %v503
    %v1912 = vand.u32 %v1911, 8388607
    %v1913 = vor.u32 %v1912, 8388608
    %v1914 = vsub.s32 0, %v1913
    %v1915 = vadd.s32 %v1910, 1
    %vm1916 = vcmp.gt.s32.totalorder %v1915, 0
    %v1917 = vsel %vm1916, %v1915, 0
    %v1918 = vshrl.u32 %v1917, 5
    %v1919 = vand.u32 %v1917, 31
    %v1920 = vsub.s32 32, %v1919
    %v1921 = vshrl.u32 683565275, %v1920
    %v1922 = vshll.u32 683565275, %v1919
    %v1923 = vshrl.u32 2475754826, %v1920
    %v1924 = vor.u32 %v1922, %v1923
    %v1925 = vshll.u32 2475754826, %v1919
    %v1926 = vshrl.u32 2131351028, %v1920
    %v1927 = vor.u32 %v1925, %v1926
    %v1928 = vshll.u32 2131351028, %v1919
    %v1929 = vshrl.u32 2102212464, %v1920
    %v1930 = vor.u32 %v1928, %v1929
    %v1931 = vshll.u32 2102212464, %v1919
    %v1932 = vshrl.u32 920167782, %v1920
    %v1933 = vor.u32 %v1931, %v1932
    %v1934 = vshll.u32 920167782, %v1919
    %v1935 = vshrl.u32 1326507024, %v1920
    %v1936 = vor.u32 %v1934, %v1935
    %vm1937 = vcmp.lt.s32.totalorder %v1918, 1
    %vm1938 = vcmp.lt.s32.totalorder %v1918, 2
    %vm1939 = vcmp.lt.s32.totalorder %v1918, 3
    %vm1940 = vcmp.lt.s32.totalorder %v1918, 4
    %v1941 = vsel %vm1937, %v1921, %v1924
    %v1942 = vsel %vm1940, %v1930, 2102212464
    %v1943 = vsel %vm1939, %v1927, %v1942
    %v1944 = vsel %vm1938, %v1941, %v1943
    %v1945 = vsel %vm1937, %v1924, %v1927
    %v1946 = vsel %vm1940, %v1933, 920167782
    %v1947 = vsel %vm1939, %v1930, %v1946
    %v1948 = vsel %vm1938, %v1945, %v1947
    %v1949 = vsel %vm1937, %v1927, %v1930
    %v1950 = vsel %vm1940, %v1936, 1326507024
    %v1951 = vsel %vm1939, %v1933, %v1950
    %v1952 = vsel %vm1938, %v1949, %v1951
    %v1953 = vshll.u32 %v1913, 8
    %v1954 = vand.u32 %v1953, 65535
    %v1955 = vshrl.u32 %v1953, 16
    %v1956 = vand.u32 %v1952, 65535
    %v1957 = vshrl.u32 %v1952, 16
    %v1958 = vmul.u32 %v1954, %v1956
    %v1959 = vmul.u32 %v1954, %v1957
    %v1960 = vmul.u32 %v1955, %v1956
    %v1961 = vmul.u32 %v1955, %v1957
    %v1962 = vshll.u32 %v1959, 16
    %v1963 = vshrl.u32 %v1959, 16
    %v1964 = vshll.u32 %v1960, 16
    %v1965 = vshrl.u32 %v1960, 16
    %vm1966 = vc.u32 %v1958, %v1962
    %v1967 = vsel %vm1966, 1, 0
    %v1968 = vadd.s32 %v1958, %v1962
    %v1969 = vadd.s32 %v1961, %v1967
    %vm1970 = vc.u32 %v1968, %v1964
    %v1971 = vsel %vm1970, 1, 0
    %v1972 = vadd.s32 %v1968, %v1964
    %v1973 = vadd.s32 %v1969, %v1971
    %v1974 = vadd.s32 %v1973, %v1963
    %v1975 = vadd.s32 %v1974, %v1965
    %v1976 = vand.u32 %v1953, 65535
    %v1977 = vshrl.u32 %v1953, 16
    %v1978 = vand.u32 %v1948, 65535
    %v1979 = vshrl.u32 %v1948, 16
    %v1980 = vmul.u32 %v1976, %v1978
    %v1981 = vmul.u32 %v1976, %v1979
    %v1982 = vmul.u32 %v1977, %v1978
    %v1983 = vmul.u32 %v1977, %v1979
    %v1984 = vshll.u32 %v1981, 16
    %v1985 = vshrl.u32 %v1981, 16
    %v1986 = vshll.u32 %v1982, 16
    %v1987 = vshrl.u32 %v1982, 16
    %vm1988 = vc.u32 %v1980, %v1984
    %v1989 = vsel %vm1988, 1, 0
    %v1990 = vadd.s32 %v1980, %v1984
    %v1991 = vadd.s32 %v1983, %v1989
    %vm1992 = vc.u32 %v1990, %v1986
    %v1993 = vsel %vm1992, 1, 0
    %v1994 = vadd.s32 %v1990, %v1986
    %v1995 = vadd.s32 %v1991, %v1993
    %v1996 = vadd.s32 %v1995, %v1985
    %v1997 = vadd.s32 %v1996, %v1987
    %v1998 = vmul.u32 %v1953, %v1944
    %v1999 = vadd.s32 %v1975, %v1994
    %vm2000 = vc.u32 %v1975, %v1994
    %v2001 = vadd.s32 %v1997, 1
    %v2002 = vsel %vm2000, %v2001, %v1997
    %v2003 = vadd.s32 %v1998, %v2002
    %v2004 = vadd.s32 %v2003, 536870912
    %v2005 = vshrl.u32 %v2004, 30
    %v2006 = vshll.u32 %v2005, 30
    %v2007 = vsub.s32 %v2003, %v2006
    %vm2008 = vcmp.lt.s32.totalorder %v2007, 0
    %v2009 = vsub.s32 0, %v2007
    %v2010 = vsel %vm2008, %v2009, %v2007
    %v2011 = vclz %v2010
    %v2012 = vsub.s32 %v2011, 2
    %vm2013 = vcmp.gt.s32.totalorder 0, %v2012
    %v2014 = vsel %vm2013, 0, %v2012
    %v2015 = vsub.s32 32, %v2014
    %v2016 = vshll.u32 %v2007, %v2014
    %v2017 = vshrl.u32 %v1999, %v2015
    %v2018 = vor.u32 %v2016, %v2017
    %v2019 = vsub.s32 4294967266, %v2014
    %v2020 = vadd.s32 %v2019, 127
    %v2021 = vshll.u32 %v2020, 23
    %v2022 = vor.u32 4788187, %v2021
    %v2023 = vand.u32 2147483647, %v2022
    %v2025 = vcvt.s32.f32 %v2018
    %v2026 = vmul.f32 %v2025, %v2023
    %v2027 = vxor.u32 %v2026, 2147483648
    %v2028 = vsel %vm1907, %v2027, %v2026
    %v2029 = vsub.s32 4, %v2005
    %v2030 = vsel %vm1907, %v2029, %v2005
    %v2031 = vsel %vm1906, %v503, %v2028
    %v2032 = vsel %vm1906, 0, %v2030
    %v2033 = vmul.f32 %v2031, %v2031
    %v2034 = vmul.f32 %v2033, -0.001358992
    %v2035 = vadd.f32 %v2034, 0.041655596
    %v2036 = vmul.f32 %v2033, %v2035
    %v2037 = vadd.f32 %v2036, -0.4999988
    %v2038 = vmul.f32 %v2033, %v2037
    %v2039 = vadd.f32 1.0, %v2038
    %v2040 = vmul.f32 %v2031, %v2031
    %v2041 = vmul.f32 %v2040, -0.00019511016
    %v2042 = vadd.f32 %v2041, 0.008332121
    %v2043 = vmul.f32 %v2040, %v2042
    %v2044 = vadd.f32 %v2043, -0.16666654
    %v2045 = vmul.f32 %v2040, %v2044
    %v2046 = vadd.f32 %v2045, 1.0
    %v2047 = vmul.f32 %v2046, %v2031
    %vm2048 = vweird.f32 %v503
    %v2049 = vadd.s32 %v2032, 3
    %v2050 = vand.u32 %v2049, 3
    %vm2051 = vcmp.lt.s32.totalorder %v2050, 2
    %vm2052 = vcmp.eq.s32.totalorder %v2050, 0
    %v2053 = vxor.u32 %v2047, 2147483648
    %v2054 = vsel %vm2052, %v2039, %v2053
    %vm2055 = vcmp.eq.s32.totalorder %v2050, 2
    %v2056 = vxor.u32 %v2039, 2147483648
    %v2057 = vsel %vm2055, %v2056, %v2047
    %v2058 = vsel %vm2051, %v2054, %v2057
    %v2059 = vsel %vm2048, nan, %v2058
    %v2060 = vand.u32 2147483647, %v504
    %vm2061 = vcmp.le.f32.partialorder %v2060, 0.7853982
    %vm2062 = vcmp.lt.s32.totalorder %v504, 0
    %v2063 = vand.u32 %v504, 2139095040
    %v2064 = vshrl.u32 %v2063, 23
    %v2065 = vsub.s32 %v2064, 127
    %v2066 = vand.u32 2147483647, %v504
    %v2067 = vand.u32 %v2066, 8388607
    %v2068 = vor.u32 %v2067, 8388608
    %v2069 = vsub.s32 0, %v2068
    %v2070 = vadd.s32 %v2065, 1
    %vm2071 = vcmp.gt.s32.totalorder %v2070, 0
    %v2072 = vsel %vm2071, %v2070, 0
    %v2073 = vshrl.u32 %v2072, 5
    %v2074 = vand.u32 %v2072, 31
    %v2075 = vsub.s32 32, %v2074
    %v2076 = vshrl.u32 683565275, %v2075
    %v2077 = vshll.u32 683565275, %v2074
    %v2078 = vshrl.u32 2475754826, %v2075
    %v2079 = vor.u32 %v2077, %v2078
    %v2080 = vshll.u32 2475754826, %v2074
    %v2081 = vshrl.u32 2131351028, %v2075
    %v2082 = vor.u32 %v2080, %v2081
    %v2083 = vshll.u32 2131351028, %v2074
    %v2084 = vshrl.u32 2102212464, %v2075
    %v2085 = vor.u32 %v2083, %v2084
    %v2086 = vshll.u32 2102212464, %v2074
    %v2087 = vshrl.u32 920167782, %v2075
    %v2088 = vor.u32 %v2086, %v2087
    %v2089 = vshll.u32 920167782, %v2074
    %v2090 = vshrl.u32 1326507024, %v2075
    %v2091 = vor.u32 %v2089, %v2090
    %vm2092 = vcmp.lt.s32.totalorder %v2073, 1
    %vm2093 = vcmp.lt.s32.totalorder %v2073, 2
    %vm2094 = vcmp.lt.s32.totalorder %v2073, 3
    %vm2095 = vcmp.lt.s32.totalorder %v2073, 4
    %v2096 = vsel %vm2092, %v2076, %v2079
    %v2097 = vsel %vm2095, %v2085, 2102212464
    %v2098 = vsel %vm2094, %v2082, %v2097
    %v2099 = vsel %vm2093, %v2096, %v2098
    %v2100 = vsel %vm2092, %v2079, %v2082
    %v2101 = vsel %vm2095, %v2088, 920167782
    %v2102 = vsel %vm2094, %v2085, %v2101
    %v2103 = vsel %vm2093, %v2100, %v2102
    %v2104 = vsel %vm2092, %v2082, %v2085
    %v2105 = vsel %vm2095, %v2091, 1326507024
    %v2106 = vsel %vm2094, %v2088, %v2105
    %v2107 = vsel %vm2093, %v2104, %v2106
    %v2108 = vshll.u32 %v2068, 8
    %v2109 = vand.u32 %v2108, 65535
    %v2110 = vshrl.u32 %v2108, 16
    %v2111 = vand.u32 %v2107, 65535
    %v2112 = vshrl.u32 %v2107, 16
    %v2113 = vmul.u32 %v2109, %v2111
    %v2114 = vmul.u32 %v2109, %v2112
    %v2115 = vmul.u32 %v2110, %v2111
    %v2116 = vmul.u32 %v2110, %v2112
    %v2117 = vshll.u32 %v2114, 16
    %v2118 = vshrl.u32 %v2114, 16
    %v2119 = vshll.u32 %v2115, 16
    %v2120 = vshrl.u32 %v2115, 16
    %vm2121 = vc.u32 %v2113, %v2117
    %v2122 = vsel %vm2121, 1, 0
    %v2123 = vadd.s32 %v2113, %v2117
    %v2124 = vadd.s32 %v2116, %v2122
    %vm2125 = vc.u32 %v2123, %v2119
    %v2126 = vsel %vm2125, 1, 0
    %v2127 = vadd.s32 %v2123, %v2119
    %v2128 = vadd.s32 %v2124, %v2126
    %v2129 = vadd.s32 %v2128, %v2118
    %v2130 = vadd.s32 %v2129, %v2120
    %v2131 = vand.u32 %v2108, 65535
    %v2132 = vshrl.u32 %v2108, 16
    %v2133 = vand.u32 %v2103, 65535
    %v2134 = vshrl.u32 %v2103, 16
    %v2135 = vmul.u32 %v2131, %v2133
    %v2136 = vmul.u32 %v2131, %v2134
    %v2137 = vmul.u32 %v2132, %v2133
    %v2138 = vmul.u32 %v2132, %v2134
    %v2139 = vshll.u32 %v2136, 16
    %v2140 = vshrl.u32 %v2136, 16
    %v2141 = vshll.u32 %v2137, 16
    %v2142 = vshrl.u32 %v2137, 16
    %vm2143 = vc.u32 %v2135, %v2139
    %v2144 = vsel %vm2143, 1, 0
    %v2145 = vadd.s32 %v2135, %v2139
    %v2146 = vadd.s32 %v2138, %v2144
    %vm2147 = vc.u32 %v2145, %v2141
    %v2148 = vsel %vm2147, 1, 0
    %v2149 = vadd.s32 %v2145, %v2141
    %v2150 = vadd.s32 %v2146, %v2148
    %v2151 = vadd.s32 %v2150, %v2140
    %v2152 = vadd.s32 %v2151, %v2142
    %v2153 = vmul.u32 %v2108, %v2099
    %v2154 = vadd.s32 %v2130, %v2149
    %vm2155 = vc.u32 %v2130, %v2149
    %v2156 = vadd.s32 %v2152, 1
    %v2157 = vsel %vm2155, %v2156, %v2152
    %v2158 = vadd.s32 %v2153, %v2157
    %v2159 = vadd.s32 %v2158, 536870912
    %v2160 = vshrl.u32 %v2159, 30
    %v2161 = vshll.u32 %v2160, 30
    %v2162 = vsub.s32 %v2158, %v2161
    %vm2163 = vcmp.lt.s32.totalorder %v2162, 0
    %v2164 = vsub.s32 0, %v2162
    %v2165 = vsel %vm2163, %v2164, %v2162
    %v2166 = vclz %v2165
    %v2167 = vsub.s32 %v2166, 2
    %vm2168 = vcmp.gt.s32.totalorder 0, %v2167
    %v2169 = vsel %vm2168, 0, %v2167
    %v2170 = vsub.s32 32, %v2169
    %v2171 = vshll.u32 %v2162, %v2169
    %v2172 = vshrl.u32 %v2154, %v2170
    %v2173 = vor.u32 %v2171, %v2172
    %v2174 = vsub.s32 4294967266, %v2169
    %v2175 = vadd.s32 %v2174, 127
    %v2176 = vshll.u32 %v2175, 23
    %v2177 = vor.u32 4788187, %v2176
    %v2178 = vand.u32 2147483647, %v2177
    %v2180 = vcvt.s32.f32 %v2173
    %v2181 = vmul.f32 %v2180, %v2178
    %v2182 = vxor.u32 %v2181, 2147483648
    %v2183 = vsel %vm2062, %v2182, %v2181
    %v2184 = vsub.s32 4, %v2160
    %v2185 = vsel %vm2062, %v2184, %v2160
    %v2186 = vsel %vm2061, %v504, %v2183
    %v2187 = vsel %vm2061, 0, %v2185
    %v2188 = vmul.f32 %v2186, %v2186
    %v2189 = vmul.f32 %v2188, -0.001358992
    %v2190 = vadd.f32 %v2189, 0.041655596
    %v2191 = vmul.f32 %v2188, %v2190
    %v2192 = vadd.f32 %v2191, -0.4999988
    %v2193 = vmul.f32 %v2188, %v2192
    %v2194 = vadd.f32 1.0, %v2193
    %v2195 = vmul.f32 %v2186, %v2186
    %v2196 = vmul.f32 %v2195, -0.00019511016
    %v2197 = vadd.f32 %v2196, 0.008332121
    %v2198 = vmul.f32 %v2195, %v2197
    %v2199 = vadd.f32 %v2198, -0.16666654
    %v2200 = vmul.f32 %v2195, %v2199
    %v2201 = vadd.f32 %v2200, 1.0
    %v2202 = vmul.f32 %v2201, %v2186
    %vm2203 = vweird.f32 %v504
    %v2204 = vadd.s32 %v2187, 3
    %v2205 = vand.u32 %v2204, 3
    %vm2206 = vcmp.lt.s32.totalorder %v2205, 2
    %vm2207 = vcmp.eq.s32.totalorder %v2205, 0
    %v2208 = vxor.u32 %v2202, 2147483648
    %v2209 = vsel %vm2207, %v2194, %v2208
    %vm2210 = vcmp.eq.s32.totalorder %v2205, 2
    %v2211 = vxor.u32 %v2194, 2147483648
    %v2212 = vsel %vm2210, %v2211, %v2202
    %v2213 = vsel %vm2206, %v2209, %v2212
    %v2214 = vsel %vm2203, nan, %v2213
    %v2215 = vand.u32 2147483647, %v505
    %vm2216 = vcmp.le.f32.partialorder %v2215, 0.7853982
    %vm2217 = vcmp.lt.s32.totalorder %v505, 0
    %v2218 = vand.u32 %v505, 2139095040
    %v2219 = vshrl.u32 %v2218, 23
    %v2220 = vsub.s32 %v2219, 127
    %v2221 = vand.u32 2147483647, %v505
    %v2222 = vand.u32 %v2221, 8388607
    %v2223 = vor.u32 %v2222, 8388608
    %v2224 = vsub.s32 0, %v2223
    %v2225 = vadd.s32 %v2220, 1
    %vm2226 = vcmp.gt.s32.totalorder %v2225, 0
    %v2227 = vsel %vm2226, %v2225, 0
    %v2228 = vshrl.u32 %v2227, 5
    %v2229 = vand.u32 %v2227, 31
    %v2230 = vsub.s32 32, %v2229
    %v2231 = vshrl.u32 683565275, %v2230
    %v2232 = vshll.u32 683565275, %v2229
    %v2233 = vshrl.u32 2475754826, %v2230
    %v2234 = vor.u32 %v2232, %v2233
    %v2235 = vshll.u32 2475754826, %v2229
    %v2236 = vshrl.u32 2131351028, %v2230
    %v2237 = vor.u32 %v2235, %v2236
    %v2238 = vshll.u32 2131351028, %v2229
    %v2239 = vshrl.u32 2102212464, %v2230
    %v2240 = vor.u32 %v2238, %v2239
    %v2241 = vshll.u32 2102212464, %v2229
    %v2242 = vshrl.u32 920167782, %v2230
    %v2243 = vor.u32 %v2241, %v2242
    %v2244 = vshll.u32 920167782, %v2229
    %v2245 = vshrl.u32 1326507024, %v2230
    %v2246 = vor.u32 %v2244, %v2245
    %vm2247 = vcmp.lt.s32.totalorder %v2228, 1
    %vm2248 = vcmp.lt.s32.totalorder %v2228, 2
    %vm2249 = vcmp.lt.s32.totalorder %v2228, 3
    %vm2250 = vcmp.lt.s32.totalorder %v2228, 4
    %v2251 = vsel %vm2247, %v2231, %v2234
    %v2252 = vsel %vm2250, %v2240, 2102212464
    %v2253 = vsel %vm2249, %v2237, %v2252
    %v2254 = vsel %vm2248, %v2251, %v2253
    %v2255 = vsel %vm2247, %v2234, %v2237
    %v2256 = vsel %vm2250, %v2243, 920167782
    %v2257 = vsel %vm2249, %v2240, %v2256
    %v2258 = vsel %vm2248, %v2255, %v2257
    %v2259 = vsel %vm2247, %v2237, %v2240
    %v2260 = vsel %vm2250, %v2246, 1326507024
    %v2261 = vsel %vm2249, %v2243, %v2260
    %v2262 = vsel %vm2248, %v2259, %v2261
    %v2263 = vshll.u32 %v2223, 8
    %v2264 = vand.u32 %v2263, 65535
    %v2265 = vshrl.u32 %v2263, 16
    %v2266 = vand.u32 %v2262, 65535
    %v2267 = vshrl.u32 %v2262, 16
    %v2268 = vmul.u32 %v2264, %v2266
    %v2269 = vmul.u32 %v2264, %v2267
    %v2270 = vmul.u32 %v2265, %v2266
    %v2271 = vmul.u32 %v2265, %v2267
    %v2272 = vshll.u32 %v2269, 16
    %v2273 = vshrl.u32 %v2269, 16
    %v2274 = vshll.u32 %v2270, 16
    %v2275 = vshrl.u32 %v2270, 16
    %vm2276 = vc.u32 %v2268, %v2272
    %v2277 = vsel %vm2276, 1, 0
    %v2278 = vadd.s32 %v2268, %v2272
    %v2279 = vadd.s32 %v2271, %v2277
    %vm2280 = vc.u32 %v2278, %v2274
    %v2281 = vsel %vm2280, 1, 0
    %v2282 = vadd.s32 %v2278, %v2274
    %v2283 = vadd.s32 %v2279, %v2281
    %v2284 = vadd.s32 %v2283, %v2273
    %v2285 = vadd.s32 %v2284, %v2275
    %v2286 = vand.u32 %v2263, 65535
    %v2287 = vshrl.u32 %v2263, 16
    %v2288 = vand.u32 %v2258, 65535
    %v2289 = vshrl.u32 %v2258, 16
    %v2290 = vmul.u32 %v2286, %v2288
    %v2291 = vmul.u32 %v2286, %v2289
    %v2292 = vmul.u32 %v2287, %v2288
    %v2293 = vmul.u32 %v2287, %v2289
    %v2294 = vshll.u32 %v2291, 16
    %v2295 = vshrl.u32 %v2291, 16
    %v2296 = vshll.u32 %v2292, 16
    %v2297 = vshrl.u32 %v2292, 16
    %vm2298 = vc.u32 %v2290, %v2294
    %v2299 = vsel %vm2298, 1, 0
    %v2300 = vadd.s32 %v2290, %v2294
    %v2301 = vadd.s32 %v2293, %v2299
    %vm2302 = vc.u32 %v2300, %v2296
    %v2303 = vsel %vm2302, 1, 0
    %v2304 = vadd.s32 %v2300, %v2296
    %v2305 = vadd.s32 %v2301, %v2303
    %v2306 = vadd.s32 %v2305, %v2295
    %v2307 = vadd.s32 %v2306, %v2297
    %v2308 = vmul.u32 %v2263, %v2254
    %v2309 = vadd.s32 %v2285, %v2304
    %vm2310 = vc.u32 %v2285, %v2304
    %v2311 = vadd.s32 %v2307, 1
    %v2312 = vsel %vm2310, %v2311, %v2307
    %v2313 = vadd.s32 %v2308, %v2312
    %v2314 = vadd.s32 %v2313, 536870912
    %v2315 = vshrl.u32 %v2314, 30
    %v2316 = vshll.u32 %v2315, 30
    %v2317 = vsub.s32 %v2313, %v2316
    %vm2318 = vcmp.lt.s32.totalorder %v2317, 0
    %v2319 = vsub.s32 0, %v2317
    %v2320 = vsel %vm2318, %v2319, %v2317
    %v2321 = vclz %v2320
    %v2322 = vsub.s32 %v2321, 2
    %vm2323 = vcmp.gt.s32.totalorder 0, %v2322
    %v2324 = vsel %vm2323, 0, %v2322
    %v2325 = vsub.s32 32, %v2324
    %v2326 = vshll.u32 %v2317, %v2324
    %v2327 = vshrl.u32 %v2309, %v2325
    %v2328 = vor.u32 %v2326, %v2327
    %v2329 = vsub.s32 4294967266, %v2324
    %v2330 = vadd.s32 %v2329, 127
    %v2331 = vshll.u32 %v2330, 23
    %v2332 = vor.u32 4788187, %v2331
    %v2333 = vand.u32 2147483647, %v2332
    %v2335 = vcvt.s32.f32 %v2328
    %v2336 = vmul.f32 %v2335, %v2333
    %v2337 = vxor.u32 %v2336, 2147483648
    %v2338 = vsel %vm2217, %v2337, %v2336
    %v2339 = vsub.s32 4, %v2315
    %v2340 = vsel %vm2217, %v2339, %v2315
    %v2341 = vsel %vm2216, %v505, %v2338
    %v2342 = vsel %vm2216, 0, %v2340
    %v2343 = vmul.f32 %v2341, %v2341
    %v2344 = vmul.f32 %v2343, -0.001358992
    %v2345 = vadd.f32 %v2344, 0.041655596
    %v2346 = vmul.f32 %v2343, %v2345
    %v2347 = vadd.f32 %v2346, -0.4999988
    %v2348 = vmul.f32 %v2343, %v2347
    %v2349 = vadd.f32 1.0, %v2348
    %v2350 = vmul.f32 %v2341, %v2341
    %v2351 = vmul.f32 %v2350, -0.00019511016
    %v2352 = vadd.f32 %v2351, 0.008332121
    %v2353 = vmul.f32 %v2350, %v2352
    %v2354 = vadd.f32 %v2353, -0.16666654
    %v2355 = vmul.f32 %v2350, %v2354
    %v2356 = vadd.f32 %v2355, 1.0
    %v2357 = vmul.f32 %v2356, %v2341
    %vm2358 = vweird.f32 %v505
    %v2359 = vadd.s32 %v2342, 3
    %v2360 = vand.u32 %v2359, 3
    %vm2361 = vcmp.lt.s32.totalorder %v2360, 2
    %vm2362 = vcmp.eq.s32.totalorder %v2360, 0
    %v2363 = vxor.u32 %v2357, 2147483648
    %v2364 = vsel %vm2362, %v2349, %v2363
    %vm2365 = vcmp.eq.s32.totalorder %v2360, 2
    %v2366 = vxor.u32 %v2349, 2147483648
    %v2367 = vsel %vm2365, %v2366, %v2357
    %v2368 = vsel %vm2361, %v2364, %v2367
    %v2369 = vsel %vm2358, nan, %v2368
    %v2370 = vand.u32 2147483647, %v506
    %vm2371 = vcmp.le.f32.partialorder %v2370, 0.7853982
    %vm2372 = vcmp.lt.s32.totalorder %v506, 0
    %v2373 = vand.u32 %v506, 2139095040
    %v2374 = vshrl.u32 %v2373, 23
    %v2375 = vsub.s32 %v2374, 127
    %v2376 = vand.u32 2147483647, %v506
    %v2377 = vand.u32 %v2376, 8388607
    %v2378 = vor.u32 %v2377, 8388608
    %v2379 = vsub.s32 0, %v2378
    %v2380 = vadd.s32 %v2375, 1
    %vm2381 = vcmp.gt.s32.totalorder %v2380, 0
    %v2382 = vsel %vm2381, %v2380, 0
    %v2383 = vshrl.u32 %v2382, 5
    %v2384 = vand.u32 %v2382, 31
    %v2385 = vsub.s32 32, %v2384
    %v2386 = vshrl.u32 683565275, %v2385
    %v2387 = vshll.u32 683565275, %v2384
    %v2388 = vshrl.u32 2475754826, %v2385
    %v2389 = vor.u32 %v2387, %v2388
    %v2390 = vshll.u32 2475754826, %v2384
    %v2391 = vshrl.u32 2131351028, %v2385
    %v2392 = vor.u32 %v2390, %v2391
    %v2393 = vshll.u32 2131351028, %v2384
    %v2394 = vshrl.u32 2102212464, %v2385
    %v2395 = vor.u32 %v2393, %v2394
    %v2396 = vshll.u32 2102212464, %v2384
    %v2397 = vshrl.u32 920167782, %v2385
    %v2398 = vor.u32 %v2396, %v2397
    %v2399 = vshll.u32 920167782, %v2384
    %v2400 = vshrl.u32 1326507024, %v2385
    %v2401 = vor.u32 %v2399, %v2400
    %vm2402 = vcmp.lt.s32.totalorder %v2383, 1
    %vm2403 = vcmp.lt.s32.totalorder %v2383, 2
    %vm2404 = vcmp.lt.s32.totalorder %v2383, 3
    %vm2405 = vcmp.lt.s32.totalorder %v2383, 4
    %v2406 = vsel %vm2402, %v2386, %v2389
    %v2407 = vsel %vm2405, %v2395, 2102212464
    %v2408 = vsel %vm2404, %v2392, %v2407
    %v2409 = vsel %vm2403, %v2406, %v2408
    %v2410 = vsel %vm2402, %v2389, %v2392
    %v2411 = vsel %vm2405, %v2398, 920167782
    %v2412 = vsel %vm2404, %v2395, %v2411
    %v2413 = vsel %vm2403, %v2410, %v2412
    %v2414 = vsel %vm2402, %v2392, %v2395
    %v2415 = vsel %vm2405, %v2401, 1326507024
    %v2416 = vsel %vm2404, %v2398, %v2415
    %v2417 = vsel %vm2403, %v2414, %v2416
    %v2418 = vshll.u32 %v2378, 8
    %v2419 = vand.u32 %v2418, 65535
    %v2420 = vshrl.u32 %v2418, 16
    %v2421 = vand.u32 %v2417, 65535
    %v2422 = vshrl.u32 %v2417, 16
    %v2423 = vmul.u32 %v2419, %v2421
    %v2424 = vmul.u32 %v2419, %v2422
    %v2425 = vmul.u32 %v2420, %v2421
    %v2426 = vmul.u32 %v2420, %v2422
    %v2427 = vshll.u32 %v2424, 16
    %v2428 = vshrl.u32 %v2424, 16
    %v2429 = vshll.u32 %v2425, 16
    %v2430 = vshrl.u32 %v2425, 16
    %vm2431 = vc.u32 %v2423, %v2427
    %v2432 = vsel %vm2431, 1, 0
    %v2433 = vadd.s32 %v2423, %v2427
    %v2434 = vadd.s32 %v2426, %v2432
    %vm2435 = vc.u32 %v2433, %v2429
    %v2436 = vsel %vm2435, 1, 0
    %v2437 = vadd.s32 %v2433, %v2429
    %v2438 = vadd.s32 %v2434, %v2436
    %v2439 = vadd.s32 %v2438, %v2428
    %v2440 = vadd.s32 %v2439, %v2430
    %v2441 = vand.u32 %v2418, 65535
    %v2442 = vshrl.u32 %v2418, 16
    %v2443 = vand.u32 %v2413, 65535
    %v2444 = vshrl.u32 %v2413, 16
    %v2445 = vmul.u32 %v2441, %v2443
    %v2446 = vmul.u32 %v2441, %v2444
    %v2447 = vmul.u32 %v2442, %v2443
    %v2448 = vmul.u32 %v2442, %v2444
    %v2449 = vshll.u32 %v2446, 16
    %v2450 = vshrl.u32 %v2446, 16
    %v2451 = vshll.u32 %v2447, 16
    %v2452 = vshrl.u32 %v2447, 16
    %vm2453 = vc.u32 %v2445, %v2449
    %v2454 = vsel %vm2453, 1, 0
    %v2455 = vadd.s32 %v2445, %v2449
    %v2456 = vadd.s32 %v2448, %v2454
    %vm2457 = vc.u32 %v2455, %v2451
    %v2458 = vsel %vm2457, 1, 0
    %v2459 = vadd.s32 %v2455, %v2451
    %v2460 = vadd.s32 %v2456, %v2458
    %v2461 = vadd.s32 %v2460, %v2450
    %v2462 = vadd.s32 %v2461, %v2452
    %v2463 = vmul.u32 %v2418, %v2409
    %v2464 = vadd.s32 %v2440, %v2459
    %vm2465 = vc.u32 %v2440, %v2459
    %v2466 = vadd.s32 %v2462, 1
    %v2467 = vsel %vm2465, %v2466, %v2462
    %v2468 = vadd.s32 %v2463, %v2467
    %v2469 = vadd.s32 %v2468, 536870912
    %v2470 = vshrl.u32 %v2469, 30
    %v2471 = vshll.u32 %v2470, 30
    %v2472 = vsub.s32 %v2468, %v2471
    %vm2473 = vcmp.lt.s32.totalorder %v2472, 0
    %v2474 = vsub.s32 0, %v2472
    %v2475 = vsel %vm2473, %v2474, %v2472
    %v2476 = vclz %v2475
    %v2477 = vsub.s32 %v2476, 2
    %vm2478 = vcmp.gt.s32.totalorder 0, %v2477
    %v2479 = vsel %vm2478, 0, %v2477
    %v2480 = vsub.s32 32, %v2479
    %v2481 = vshll.u32 %v2472, %v2479
    %v2482 = vshrl.u32 %v2464, %v2480
    %v2483 = vor.u32 %v2481, %v2482
    %v2484 = vsub.s32 4294967266, %v2479
    %v2485 = vadd.s32 %v2484, 127
    %v2486 = vshll.u32 %v2485, 23
    %v2487 = vor.u32 4788187, %v2486
    %v2488 = vand.u32 2147483647, %v2487
    %v2490 = vcvt.s32.f32 %v2483
    %v2491 = vmul.f32 %v2490, %v2488
    %v2492 = vxor.u32 %v2491, 2147483648
    %v2493 = vsel %vm2372, %v2492, %v2491
    %v2494 = vsub.s32 4, %v2470
    %v2495 = vsel %vm2372, %v2494, %v2470
    %v2496 = vsel %vm2371, %v506, %v2493
    %v2497 = vsel %vm2371, 0, %v2495
    %v2498 = vmul.f32 %v2496, %v2496
    %v2499 = vmul.f32 %v2498, -0.001358992
    %v2500 = vadd.f32 %v2499, 0.041655596
    %v2501 = vmul.f32 %v2498, %v2500
    %v2502 = vadd.f32 %v2501, -0.4999988
    %v2503 = vmul.f32 %v2498, %v2502
    %v2504 = vadd.f32 1.0, %v2503
    %v2505 = vmul.f32 %v2496, %v2496
    %v2506 = vmul.f32 %v2505, -0.00019511016
    %v2507 = vadd.f32 %v2506, 0.008332121
    %v2508 = vmul.f32 %v2505, %v2507
    %v2509 = vadd.f32 %v2508, -0.16666654
    %v2510 = vmul.f32 %v2505, %v2509
    %v2511 = vadd.f32 %v2510, 1.0
    %v2512 = vmul.f32 %v2511, %v2496
    %vm2513 = vweird.f32 %v506
    %v2514 = vadd.s32 %v2497, 3
    %v2515 = vand.u32 %v2514, 3
    %vm2516 = vcmp.lt.s32.totalorder %v2515, 2
    %vm2517 = vcmp.eq.s32.totalorder %v2515, 0
    %v2518 = vxor.u32 %v2512, 2147483648
    %v2519 = vsel %vm2517, %v2504, %v2518
    %vm2520 = vcmp.eq.s32.totalorder %v2515, 2
    %v2521 = vxor.u32 %v2504, 2147483648
    %v2522 = vsel %vm2520, %v2521, %v2512
    %v2523 = vsel %vm2516, %v2519, %v2522
    %v2524 = vsel %vm2513, nan, %v2523
    %v2525 = vand.u32 2147483647, %v507
    %vm2526 = vcmp.le.f32.partialorder %v2525, 0.7853982
    %vm2527 = vcmp.lt.s32.totalorder %v507, 0
    %v2528 = vand.u32 %v507, 2139095040
    %v2529 = vshrl.u32 %v2528, 23
    %v2530 = vsub.s32 %v2529, 127
    %v2531 = vand.u32 2147483647, %v507
    %v2532 = vand.u32 %v2531, 8388607
    %v2533 = vor.u32 %v2532, 8388608
    %v2534 = vsub.s32 0, %v2533
    %v2535 = vadd.s32 %v2530, 1
    %vm2536 = vcmp.gt.s32.totalorder %v2535, 0
    %v2537 = vsel %vm2536, %v2535, 0
    %v2538 = vshrl.u32 %v2537, 5
    %v2539 = vand.u32 %v2537, 31
    %v2540 = vsub.s32 32, %v2539
    %v2541 = vshrl.u32 683565275, %v2540
    %v2542 = vshll.u32 683565275, %v2539
    %v2543 = vshrl.u32 2475754826, %v2540
    %v2544 = vor.u32 %v2542, %v2543
    %v2545 = vshll.u32 2475754826, %v2539
    %v2546 = vshrl.u32 2131351028, %v2540
    %v2547 = vor.u32 %v2545, %v2546
    %v2548 = vshll.u32 2131351028, %v2539
    %v2549 = vshrl.u32 2102212464, %v2540
    %v2550 = vor.u32 %v2548, %v2549
    %v2551 = vshll.u32 2102212464, %v2539
    %v2552 = vshrl.u32 920167782, %v2540
    %v2553 = vor.u32 %v2551, %v2552
    %v2554 = vshll.u32 920167782, %v2539
    %v2555 = vshrl.u32 1326507024, %v2540
    %v2556 = vor.u32 %v2554, %v2555
    %vm2557 = vcmp.lt.s32.totalorder %v2538, 1
    %vm2558 = vcmp.lt.s32.totalorder %v2538, 2
    %vm2559 = vcmp.lt.s32.totalorder %v2538, 3
    %vm2560 = vcmp.lt.s32.totalorder %v2538, 4
    %v2561 = vsel %vm2557, %v2541, %v2544
    %v2562 = vsel %vm2560, %v2550, 2102212464
    %v2563 = vsel %vm2559, %v2547, %v2562
    %v2564 = vsel %vm2558, %v2561, %v2563
    %v2565 = vsel %vm2557, %v2544, %v2547
    %v2566 = vsel %vm2560, %v2553, 920167782
    %v2567 = vsel %vm2559, %v2550, %v2566
    %v2568 = vsel %vm2558, %v2565, %v2567
    %v2569 = vsel %vm2557, %v2547, %v2550
    %v2570 = vsel %vm2560, %v2556, 1326507024
    %v2571 = vsel %vm2559, %v2553, %v2570
    %v2572 = vsel %vm2558, %v2569, %v2571
    %v2573 = vshll.u32 %v2533, 8
    %v2574 = vand.u32 %v2573, 65535
    %v2575 = vshrl.u32 %v2573, 16
    %v2576 = vand.u32 %v2572, 65535
    %v2577 = vshrl.u32 %v2572, 16
    %v2578 = vmul.u32 %v2574, %v2576
    %v2579 = vmul.u32 %v2574, %v2577
    %v2580 = vmul.u32 %v2575, %v2576
    %v2581 = vmul.u32 %v2575, %v2577
    %v2582 = vshll.u32 %v2579, 16
    %v2583 = vshrl.u32 %v2579, 16
    %v2584 = vshll.u32 %v2580, 16
    %v2585 = vshrl.u32 %v2580, 16
    %vm2586 = vc.u32 %v2578, %v2582
    %v2587 = vsel %vm2586, 1, 0
    %v2588 = vadd.s32 %v2578, %v2582
    %v2589 = vadd.s32 %v2581, %v2587
    %vm2590 = vc.u32 %v2588, %v2584
    %v2591 = vsel %vm2590, 1, 0
    %v2592 = vadd.s32 %v2588, %v2584
    %v2593 = vadd.s32 %v2589, %v2591
    %v2594 = vadd.s32 %v2593, %v2583
    %v2595 = vadd.s32 %v2594, %v2585
    %v2596 = vand.u32 %v2573, 65535
    %v2597 = vshrl.u32 %v2573, 16
    %v2598 = vand.u32 %v2568, 65535
    %v2599 = vshrl.u32 %v2568, 16
    %v2600 = vmul.u32 %v2596, %v2598
    %v2601 = vmul.u32 %v2596, %v2599
    %v2602 = vmul.u32 %v2597, %v2598
    %v2603 = vmul.u32 %v2597, %v2599
    %v2604 = vshll.u32 %v2601, 16
    %v2605 = vshrl.u32 %v2601, 16
    %v2606 = vshll.u32 %v2602, 16
    %v2607 = vshrl.u32 %v2602, 16
    %vm2608 = vc.u32 %v2600, %v2604
    %v2609 = vsel %vm2608, 1, 0
    %v2610 = vadd.s32 %v2600, %v2604
    %v2611 = vadd.s32 %v2603, %v2609
    %vm2612 = vc.u32 %v2610, %v2606
    %v2613 = vsel %vm2612, 1, 0
    %v2614 = vadd.s32 %v2610, %v2606
    %v2615 = vadd.s32 %v2611, %v2613
    %v2616 = vadd.s32 %v2615, %v2605
    %v2617 = vadd.s32 %v2616, %v2607
    %v2618 = vmul.u32 %v2573, %v2564
    %v2619 = vadd.s32 %v2595, %v2614
    %vm2620 = vc.u32 %v2595, %v2614
    %v2621 = vadd.s32 %v2617, 1
    %v2622 = vsel %vm2620, %v2621, %v2617
    %v2623 = vadd.s32 %v2618, %v2622
    %v2624 = vadd.s32 %v2623, 536870912
    %v2625 = vshrl.u32 %v2624, 30
    %v2626 = vshll.u32 %v2625, 30
    %v2627 = vsub.s32 %v2623, %v2626
    %vm2628 = vcmp.lt.s32.totalorder %v2627, 0
    %v2629 = vsub.s32 0, %v2627
    %v2630 = vsel %vm2628, %v2629, %v2627
    %v2631 = vclz %v2630
    %v2632 = vsub.s32 %v2631, 2
    %vm2633 = vcmp.gt.s32.totalorder 0, %v2632
    %v2634 = vsel %vm2633, 0, %v2632
    %v2635 = vsub.s32 32, %v2634
    %v2636 = vshll.u32 %v2627, %v2634
    %v2637 = vshrl.u32 %v2619, %v2635
    %v2638 = vor.u32 %v2636, %v2637
    %v2639 = vsub.s32 4294967266, %v2634
    %v2640 = vadd.s32 %v2639, 127
    %v2641 = vshll.u32 %v2640, 23
    %v2642 = vor.u32 4788187, %v2641
    %v2643 = vand.u32 2147483647, %v2642
    %v2645 = vcvt.s32.f32 %v2638
    %v2646 = vmul.f32 %v2645, %v2643
    %v2647 = vxor.u32 %v2646, 2147483648
    %v2648 = vsel %vm2527, %v2647, %v2646
    %v2649 = vsub.s32 4, %v2625
    %v2650 = vsel %vm2527, %v2649, %v2625
    %v2651 = vsel %vm2526, %v507, %v2648
    %v2652 = vsel %vm2526, 0, %v2650
    %v2653 = vmul.f32 %v2651, %v2651
    %v2654 = vmul.f32 %v2653, -0.001358992
    %v2655 = vadd.f32 %v2654, 0.041655596
    %v2656 = vmul.f32 %v2653, %v2655
    %v2657 = vadd.f32 %v2656, -0.4999988
    %v2658 = vmul.f32 %v2653, %v2657
    %v2659 = vadd.f32 1.0, %v2658
    %v2660 = vmul.f32 %v2651, %v2651
    %v2661 = vmul.f32 %v2660, -0.00019511016
    %v2662 = vadd.f32 %v2661, 0.008332121
    %v2663 = vmul.f32 %v2660, %v2662
    %v2664 = vadd.f32 %v2663, -0.16666654
    %v2665 = vmul.f32 %v2660, %v2664
    %v2666 = vadd.f32 %v2665, 1.0
    %v2667 = vmul.f32 %v2666, %v2651
    %vm2668 = vweird.f32 %v507
    %v2669 = vadd.s32 %v2652, 3
    %v2670 = vand.u32 %v2669, 3
    %vm2671 = vcmp.lt.s32.totalorder %v2670, 2
    %vm2672 = vcmp.eq.s32.totalorder %v2670, 0
    %v2673 = vxor.u32 %v2667, 2147483648
    %v2674 = vsel %vm2672, %v2659, %v2673
    %vm2675 = vcmp.eq.s32.totalorder %v2670, 2
    %v2676 = vxor.u32 %v2659, 2147483648
    %v2677 = vsel %vm2675, %v2676, %v2667
    %v2678 = vsel %vm2671, %v2674, %v2677
    %v2679 = vsel %vm2668, nan, %v2678
    %v2680 = vand.u32 2147483647, %v508
    %vm2681 = vcmp.le.f32.partialorder %v2680, 0.7853982
    %vm2682 = vcmp.lt.s32.totalorder %v508, 0
    %v2683 = vand.u32 %v508, 2139095040
    %v2684 = vshrl.u32 %v2683, 23
    %v2685 = vsub.s32 %v2684, 127
    %v2686 = vand.u32 2147483647, %v508
    %v2687 = vand.u32 %v2686, 8388607
    %v2688 = vor.u32 %v2687, 8388608
    %v2689 = vsub.s32 0, %v2688
    %v2690 = vadd.s32 %v2685, 1
    %vm2691 = vcmp.gt.s32.totalorder %v2690, 0
    %v2692 = vsel %vm2691, %v2690, 0
    %v2693 = vshrl.u32 %v2692, 5
    %v2694 = vand.u32 %v2692, 31
    %v2695 = vsub.s32 32, %v2694
    %v2696 = vshrl.u32 683565275, %v2695
    %v2697 = vshll.u32 683565275, %v2694
    %v2698 = vshrl.u32 2475754826, %v2695
    %v2699 = vor.u32 %v2697, %v2698
    %v2700 = vshll.u32 2475754826, %v2694
    %v2701 = vshrl.u32 2131351028, %v2695
    %v2702 = vor.u32 %v2700, %v2701
    %v2703 = vshll.u32 2131351028, %v2694
    %v2704 = vshrl.u32 2102212464, %v2695
    %v2705 = vor.u32 %v2703, %v2704
    %v2706 = vshll.u32 2102212464, %v2694
    %v2707 = vshrl.u32 920167782, %v2695
    %v2708 = vor.u32 %v2706, %v2707
    %v2709 = vshll.u32 920167782, %v2694
    %v2710 = vshrl.u32 1326507024, %v2695
    %v2711 = vor.u32 %v2709, %v2710
    %vm2712 = vcmp.lt.s32.totalorder %v2693, 1
    %vm2713 = vcmp.lt.s32.totalorder %v2693, 2
    %vm2714 = vcmp.lt.s32.totalorder %v2693, 3
    %vm2715 = vcmp.lt.s32.totalorder %v2693, 4
    %v2716 = vsel %vm2712, %v2696, %v2699
    %v2717 = vsel %vm2715, %v2705, 2102212464
    %v2718 = vsel %vm2714, %v2702, %v2717
    %v2719 = vsel %vm2713, %v2716, %v2718
    %v2720 = vsel %vm2712, %v2699, %v2702
    %v2721 = vsel %vm2715, %v2708, 920167782
    %v2722 = vsel %vm2714, %v2705, %v2721
    %v2723 = vsel %vm2713, %v2720, %v2722
    %v2724 = vsel %vm2712, %v2702, %v2705
    %v2725 = vsel %vm2715, %v2711, 1326507024
    %v2726 = vsel %vm2714, %v2708, %v2725
    %v2727 = vsel %vm2713, %v2724, %v2726
    %v2728 = vshll.u32 %v2688, 8
    %v2729 = vand.u32 %v2728, 65535
    %v2730 = vshrl.u32 %v2728, 16
    %v2731 = vand.u32 %v2727, 65535
    %v2732 = vshrl.u32 %v2727, 16
    %v2733 = vmul.u32 %v2729, %v2731
    %v2734 = vmul.u32 %v2729, %v2732
    %v2735 = vmul.u32 %v2730, %v2731
    %v2736 = vmul.u32 %v2730, %v2732
    %v2737 = vshll.u32 %v2734, 16
    %v2738 = vshrl.u32 %v2734, 16
    %v2739 = vshll.u32 %v2735, 16
    %v2740 = vshrl.u32 %v2735, 16
    %vm2741 = vc.u32 %v2733, %v2737
    %v2742 = vsel %vm2741, 1, 0
    %v2743 = vadd.s32 %v2733, %v2737
    %v2744 = vadd.s32 %v2736, %v2742
    %vm2745 = vc.u32 %v2743, %v2739
    %v2746 = vsel %vm2745, 1, 0
    %v2747 = vadd.s32 %v2743, %v2739
    %v2748 = vadd.s32 %v2744, %v2746
    %v2749 = vadd.s32 %v2748, %v2738
    %v2750 = vadd.s32 %v2749, %v2740
    %v2751 = vand.u32 %v2728, 65535
    %v2752 = vshrl.u32 %v2728, 16
    %v2753 = vand.u32 %v2723, 65535
    %v2754 = vshrl.u32 %v2723, 16
    %v2755 = vmul.u32 %v2751, %v2753
    %v2756 = vmul.u32 %v2751, %v2754
    %v2757 = vmul.u32 %v2752, %v2753
    %v2758 = vmul.u32 %v2752, %v2754
    %v2759 = vshll.u32 %v2756, 16
    %v2760 = vshrl.u32 %v2756, 16
    %v2761 = vshll.u32 %v2757, 16
    %v2762 = vshrl.u32 %v2757, 16
    %vm2763 = vc.u32 %v2755, %v2759
    %v2764 = vsel %vm2763, 1, 0
    %v2765 = vadd.s32 %v2755, %v2759
    %v2766 = vadd.s32 %v2758, %v2764
    %vm2767 = vc.u32 %v2765, %v2761
    %v2768 = vsel %vm2767, 1, 0
    %v2769 = vadd.s32 %v2765, %v2761
    %v2770 = vadd.s32 %v2766, %v2768
    %v2771 = vadd.s32 %v2770, %v2760
    %v2772 = vadd.s32 %v2771, %v2762
    %v2773 = vmul.u32 %v2728, %v2719
    %v2774 = vadd.s32 %v2750, %v2769
    %vm2775 = vc.u32 %v2750, %v2769
    %v2776 = vadd.s32 %v2772, 1
    %v2777 = vsel %vm2775, %v2776, %v2772
    %v2778 = vadd.s32 %v2773, %v2777
    %v2779 = vadd.s32 %v2778, 536870912
    %v2780 = vshrl.u32 %v2779, 30
    %v2781 = vshll.u32 %v2780, 30
    %v2782 = vsub.s32 %v2778, %v2781
    %vm2783 = vcmp.lt.s32.totalorder %v2782, 0
    %v2784 = vsub.s32 0, %v2782
    %v2785 = vsel %vm2783, %v2784, %v2782
    %v2786 = vclz %v2785
    %v2787 = vsub.s32 %v2786, 2
    %vm2788 = vcmp.gt.s32.totalorder 0, %v2787
    %v2789 = vsel %vm2788, 0, %v2787
    %v2790 = vsub.s32 32, %v2789
    %v2791 = vshll.u32 %v2782, %v2789
    %v2792 = vshrl.u32 %v2774, %v2790
    %v2793 = vor.u32 %v2791, %v2792
    %v2794 = vsub.s32 4294967266, %v2789
    %v2795 = vadd.s32 %v2794, 127
    %v2796 = vshll.u32 %v2795, 23
    %v2797 = vor.u32 4788187, %v2796
    %v2798 = vand.u32 2147483647, %v2797
    %v2800 = vcvt.s32.f32 %v2793
    %v2801 = vmul.f32 %v2800, %v2798
    %v2802 = vxor.u32 %v2801, 2147483648
    %v2803 = vsel %vm2682, %v2802, %v2801
    %v2804 = vsub.s32 4, %v2780
    %v2805 = vsel %vm2682, %v2804, %v2780
    %v2806 = vsel %vm2681, %v508, %v2803
    %v2807 = vsel %vm2681, 0, %v2805
    %v2808 = vmul.f32 %v2806, %v2806
    %v2809 = vmul.f32 %v2808, -0.001358992
    %v2810 = vadd.f32 %v2809, 0.041655596
    %v2811 = vmul.f32 %v2808, %v2810
    %v2812 = vadd.f32 %v2811, -0.4999988
    %v2813 = vmul.f32 %v2808, %v2812
    %v2814 = vadd.f32 1.0, %v2813
    %v2815 = vmul.f32 %v2806, %v2806
    %v2816 = vmul.f32 %v2815, -0.00019511016
    %v2817 = vadd.f32 %v2816, 0.008332121
    %v2818 = vmul.f32 %v2815, %v2817
    %v2819 = vadd.f32 %v2818, -0.16666654
    %v2820 = vmul.f32 %v2815, %v2819
    %v2821 = vadd.f32 %v2820, 1.0
    %v2822 = vmul.f32 %v2821, %v2806
    %vm2823 = vweird.f32 %v508
    %v2824 = vadd.s32 %v2807, 3
    %v2825 = vand.u32 %v2824, 3
    %vm2826 = vcmp.lt.s32.totalorder %v2825, 2
    %vm2827 = vcmp.eq.s32.totalorder %v2825, 0
    %v2828 = vxor.u32 %v2822, 2147483648
    %v2829 = vsel %vm2827, %v2814, %v2828
    %vm2830 = vcmp.eq.s32.totalorder %v2825, 2
    %v2831 = vxor.u32 %v2814, 2147483648
    %v2832 = vsel %vm2830, %v2831, %v2822
    %v2833 = vsel %vm2826, %v2829, %v2832
    %v2834 = vsel %vm2823, nan, %v2833
    %v2835 = vand.u32 2147483647, %v509
    %vm2836 = vcmp.le.f32.partialorder %v2835, 0.7853982
    %vm2837 = vcmp.lt.s32.totalorder %v509, 0
    %v2838 = vand.u32 %v509, 2139095040
    %v2839 = vshrl.u32 %v2838, 23
    %v2840 = vsub.s32 %v2839, 127
    %v2841 = vand.u32 2147483647, %v509
    %v2842 = vand.u32 %v2841, 8388607
    %v2843 = vor.u32 %v2842, 8388608
    %v2844 = vsub.s32 0, %v2843
    %v2845 = vadd.s32 %v2840, 1
    %vm2846 = vcmp.gt.s32.totalorder %v2845, 0
    %v2847 = vsel %vm2846, %v2845, 0
    %v2848 = vshrl.u32 %v2847, 5
    %v2849 = vand.u32 %v2847, 31
    %v2850 = vsub.s32 32, %v2849
    %v2851 = vshrl.u32 683565275, %v2850
    %v2852 = vshll.u32 683565275, %v2849
    %v2853 = vshrl.u32 2475754826, %v2850
    %v2854 = vor.u32 %v2852, %v2853
    %v2855 = vshll.u32 2475754826, %v2849
    %v2856 = vshrl.u32 2131351028, %v2850
    %v2857 = vor.u32 %v2855, %v2856
    %v2858 = vshll.u32 2131351028, %v2849
    %v2859 = vshrl.u32 2102212464, %v2850
    %v2860 = vor.u32 %v2858, %v2859
    %v2861 = vshll.u32 2102212464, %v2849
    %v2862 = vshrl.u32 920167782, %v2850
    %v2863 = vor.u32 %v2861, %v2862
    %v2864 = vshll.u32 920167782, %v2849
    %v2865 = vshrl.u32 1326507024, %v2850
    %v2866 = vor.u32 %v2864, %v2865
    %vm2867 = vcmp.lt.s32.totalorder %v2848, 1
    %vm2868 = vcmp.lt.s32.totalorder %v2848, 2
    %vm2869 = vcmp.lt.s32.totalorder %v2848, 3
    %vm2870 = vcmp.lt.s32.totalorder %v2848, 4
    %v2871 = vsel %vm2867, %v2851, %v2854
    %v2872 = vsel %vm2870, %v2860, 2102212464
    %v2873 = vsel %vm2869, %v2857, %v2872
    %v2874 = vsel %vm2868, %v2871, %v2873
    %v2875 = vsel %vm2867, %v2854, %v2857
    %v2876 = vsel %vm2870, %v2863, 920167782
    %v2877 = vsel %vm2869, %v2860, %v2876
    %v2878 = vsel %vm2868, %v2875, %v2877
    %v2879 = vsel %vm2867, %v2857, %v2860
    %v2880 = vsel %vm2870, %v2866, 1326507024
    %v2881 = vsel %vm2869, %v2863, %v2880
    %v2882 = vsel %vm2868, %v2879, %v2881
    %v2883 = vshll.u32 %v2843, 8
    %v2884 = vand.u32 %v2883, 65535
    %v2885 = vshrl.u32 %v2883, 16
    %v2886 = vand.u32 %v2882, 65535
    %v2887 = vshrl.u32 %v2882, 16
    %v2888 = vmul.u32 %v2884, %v2886
    %v2889 = vmul.u32 %v2884, %v2887
    %v2890 = vmul.u32 %v2885, %v2886
    %v2891 = vmul.u32 %v2885, %v2887
    %v2892 = vshll.u32 %v2889, 16
    %v2893 = vshrl.u32 %v2889, 16
    %v2894 = vshll.u32 %v2890, 16
    %v2895 = vshrl.u32 %v2890, 16
    %vm2896 = vc.u32 %v2888, %v2892
    %v2897 = vsel %vm2896, 1, 0
    %v2898 = vadd.s32 %v2888, %v2892
    %v2899 = vadd.s32 %v2891, %v2897
    %vm2900 = vc.u32 %v2898, %v2894
    %v2901 = vsel %vm2900, 1, 0
    %v2902 = vadd.s32 %v2898, %v2894
    %v2903 = vadd.s32 %v2899, %v2901
    %v2904 = vadd.s32 %v2903, %v2893
    %v2905 = vadd.s32 %v2904, %v2895
    %v2906 = vand.u32 %v2883, 65535
    %v2907 = vshrl.u32 %v2883, 16
    %v2908 = vand.u32 %v2878, 65535
    %v2909 = vshrl.u32 %v2878, 16
    %v2910 = vmul.u32 %v2906, %v2908
    %v2911 = vmul.u32 %v2906, %v2909
    %v2912 = vmul.u32 %v2907, %v2908
    %v2913 = vmul.u32 %v2907, %v2909
    %v2914 = vshll.u32 %v2911, 16
    %v2915 = vshrl.u32 %v2911, 16
    %v2916 = vshll.u32 %v2912, 16
    %v2917 = vshrl.u32 %v2912, 16
    %vm2918 = vc.u32 %v2910, %v2914
    %v2919 = vsel %vm2918, 1, 0
    %v2920 = vadd.s32 %v2910, %v2914
    %v2921 = vadd.s32 %v2913, %v2919
    %vm2922 = vc.u32 %v2920, %v2916
    %v2923 = vsel %vm2922, 1, 0
    %v2924 = vadd.s32 %v2920, %v2916
    %v2925 = vadd.s32 %v2921, %v2923
    %v2926 = vadd.s32 %v2925, %v2915
    %v2927 = vadd.s32 %v2926, %v2917
    %v2928 = vmul.u32 %v2883, %v2874
    %v2929 = vadd.s32 %v2905, %v2924
    %vm2930 = vc.u32 %v2905, %v2924
    %v2931 = vadd.s32 %v2927, 1
    %v2932 = vsel %vm2930, %v2931, %v2927
    %v2933 = vadd.s32 %v2928, %v2932
    %v2934 = vadd.s32 %v2933, 536870912
    %v2935 = vshrl.u32 %v2934, 30
    %v2936 = vshll.u32 %v2935, 30
    %v2937 = vsub.s32 %v2933, %v2936
    %vm2938 = vcmp.lt.s32.totalorder %v2937, 0
    %v2939 = vsub.s32 0, %v2937
    %v2940 = vsel %vm2938, %v2939, %v2937
    %v2941 = vclz %v2940
    %v2942 = vsub.s32 %v2941, 2
    %vm2943 = vcmp.gt.s32.totalorder 0, %v2942
    %v2944 = vsel %vm2943, 0, %v2942
    %v2945 = vsub.s32 32, %v2944
    %v2946 = vshll.u32 %v2937, %v2944
    %v2947 = vshrl.u32 %v2929, %v2945
    %v2948 = vor.u32 %v2946, %v2947
    %v2949 = vsub.s32 4294967266, %v2944
    %v2950 = vadd.s32 %v2949, 127
    %v2951 = vshll.u32 %v2950, 23
    %v2952 = vor.u32 4788187, %v2951
    %v2953 = vand.u32 2147483647, %v2952
    %v2955 = vcvt.s32.f32 %v2948
    %v2956 = vmul.f32 %v2955, %v2953
    %v2957 = vxor.u32 %v2956, 2147483648
    %v2958 = vsel %vm2837, %v2957, %v2956
    %v2959 = vsub.s32 4, %v2935
    %v2960 = vsel %vm2837, %v2959, %v2935
    %v2961 = vsel %vm2836, %v509, %v2958
    %v2962 = vsel %vm2836, 0, %v2960
    %v2963 = vmul.f32 %v2961, %v2961
    %v2964 = vmul.f32 %v2963, -0.001358992
    %v2965 = vadd.f32 %v2964, 0.041655596
    %v2966 = vmul.f32 %v2963, %v2965
    %v2967 = vadd.f32 %v2966, -0.4999988
    %v2968 = vmul.f32 %v2963, %v2967
    %v2969 = vadd.f32 1.0, %v2968
    %v2970 = vmul.f32 %v2961, %v2961
    %v2971 = vmul.f32 %v2970, -0.00019511016
    %v2972 = vadd.f32 %v2971, 0.008332121
    %v2973 = vmul.f32 %v2970, %v2972
    %v2974 = vadd.f32 %v2973, -0.16666654
    %v2975 = vmul.f32 %v2970, %v2974
    %v2976 = vadd.f32 %v2975, 1.0
    %v2977 = vmul.f32 %v2976, %v2961
    %vm2978 = vweird.f32 %v509
    %v2979 = vadd.s32 %v2962, 3
    %v2980 = vand.u32 %v2979, 3
    %vm2981 = vcmp.lt.s32.totalorder %v2980, 2
    %vm2982 = vcmp.eq.s32.totalorder %v2980, 0
    %v2983 = vxor.u32 %v2977, 2147483648
    %v2984 = vsel %vm2982, %v2969, %v2983
    %vm2985 = vcmp.eq.s32.totalorder %v2980, 2
    %v2986 = vxor.u32 %v2969, 2147483648
    %v2987 = vsel %vm2985, %v2986, %v2977
    %v2988 = vsel %vm2981, %v2984, %v2987
    %v2989 = vsel %vm2978, nan, %v2988
    %v2990 = vld [vmem:[%s0] sm:$0x3]
    %v2991 = vmul.f32 %v2990, %v2990
    %vm2992 = vcmask 254976
    %v2993 = vsel %vm2992, %v2991, 0.0
    %2994 = vadd.xlane.f32.xlu0 %v2993
    %v2995 = vpop.xlane.xlu0 %2994
    %v2996 = vrcp.pop 32.0
    %v2997 = vmul.f32 32.0, %v2996
    %v2998 = vsub.f32 1.0, %v2997
    %v2999 = vmul.f32 %v2996, %v2998
    %v3000 = vadd.f32 %v2996, %v2999
    %vm3001 = vweird.f32 %v2996
    %v3002 = vsel %vm3001, %v2996, %v3000
    %v3003 = vmul.f32 %v2995, %v3002
    %v3004 = vadd.f32 %v3003, 1e-08
    %v3005 = vrsqrt.pop %v3004
    %v3006 = vmul.f32 %v3005, %v3004
    %v3007 = vmul.f32 %v3006, %v3005
    %v3008 = vmul.f32 0.5, %v3007
    %v3009 = vsub.f32 1.5, %v3008
    %v3010 = vmul.f32 %v3005, %v3009
    %vm3011 = vweird.f32 %v3004
    %vm3012 = vweird.f32 %v3005
    %vm3013 = vmor %vm3011, %vm3012
    %v3014 = vsel %vm3013, %v3005, %v3010
    %v3015 = vmul.f32 %v2990, %v3014
    %v3016 = vld [vmem:[#allocation2] sm:$0xff]
    %v3017 = vld [vmem:[#allocation2 + $0x8] sm:$0xff]
    %v3018 = vld [vmem:[#allocation2 + $0x10] sm:$0xff]
    %v3019 = vld [vmem:[#allocation2 + $0x18] sm:$0xff]
    %v3020 = vld [vmem:[%s3] sm:$0x1]
    %v3022 = vperm.slane %v3020, 0
    %vm3024 = vcmask 261120
    %v3026 = vsel %vm3024, %v3015, 0
    %3028 = vmatpush.msra.mxu0 0.0
    %3029 = vmatpush.msra.mxu0 0.0
    %3030 = vmatpush.msra.mxu0 0.0
    %3031 = vmatpush.msra.mxu0 0.0
    %3032 = vmatpush.msra.mxu0 0.0
    %3033 = vmatpush.msra.mxu0 0.0
    %3034 = vmatpush.msra.mxu0 0.0
    %3035 = vmatpush.msra.mxu0 0.0
    %3036 = vmatpush.msra.mxu0 0.0
    %3037 = vmatpush.msra.mxu0 0.0
    %3038 = vmatpush.msra.mxu0 0.0
    %3039 = vmatpush.msra.mxu0 0.0
    %3040 = vmatpush.msra.mxu0 %v3019
    %3041 = vmatpush.msra.mxu0 %v3018
    %3042 = vmatpush.msra.mxu0 %v3017
    %3043 = vmatpush.msra.mxu0 %v3016
    %3044 = vmatmul.f32.gmra.mxu0 %v3026
    %v3045 = vpop.f32.mrf.mxu0
    %v3046 = vadd.f32 %v3022, %v3045
    %3047 = vdwg.mxu0
    %vm3048 = vcmp.ge.f32.partialorder %v3046, 0.0
    %v3049 = vmul.f32 %v3046, 0.2
    %v3050 = vsel %vm3048, %v3046, %v3049
    %v3051 = vmul.f32 %v3050, 1.4142135
    %s3052 = scalar_lea.vmem [#allocation2], 32
    %v3053 = vld [vmem:[%s3052] sm:$0xff]
    %v3054 = vld [vmem:[%s3052 + $0x8] sm:$0xff]
    %v3055 = vld [vmem:[%s3052 + $0x10] sm:$0xff]
    %v3056 = vld [vmem:[%s3052 + $0x18] sm:$0xff]
    %s3057 = scalar_lea.vmem %s3, 1
    %v3058 = vld [vmem:[%s3057] sm:$0x1]
    %v3060 = vperm.slane %v3058, 0
    %v3063 = vsel %vm3024, %v3051, 0
    %3065 = vmatpush.msra.mxu0 0.0
    %3066 = vmatpush.msra.mxu0 0.0
    %3067 = vmatpush.msra.mxu0 0.0
    %3068 = vmatpush.msra.mxu0 0.0
    %3069 = vmatpush.msra.mxu0 0.0
    %3070 = vmatpush.msra.mxu0 0.0
    %3071 = vmatpush.msra.mxu0 0.0
    %3072 = vmatpush.msra.mxu0 0.0
    %3073 = vmatpush.msra.mxu0 0.0
    %3074 = vmatpush.msra.mxu0 0.0
    %3075 = vmatpush.msra.mxu0 0.0
    %3076 = vmatpush.msra.mxu0 0.0
    %3077 = vmatpush.msra.mxu0 %v3056
    %3078 = vmatpush.msra.mxu0 %v3055
    %3079 = vmatpush.msra.mxu0 %v3054
    %3080 = vmatpush.msra.mxu0 %v3053
    %3081 = vmatmul.f32.gmra.mxu0 %v3063
    %v3082 = vpop.f32.mrf.mxu0
    %v3083 = vadd.f32 %v3060, %v3082
    %3084 = vdwg.mxu0
    %vm3085 = vcmp.ge.f32.partialorder %v3083, 0.0
    %v3086 = vmul.f32 %v3083, 0.2
    %v3087 = vsel %vm3085, %v3083, %v3086
    %v3088 = vmul.f32 %v3087, 1.4142135
    %s3089 = scalar_lea.vmem [#allocation2], 64
    %v3090 = vld [vmem:[%s3089] sm:$0xff]
    %v3091 = vld [vmem:[%s3089 + $0x8] sm:$0xff]
    %v3092 = vld [vmem:[%s3089 + $0x10] sm:$0xff]
    %v3093 = vld [vmem:[%s3089 + $0x18] sm:$0xff]
    %s3094 = scalar_lea.vmem %s3, 2
    %v3095 = vld [vmem:[%s3094] sm:$0x1]
    %v3097 = vperm.slane %v3095, 0
    %v3100 = vsel %vm3024, %v3088, 0
    %3102 = vmatpush.msra.mxu0 0.0
    %3103 = vmatpush.msra.mxu0 0.0
    %3104 = vmatpush.msra.mxu0 0.0
    %3105 = vmatpush.msra.mxu0 0.0
    %3106 = vmatpush.msra.mxu0 0.0
    %3107 = vmatpush.msra.mxu0 0.0
    %3108 = vmatpush.msra.mxu0 0.0
    %3109 = vmatpush.msra.mxu0 0.0
    %3110 = vmatpush.msra.mxu0 0.0
    %3111 = vmatpush.msra.mxu0 0.0
    %3112 = vmatpush.msra.mxu0 0.0
    %3113 = vmatpush.msra.mxu0 0.0
    %3114 = vmatpush.msra.mxu0 %v3093
    %3115 = vmatpush.msra.mxu0 %v3092
    %3116 = vmatpush.msra.mxu0 %v3091
    %3117 = vmatpush.msra.mxu0 %v3090
    %3118 = vmatmul.f32.gmra.mxu0 %v3100
    %v3119 = vpop.f32.mrf.mxu0
    %v3120 = vadd.f32 %v3097, %v3119
    %3121 = vdwg.mxu0
    %vm3122 = vcmp.ge.f32.partialorder %v3120, 0.0
    %v3123 = vmul.f32 %v3120, 0.2
    %v3124 = vsel %vm3122, %v3120, %v3123
    %v3125 = vmul.f32 %v3124, 1.4142135
    %s3126 = scalar_lea.vmem [#allocation2], 96
    %v3127 = vld [vmem:[%s3126] sm:$0xff]
    %v3128 = vld [vmem:[%s3126 + $0x8] sm:$0xff]
    %v3129 = vld [vmem:[%s3126 + $0x10] sm:$0xff]
    %v3130 = vld [vmem:[%s3126 + $0x18] sm:$0xff]
    %s3131 = scalar_lea.vmem %s3, 3
    %v3132 = vld [vmem:[%s3131] sm:$0x1]
    %v3134 = vperm.slane %v3132, 0
    %v3137 = vsel %vm3024, %v3125, 0
    %3139 = vmatpush.msra.mxu0 0.0
    %3140 = vmatpush.msra.mxu0 0.0
    %3141 = vmatpush.msra.mxu0 0.0
    %3142 = vmatpush.msra.mxu0 0.0
    %3143 = vmatpush.msra.mxu0 0.0
    %3144 = vmatpush.msra.mxu0 0.0
    %3145 = vmatpush.msra.mxu0 0.0
    %3146 = vmatpush.msra.mxu0 0.0
    %3147 = vmatpush.msra.mxu0 0.0
    %3148 = vmatpush.msra.mxu0 0.0
    %3149 = vmatpush.msra.mxu0 0.0
    %3150 = vmatpush.msra.mxu0 0.0
    %3151 = vmatpush.msra.mxu0 %v3130
    %3152 = vmatpush.msra.mxu0 %v3129
    %3153 = vmatpush.msra.mxu0 %v3128
    %3154 = vmatpush.msra.mxu0 %v3127
    %3155 = vmatmul.f32.gmra.mxu0 %v3137
    %v3156 = vpop.f32.mrf.mxu0
    %v3157 = vadd.f32 %v3134, %v3156
    %3158 = vdwg.mxu0
    %vm3159 = vcmp.ge.f32.partialorder %v3157, 0.0
    %v3160 = vmul.f32 %v3157, 0.2
    %v3161 = vsel %vm3159, %v3157, %v3160
    %v3162 = vmul.f32 %v3161, 1.4142135
    %s3163 = scalar_lea.vmem [#allocation2], 128
    %v3164 = vld [vmem:[%s3163] sm:$0xff]
    %v3165 = vld [vmem:[%s3163 + $0x8] sm:$0xff]
    %v3166 = vld [vmem:[%s3163 + $0x10] sm:$0xff]
    %v3167 = vld [vmem:[%s3163 + $0x18] sm:$0xff]
    %s3168 = scalar_lea.vmem %s3, 4
    %v3169 = vld [vmem:[%s3168] sm:$0x1]
    %v3171 = vperm.slane %v3169, 0
    %v3174 = vsel %vm3024, %v3162, 0
    %3176 = vmatpush.msra.mxu0 0.0
    %3177 = vmatpush.msra.mxu0 0.0
    %3178 = vmatpush.msra.mxu0 0.0
    %3179 = vmatpush.msra.mxu0 0.0
    %3180 = vmatpush.msra.mxu0 0.0
    %3181 = vmatpush.msra.mxu0 0.0
    %3182 = vmatpush.msra.mxu0 0.0
    %3183 = vmatpush.msra.mxu0 0.0
    %3184 = vmatpush.msra.mxu0 0.0
    %3185 = vmatpush.msra.mxu0 0.0
    %3186 = vmatpush.msra.mxu0 0.0
    %3187 = vmatpush.msra.mxu0 0.0
    %3188 = vmatpush.msra.mxu0 %v3167
    %3189 = vmatpush.msra.mxu0 %v3166
    %3190 = vmatpush.msra.mxu0 %v3165
    %3191 = vmatpush.msra.mxu0 %v3164
    %3192 = vmatmul.f32.gmra.mxu0 %v3174
    %v3193 = vpop.f32.mrf.mxu0
    %v3194 = vadd.f32 %v3171, %v3193
    %3195 = vdwg.mxu0
    %vm3196 = vcmp.ge.f32.partialorder %v3194, 0.0
    %v3197 = vmul.f32 %v3194, 0.2
    %v3198 = vsel %vm3196, %v3194, %v3197
    %v3199 = vmul.f32 %v3198, 1.4142135
    %s3200 = scalar_lea.vmem [#allocation2], 160
    %v3201 = vld [vmem:[%s3200] sm:$0xff]
    %v3202 = vld [vmem:[%s3200 + $0x8] sm:$0xff]
    %v3203 = vld [vmem:[%s3200 + $0x10] sm:$0xff]
    %v3204 = vld [vmem:[%s3200 + $0x18] sm:$0xff]
    %s3205 = scalar_lea.vmem %s3, 5
    %v3206 = vld [vmem:[%s3205] sm:$0x1]
    %v3208 = vperm.slane %v3206, 0
    %v3211 = vsel %vm3024, %v3199, 0
    %3213 = vmatpush.msra.mxu0 0.0
    %3214 = vmatpush.msra.mxu0 0.0
    %3215 = vmatpush.msra.mxu0 0.0
    %3216 = vmatpush.msra.mxu0 0.0
    %3217 = vmatpush.msra.mxu0 0.0
    %3218 = vmatpush.msra.mxu0 0.0
    %3219 = vmatpush.msra.mxu0 0.0
    %3220 = vmatpush.msra.mxu0 0.0
    %3221 = vmatpush.msra.mxu0 0.0
    %3222 = vmatpush.msra.mxu0 0.0
    %3223 = vmatpush.msra.mxu0 0.0
    %3224 = vmatpush.msra.mxu0 0.0
    %3225 = vmatpush.msra.mxu0 %v3204
    %3226 = vmatpush.msra.mxu0 %v3203
    %3227 = vmatpush.msra.mxu0 %v3202
    %3228 = vmatpush.msra.mxu0 %v3201
    %3229 = vmatmul.f32.gmra.mxu0 %v3211
    %v3230 = vpop.f32.mrf.mxu0
    %v3231 = vadd.f32 %v3208, %v3230
    %3232 = vdwg.mxu0
    %vm3233 = vcmp.ge.f32.partialorder %v3231, 0.0
    %v3234 = vmul.f32 %v3231, 0.2
    %v3235 = vsel %vm3233, %v3231, %v3234
    %v3236 = vmul.f32 %v3235, 1.4142135
    %s3237 = scalar_lea.vmem [#allocation2], 192
    %v3238 = vld [vmem:[%s3237] sm:$0xff]
    %v3239 = vld [vmem:[%s3237 + $0x8] sm:$0xff]
    %v3240 = vld [vmem:[%s3237 + $0x10] sm:$0xff]
    %v3241 = vld [vmem:[%s3237 + $0x18] sm:$0xff]
    %s3242 = scalar_lea.vmem %s3, 6
    %v3243 = vld [vmem:[%s3242] sm:$0x1]
    %v3245 = vperm.slane %v3243, 0
    %v3248 = vsel %vm3024, %v3236, 0
    %3250 = vmatpush.msra.mxu0 0.0
    %3251 = vmatpush.msra.mxu0 0.0
    %3252 = vmatpush.msra.mxu0 0.0
    %3253 = vmatpush.msra.mxu0 0.0
    %3254 = vmatpush.msra.mxu0 0.0
    %3255 = vmatpush.msra.mxu0 0.0
    %3256 = vmatpush.msra.mxu0 0.0
    %3257 = vmatpush.msra.mxu0 0.0
    %3258 = vmatpush.msra.mxu0 0.0
    %3259 = vmatpush.msra.mxu0 0.0
    %3260 = vmatpush.msra.mxu0 0.0
    %3261 = vmatpush.msra.mxu0 0.0
    %3262 = vmatpush.msra.mxu0 %v3241
    %3263 = vmatpush.msra.mxu0 %v3240
    %3264 = vmatpush.msra.mxu0 %v3239
    %3265 = vmatpush.msra.mxu0 %v3238
    %3266 = vmatmul.f32.gmra.mxu0 %v3248
    %v3267 = vpop.f32.mrf.mxu0
    %v3268 = vadd.f32 %v3245, %v3267
    %3269 = vdwg.mxu0
    %vm3270 = vcmp.ge.f32.partialorder %v3268, 0.0
    %v3271 = vmul.f32 %v3268, 0.2
    %v3272 = vsel %vm3270, %v3268, %v3271
    %v3273 = vmul.f32 %v3272, 1.4142135
    %s3274 = scalar_lea.vmem [#allocation2], 224
    %v3275 = vld [vmem:[%s3274] sm:$0xff]
    %v3276 = vld [vmem:[%s3274 + $0x8] sm:$0xff]
    %v3277 = vld [vmem:[%s3274 + $0x10] sm:$0xff]
    %v3278 = vld [vmem:[%s3274 + $0x18] sm:$0xff]
    %s3279 = scalar_lea.vmem %s3, 7
    %v3280 = vld [vmem:[%s3279] sm:$0x1]
    %v3282 = vperm.slane %v3280, 0
    %v3285 = vsel %vm3024, %v3273, 0
    %3287 = vmatpush.msra.mxu0 0.0
    %3288 = vmatpush.msra.mxu0 0.0
    %3289 = vmatpush.msra.mxu0 0.0
    %3290 = vmatpush.msra.mxu0 0.0
    %3291 = vmatpush.msra.mxu0 0.0
    %3292 = vmatpush.msra.mxu0 0.0
    %3293 = vmatpush.msra.mxu0 0.0
    %3294 = vmatpush.msra.mxu0 0.0
    %3295 = vmatpush.msra.mxu0 0.0
    %3296 = vmatpush.msra.mxu0 0.0
    %3297 = vmatpush.msra.mxu0 0.0
    %3298 = vmatpush.msra.mxu0 0.0
    %3299 = vmatpush.msra.mxu0 %v3278
    %3300 = vmatpush.msra.mxu0 %v3277
    %3301 = vmatpush.msra.mxu0 %v3276
    %3302 = vmatpush.msra.mxu0 %v3275
    %3303 = vmatmul.f32.gmra.mxu0 %v3285
    %v3304 = vpop.f32.mrf.mxu0
    %v3305 = vadd.f32 %v3282, %v3304
    %3306 = vdwg.mxu0
    %vm3307 = vcmp.ge.f32.partialorder %v3305, 0.0
    %v3308 = vmul.f32 %v3305, 0.2
    %v3309 = vsel %vm3307, %v3305, %v3308
    %v3310 = vmul.f32 %v3309, 1.4142135
    %v3311 = vld [vmem:[#allocation4] sm:$0xff]
    %v3312 = vld [vmem:[#allocation4 + $0x8] sm:$0xff]
    %v3313 = vld [vmem:[#allocation4 + $0x10] sm:$0xff]
    %v3314 = vld [vmem:[#allocation4 + $0x18] sm:$0xff]
    %v3315 = vld [vmem:[#allocation4 + $0x20] sm:$0xff]
    %v3316 = vld [vmem:[#allocation4 + $0x28] sm:$0xff]
    %v3317 = vld [vmem:[#allocation4 + $0x30] sm:$0xff]
    %v3318 = vld [vmem:[#allocation4 + $0x38] sm:$0xff]
    %v3319 = vld [vmem:[#allocation4 + $0x40] sm:$0xff]
    %v3320 = vld [vmem:[#allocation4 + $0x48] sm:$0xff]
    %v3321 = vld [vmem:[#allocation4 + $0x50] sm:$0xff]
    %v3322 = vld [vmem:[#allocation4 + $0x58] sm:$0xff]
    %v3323 = vld [vmem:[#allocation4 + $0x60] sm:$0xff]
    %v3324 = vld [vmem:[#allocation4 + $0x68] sm:$0xff]
    %v3325 = vld [vmem:[#allocation4 + $0x70] sm:$0xff]
    %v3326 = vld [vmem:[#allocation4 + $0x78] sm:$0xff]
    %v3327 = vld [vmem:[#allocation4 + $0x80] sm:$0xff]
    %v3328 = vld [vmem:[#allocation4 + $0x88] sm:$0xff]
    %v3329 = vld [vmem:[#allocation4 + $0x90] sm:$0xff]
    %v3330 = vld [vmem:[#allocation4 + $0x98] sm:$0xff]
    %v3331 = vld [vmem:[%s7] sm:$0x1f]
    %v3333 = vperm.slane %v3331, 0
    %v3334 = vperm.slane %v3331, 1
    %v3335 = vperm.slane %v3331, 2
    %v3336 = vperm.slane %v3331, 3
    %v3337 = vperm.slane %v3331, 4
    %v3344 = vsel %vm3024, %v3310, 0
    %3346 = vmatpush.msra.mxu0 0.0
    %3347 = vmatpush.msra.mxu0 0.0
    %3348 = vmatpush.msra.mxu0 0.0
    %3349 = vmatpush.msra.mxu0 0.0
    %3350 = vmatpush.msra.mxu0 0.0
    %3351 = vmatpush.msra.mxu0 0.0
    %3352 = vmatpush.msra.mxu0 0.0
    %3353 = vmatpush.msra.mxu0 0.0
    %3354 = vmatpush.msra.mxu0 0.0
    %3355 = vmatpush.msra.mxu0 0.0
    %3356 = vmatpush.msra.mxu0 0.0
    %3357 = vmatpush.msra.mxu0 0.0
    %3358 = vmatpush.msra.mxu0 %v3326
    %3359 = vmatpush.msra.mxu0 %v3321
    %3360 = vmatpush.msra.mxu0 %v3316
    %3361 = vmatpush.msra.mxu0 %v3311
    %3362 = vmatmul.f32.gmra.mxu0 %v3344
    %v3363 = vpop.f32.mrf.mxu0
    %v3364 = vadd.f32 %v3333, %v3363
    %3365 = vdwg.mxu0
    %3366 = vmatpush.msra.mxu0 0.0
    %3367 = vmatpush.msra.mxu0 0.0
    %3368 = vmatpush.msra.mxu0 0.0
    %3369 = vmatpush.msra.mxu0 0.0
    %3370 = vmatpush.msra.mxu0 0.0
    %3371 = vmatpush.msra.mxu0 0.0
    %3372 = vmatpush.msra.mxu0 0.0
    %3373 = vmatpush.msra.mxu0 0.0
    %3374 = vmatpush.msra.mxu0 0.0
    %3375 = vmatpush.msra.mxu0 0.0
    %3376 = vmatpush.msra.mxu0 0.0
    %3377 = vmatpush.msra.mxu0 0.0
    %3378 = vmatpush.msra.mxu0 %v3327
    %3379 = vmatpush.msra.mxu0 %v3322
    %3380 = vmatpush.msra.mxu0 %v3317
    %3381 = vmatpush.msra.mxu0 %v3312
    %3382 = vmatmul.f32.gmra.mxu0 %v3344
    %v3383 = vpop.f32.mrf.mxu0
    %v3384 = vadd.f32 %v3334, %v3383
    %3385 = vdwg.mxu0
    %3386 = vmatpush.msra.mxu0 0.0
    %3387 = vmatpush.msra.mxu0 0.0
    %3388 = vmatpush.msra.mxu0 0.0
    %3389 = vmatpush.msra.mxu0 0.0
    %3390 = vmatpush.msra.mxu0 0.0
    %3391 = vmatpush.msra.mxu0 0.0
    %3392 = vmatpush.msra.mxu0 0.0
    %3393 = vmatpush.msra.mxu0 0.0
    %3394 = vmatpush.msra.mxu0 0.0
    %3395 = vmatpush.msra.mxu0 0.0
    %3396 = vmatpush.msra.mxu0 0.0
    %3397 = vmatpush.msra.mxu0 0.0
    %3398 = vmatpush.msra.mxu0 %v3328
    %3399 = vmatpush.msra.mxu0 %v3323
    %3400 = vmatpush.msra.mxu0 %v3318
    %3401 = vmatpush.msra.mxu0 %v3313
    %3402 = vmatmul.f32.gmra.mxu0 %v3344
    %v3403 = vpop.f32.mrf.mxu0
    %v3404 = vadd.f32 %v3335, %v3403
    %3405 = vdwg.mxu0
    %3406 = vmatpush.msra.mxu0 0.0
    %3407 = vmatpush.msra.mxu0 0.0
    %3408 = vmatpush.msra.mxu0 0.0
    %3409 = vmatpush.msra.mxu0 0.0
    %3410 = vmatpush.msra.mxu0 0.0
    %3411 = vmatpush.msra.mxu0 0.0
    %3412 = vmatpush.msra.mxu0 0.0
    %3413 = vmatpush.msra.mxu0 0.0
    %3414 = vmatpush.msra.mxu0 0.0
    %3415 = vmatpush.msra.mxu0 0.0
    %3416 = vmatpush.msra.mxu0 0.0
    %3417 = vmatpush.msra.mxu0 0.0
    %3418 = vmatpush.msra.mxu0 %v3329
    %3419 = vmatpush.msra.mxu0 %v3324
    %3420 = vmatpush.msra.mxu0 %v3319
    %3421 = vmatpush.msra.mxu0 %v3314
    %3422 = vmatmul.f32.gmra.mxu0 %v3344
    %v3423 = vpop.f32.mrf.mxu0
    %v3424 = vadd.f32 %v3336, %v3423
    %3425 = vdwg.mxu0
    %3426 = vmatpush.msra.mxu0 0.0
    %3427 = vmatpush.msra.mxu0 0.0
    %3428 = vmatpush.msra.mxu0 0.0
    %3429 = vmatpush.msra.mxu0 0.0
    %3430 = vmatpush.msra.mxu0 0.0
    %3431 = vmatpush.msra.mxu0 0.0
    %3432 = vmatpush.msra.mxu0 0.0
    %3433 = vmatpush.msra.mxu0 0.0
    %3434 = vmatpush.msra.mxu0 0.0
    %3435 = vmatpush.msra.mxu0 0.0
    %3436 = vmatpush.msra.mxu0 0.0
    %3437 = vmatpush.msra.mxu0 0.0
    %3438 = vmatpush.msra.mxu0 %v3330
    %3439 = vmatpush.msra.mxu0 %v3325
    %3440 = vmatpush.msra.mxu0 %v3320
    %3441 = vmatpush.msra.mxu0 %v3315
    %3442 = vmatmul.f32.gmra.mxu0 %v3344
    %v3443 = vpop.f32.mrf.mxu0
    %v3444 = vadd.f32 %v3337, %v3443
    %3445 = vdwg.mxu0
    %v3446 = vlaneseq
    %v3447 = vand.u32 %v3446, 127
    %v3448 = vadd.s32 %v3447, 128
    %v3449 = vadd.s32 %v3447, 256
    %v3450 = vadd.s32 %v3447, 384
    %v3451 = vadd.s32 %v3447, 512
    %v3452 = vand.u32 %v3447, 64
    %v3453 = vand.u32 %v3448, 64
    %v3454 = vand.u32 %v3449, 64
    %v3455 = vand.u32 %v3450, 64
    %v3456 = vand.u32 %v3451, 64
    %vm3457 = vcmp.eq.s32.totalorder %v3452, 0
    %vm3458 = vcmp.eq.s32.totalorder %v3453, 0
    %vm3459 = vcmp.eq.s32.totalorder %v3454, 0
    %vm3460 = vcmp.eq.s32.totalorder %v3455, 0
    %vm3461 = vcmp.eq.s32.totalorder %v3456, 0
    %v3467 = vrot.slane %v3364, 1
    %v3468 = vrot.slane %v3384, 1
    %v3469 = vrot.slane %v3404, 1
    %v3470 = vrot.slane %v3424, 1
    %v3471 = vrot.slane %v3444, 1
    %v3477 = vsel %vm3457, %v3364, %v3467
    %v3478 = vsel %vm3458, %v3384, %v3468
    %v3479 = vsel %vm3459, %v3404, %v3469
    %v3480 = vsel %vm3460, %v3424, %v3470
    %v3481 = vsel %vm3461, %v3444, %v3471
    %v3482 = vld [vmem:[#allocation6] sm:$0xff]
    %v3483 = vld [vmem:[#allocation6 + $0x8] sm:$0xff]
    %v3484 = vld [vmem:[#allocation6 + $0x10] sm:$0xff]
    %v3485 = vld [vmem:[#allocation6 + $0x18] sm:$0xff]
    %v3486 = vld [vmem:[#allocation6 + $0x20] sm:$0xff]
    %v3487 = vld [vmem:[#allocation6 + $0x28] sm:$0xff]
    %v3488 = vld [vmem:[#allocation6 + $0x30] sm:$0xff]
    %v3489 = vld [vmem:[#allocation6 + $0x38] sm:$0xff]
    %v3490 = vld [vmem:[#allocation6 + $0x40] sm:$0xff]
    %v3491 = vld [vmem:[#allocation6 + $0x48] sm:$0xff]
    %v3492 = vld [vmem:[#allocation6 + $0x50] sm:$0xff]
    %v3493 = vld [vmem:[#allocation6 + $0x58] sm:$0xff]
    %v3494 = vld [vmem:[#allocation6 + $0x60] sm:$0xff]
    %v3495 = vld [vmem:[#allocation6 + $0x68] sm:$0xff]
    %v3496 = vld [vmem:[#allocation6 + $0x70] sm:$0xff]
    %v3497 = vld [vmem:[#allocation6 + $0x78] sm:$0xff]
    %v3498 = vmul.f32 %v3482, %v3482
    %v3499 = vmul.f32 %v3483, %v3483
    %v3500 = vmul.f32 %v3484, %v3484
    %v3501 = vmul.f32 %v3485, %v3485
    %v3502 = vmul.f32 %v3486, %v3486
    %v3503 = vmul.f32 %v3487, %v3487
    %v3504 = vmul.f32 %v3488, %v3488
    %v3505 = vmul.f32 %v3489, %v3489
    %v3506 = vmul.f32 %v3490, %v3490
    %v3507 = vmul.f32 %v3491, %v3491
    %v3508 = vmul.f32 %v3492, %v3492
    %v3509 = vmul.f32 %v3493, %v3493
    %v3510 = vmul.f32 %v3494, %v3494
    %v3511 = vmul.f32 %v3495, %v3495
    %v3512 = vmul.f32 %v3496, %v3496
    %v3513 = vmul.f32 %v3497, %v3497
    %v3514 = vmul.f32 %v3477, %v3477
    %3515 = vmatpush.msra.mxu0 %v3513
    %3516 = vmatpush.msra.mxu0 %v3512
    %3517 = vmatpush.msra.mxu0 %v3511
    %3518 = vmatpush.msra.mxu0 %v3510
    %3519 = vmatpush.msra.mxu0 %v3509
    %3520 = vmatpush.msra.mxu0 %v3508
    %3521 = vmatpush.msra.mxu0 %v3507
    %3522 = vmatpush.msra.mxu0 %v3506
    %3523 = vmatpush.msra.mxu0 %v3505
    %3524 = vmatpush.msra.mxu0 %v3504
    %3525 = vmatpush.msra.mxu0 %v3503
    %3526 = vmatpush.msra.mxu0 %v3502
    %3527 = vmatpush.msra.mxu0 %v3501
    %3528 = vmatpush.msra.mxu0 %v3500
    %3529 = vmatpush.msra.mxu0 %v3499
    %3530 = vmatpush.msra.mxu0 %v3498
    %3531 = vmatmul.f32.gmra.mxu0 %v3514
    %v3532 = vpop.f32.mrf.mxu0
    %v3533 = vadd.f32 1e-08, %v3532
    %3534 = vdwg.mxu0
    %v3535 = vrsqrt.pop %v3533
    %v3536 = vmul.f32 %v3535, %v3533
    %v3537 = vmul.f32 %v3536, %v3535
    %v3538 = vmul.f32 0.5, %v3537
    %v3539 = vsub.f32 1.5, %v3538
    %v3540 = vmul.f32 %v3535, %v3539
    %vm3541 = vweird.f32 %v3533
    %vm3542 = vweird.f32 %v3535
    %vm3543 = vmor %vm3541, %vm3542
    %v3544 = vsel %vm3543, %v3535, %v3540
    %s3545 = scalar_lea.vmem [#allocation6], 128
    %v3546 = vld [vmem:[%s3545] sm:$0xff]
    %v3547 = vld [vmem:[%s3545 + $0x8] sm:$0xff]
    %v3548 = vld [vmem:[%s3545 + $0x10] sm:$0xff]
    %v3549 = vld [vmem:[%s3545 + $0x18] sm:$0xff]
    %v3550 = vld [vmem:[%s3545 + $0x20] sm:$0xff]
    %v3551 = vld [vmem:[%s3545 + $0x28] sm:$0xff]
    %v3552 = vld [vmem:[%s3545 + $0x30] sm:$0xff]
    %v3553 = vld [vmem:[%s3545 + $0x38] sm:$0xff]
    %v3554 = vld [vmem:[%s3545 + $0x40] sm:$0xff]
    %v3555 = vld [vmem:[%s3545 + $0x48] sm:$0xff]
    %v3556 = vld [vmem:[%s3545 + $0x50] sm:$0xff]
    %v3557 = vld [vmem:[%s3545 + $0x58] sm:$0xff]
    %v3558 = vld [vmem:[%s3545 + $0x60] sm:$0xff]
    %v3559 = vld [vmem:[%s3545 + $0x68] sm:$0xff]
    %v3560 = vld [vmem:[%s3545 + $0x70] sm:$0xff]
    %v3561 = vld [vmem:[%s3545 + $0x78] sm:$0xff]
    %v3562 = vmul.f32 %v3546, %v3546
    %v3563 = vmul.f32 %v3547, %v3547
    %v3564 = vmul.f32 %v3548, %v3548
    %v3565 = vmul.f32 %v3549, %v3549
    %v3566 = vmul.f32 %v3550, %v3550
    %v3567 = vmul.f32 %v3551, %v3551
    %v3568 = vmul.f32 %v3552, %v3552
    %v3569 = vmul.f32 %v3553, %v3553
    %v3570 = vmul.f32 %v3554, %v3554
    %v3571 = vmul.f32 %v3555, %v3555
    %v3572 = vmul.f32 %v3556, %v3556
    %v3573 = vmul.f32 %v3557, %v3557
    %v3574 = vmul.f32 %v3558, %v3558
    %v3575 = vmul.f32 %v3559, %v3559
    %v3576 = vmul.f32 %v3560, %v3560
    %v3577 = vmul.f32 %v3561, %v3561
    %v3578 = vmul.f32 %v3478, %v3478
    %3579 = vmatpush.msra.mxu0 %v3577
    %3580 = vmatpush.msra.mxu0 %v3576
    %3581 = vmatpush.msra.mxu0 %v3575
    %3582 = vmatpush.msra.mxu0 %v3574
    %3583 = vmatpush.msra.mxu0 %v3573
    %3584 = vmatpush.msra.mxu0 %v3572
    %3585 = vmatpush.msra.mxu0 %v3571
    %3586 = vmatpush.msra.mxu0 %v3570
    %3587 = vmatpush.msra.mxu0 %v3569
    %3588 = vmatpush.msra.mxu0 %v3568
    %3589 = vmatpush.msra.mxu0 %v3567
    %3590 = vmatpush.msra.mxu0 %v3566
    %3591 = vmatpush.msra.mxu0 %v3565
    %3592 = vmatpush.msra.mxu0 %v3564
    %3593 = vmatpush.msra.mxu0 %v3563
    %3594 = vmatpush.msra.mxu0 %v3562
    %3595 = vmatmul.f32.gmra.mxu0 %v3578
    %v3596 = vpop.f32.mrf.mxu0
    %v3597 = vadd.f32 1e-08, %v3596
    %3598 = vdwg.mxu0
    %v3599 = vrsqrt.pop %v3597
    %v3600 = vmul.f32 %v3599, %v3597
    %v3601 = vmul.f32 %v3600, %v3599
    %v3602 = vmul.f32 0.5, %v3601
    %v3603 = vsub.f32 1.5, %v3602
    %v3604 = vmul.f32 %v3599, %v3603
    %vm3605 = vweird.f32 %v3597
    %vm3606 = vweird.f32 %v3599
    %vm3607 = vmor %vm3605, %vm3606
    %v3608 = vsel %vm3607, %v3599, %v3604
    %s3609 = scalar_lea.vmem [#allocation6], 256
    %v3610 = vld [vmem:[%s3609] sm:$0xff]
    %v3611 = vld [vmem:[%s3609 + $0x8] sm:$0xff]
    %v3612 = vld [vmem:[%s3609 + $0x10] sm:$0xff]
    %v3613 = vld [vmem:[%s3609 + $0x18] sm:$0xff]
    %v3614 = vld [vmem:[%s3609 + $0x20] sm:$0xff]
    %v3615 = vld [vmem:[%s3609 + $0x28] sm:$0xff]
    %v3616 = vld [vmem:[%s3609 + $0x30] sm:$0xff]
    %v3617 = vld [vmem:[%s3609 + $0x38] sm:$0xff]
    %v3618 = vld [vmem:[%s3609 + $0x40] sm:$0xff]
    %v3619 = vld [vmem:[%s3609 + $0x48] sm:$0xff]
    %v3620 = vld [vmem:[%s3609 + $0x50] sm:$0xff]
    %v3621 = vld [vmem:[%s3609 + $0x58] sm:$0xff]
    %v3622 = vld [vmem:[%s3609 + $0x60] sm:$0xff]
    %v3623 = vld [vmem:[%s3609 + $0x68] sm:$0xff]
    %v3624 = vld [vmem:[%s3609 + $0x70] sm:$0xff]
    %v3625 = vld [vmem:[%s3609 + $0x78] sm:$0xff]
    %v3626 = vmul.f32 %v3610, %v3610
    %v3627 = vmul.f32 %v3611, %v3611
    %v3628 = vmul.f32 %v3612, %v3612
    %v3629 = vmul.f32 %v3613, %v3613
    %v3630 = vmul.f32 %v3614, %v3614
    %v3631 = vmul.f32 %v3615, %v3615
    %v3632 = vmul.f32 %v3616, %v3616
    %v3633 = vmul.f32 %v3617, %v3617
    %v3634 = vmul.f32 %v3618, %v3618
    %v3635 = vmul.f32 %v3619, %v3619
    %v3636 = vmul.f32 %v3620, %v3620
    %v3637 = vmul.f32 %v3621, %v3621
    %v3638 = vmul.f32 %v3622, %v3622
    %v3639 = vmul.f32 %v3623, %v3623
    %v3640 = vmul.f32 %v3624, %v3624
    %v3641 = vmul.f32 %v3625, %v3625
    %v3642 = vmul.f32 %v3479, %v3479
    %3643 = vmatpush.msra.mxu0 %v3641
    %3644 = vmatpush.msra.mxu0 %v3640
    %3645 = vmatpush.msra.mxu0 %v3639
    %3646 = vmatpush.msra.mxu0 %v3638
    %3647 = vmatpush.msra.mxu0 %v3637
    %3648 = vmatpush.msra.mxu0 %v3636
    %3649 = vmatpush.msra.mxu0 %v3635
    %3650 = vmatpush.msra.mxu0 %v3634
    %3651 = vmatpush.msra.mxu0 %v3633
    %3652 = vmatpush.msra.mxu0 %v3632
    %3653 = vmatpush.msra.mxu0 %v3631
    %3654 = vmatpush.msra.mxu0 %v3630
    %3655 = vmatpush.msra.mxu0 %v3629
    %3656 = vmatpush.msra.mxu0 %v3628
    %3657 = vmatpush.msra.mxu0 %v3627
    %3658 = vmatpush.msra.mxu0 %v3626
    %3659 = vmatmul.f32.gmra.mxu0 %v3642
    %v3660 = vpop.f32.mrf.mxu0
    %v3661 = vadd.f32 1e-08, %v3660
    %3662 = vdwg.mxu0
    %v3663 = vrsqrt.pop %v3661
    %v3664 = vmul.f32 %v3663, %v3661
    %v3665 = vmul.f32 %v3664, %v3663
    %v3666 = vmul.f32 0.5, %v3665
    %v3667 = vsub.f32 1.5, %v3666
    %v3668 = vmul.f32 %v3663, %v3667
    %vm3669 = vweird.f32 %v3661
    %vm3670 = vweird.f32 %v3663
    %vm3671 = vmor %vm3669, %vm3670
    %v3672 = vsel %vm3671, %v3663, %v3668
    %s3673 = scalar_lea.vmem [#allocation6], 384
    %v3674 = vld [vmem:[%s3673] sm:$0xff]
    %v3675 = vld [vmem:[%s3673 + $0x8] sm:$0xff]
    %v3676 = vld [vmem:[%s3673 + $0x10] sm:$0xff]
    %v3677 = vld [vmem:[%s3673 + $0x18] sm:$0xff]
    %v3678 = vld [vmem:[%s3673 + $0x20] sm:$0xff]
    %v3679 = vld [vmem:[%s3673 + $0x28] sm:$0xff]
    %v3680 = vld [vmem:[%s3673 + $0x30] sm:$0xff]
    %v3681 = vld [vmem:[%s3673 + $0x38] sm:$0xff]
    %v3682 = vld [vmem:[%s3673 + $0x40] sm:$0xff]
    %v3683 = vld [vmem:[%s3673 + $0x48] sm:$0xff]
    %v3684 = vld [vmem:[%s3673 + $0x50] sm:$0xff]
    %v3685 = vld [vmem:[%s3673 + $0x58] sm:$0xff]
    %v3686 = vld [vmem:[%s3673 + $0x60] sm:$0xff]
    %v3687 = vld [vmem:[%s3673 + $0x68] sm:$0xff]
    %v3688 = vld [vmem:[%s3673 + $0x70] sm:$0xff]
    %v3689 = vld [vmem:[%s3673 + $0x78] sm:$0xff]
    %v3690 = vmul.f32 %v3674, %v3674
    %v3691 = vmul.f32 %v3675, %v3675
    %v3692 = vmul.f32 %v3676, %v3676
    %v3693 = vmul.f32 %v3677, %v3677
    %v3694 = vmul.f32 %v3678, %v3678
    %v3695 = vmul.f32 %v3679, %v3679
    %v3696 = vmul.f32 %v3680, %v3680
    %v3697 = vmul.f32 %v3681, %v3681
    %v3698 = vmul.f32 %v3682, %v3682
    %v3699 = vmul.f32 %v3683, %v3683
    %v3700 = vmul.f32 %v3684, %v3684
    %v3701 = vmul.f32 %v3685, %v3685
    %v3702 = vmul.f32 %v3686, %v3686
    %v3703 = vmul.f32 %v3687, %v3687
    %v3704 = vmul.f32 %v3688, %v3688
    %v3705 = vmul.f32 %v3689, %v3689
    %v3706 = vmul.f32 %v3480, %v3480
    %3707 = vmatpush.msra.mxu0 %v3705
    %3708 = vmatpush.msra.mxu0 %v3704
    %3709 = vmatpush.msra.mxu0 %v3703
    %3710 = vmatpush.msra.mxu0 %v3702
    %3711 = vmatpush.msra.mxu0 %v3701
    %3712 = vmatpush.msra.mxu0 %v3700
    %3713 = vmatpush.msra.mxu0 %v3699
    %3714 = vmatpush.msra.mxu0 %v3698
    %3715 = vmatpush.msra.mxu0 %v3697
    %3716 = vmatpush.msra.mxu0 %v3696
    %3717 = vmatpush.msra.mxu0 %v3695
    %3718 = vmatpush.msra.mxu0 %v3694
    %3719 = vmatpush.msra.mxu0 %v3693
    %3720 = vmatpush.msra.mxu0 %v3692
    %3721 = vmatpush.msra.mxu0 %v3691
    %3722 = vmatpush.msra.mxu0 %v3690
    %3723 = vmatmul.f32.gmra.mxu0 %v3706
    %v3724 = vpop.f32.mrf.mxu0
    %v3725 = vadd.f32 1e-08, %v3724
    %3726 = vdwg.mxu0
    %v3727 = vrsqrt.pop %v3725
    %v3728 = vmul.f32 %v3727, %v3725
    %v3729 = vmul.f32 %v3728, %v3727
    %v3730 = vmul.f32 0.5, %v3729
    %v3731 = vsub.f32 1.5, %v3730
    %v3732 = vmul.f32 %v3727, %v3731
    %vm3733 = vweird.f32 %v3725
    %vm3734 = vweird.f32 %v3727
    %vm3735 = vmor %vm3733, %vm3734
    %v3736 = vsel %vm3735, %v3727, %v3732
    %s3737 = scalar_lea.vmem [#allocation6], 512
    %v3738 = vld [vmem:[%s3737] sm:$0xff]
    %v3739 = vld [vmem:[%s3737 + $0x8] sm:$0xff]
    %v3740 = vld [vmem:[%s3737 + $0x10] sm:$0xff]
    %v3741 = vld [vmem:[%s3737 + $0x18] sm:$0xff]
    %v3742 = vld [vmem:[%s3737 + $0x20] sm:$0xff]
    %v3743 = vld [vmem:[%s3737 + $0x28] sm:$0xff]
    %v3744 = vld [vmem:[%s3737 + $0x30] sm:$0xff]
    %v3745 = vld [vmem:[%s3737 + $0x38] sm:$0xff]
    %v3746 = vld [vmem:[%s3737 + $0x40] sm:$0xff]
    %v3747 = vld [vmem:[%s3737 + $0x48] sm:$0xff]
    %v3748 = vld [vmem:[%s3737 + $0x50] sm:$0xff]
    %v3749 = vld [vmem:[%s3737 + $0x58] sm:$0xff]
    %v3750 = vld [vmem:[%s3737 + $0x60] sm:$0xff]
    %v3751 = vld [vmem:[%s3737 + $0x68] sm:$0xff]
    %v3752 = vld [vmem:[%s3737 + $0x70] sm:$0xff]
    %v3753 = vld [vmem:[%s3737 + $0x78] sm:$0xff]
    %v3754 = vmul.f32 %v3738, %v3738
    %v3755 = vmul.f32 %v3739, %v3739
    %v3756 = vmul.f32 %v3740, %v3740
    %v3757 = vmul.f32 %v3741, %v3741
    %v3758 = vmul.f32 %v3742, %v3742
    %v3759 = vmul.f32 %v3743, %v3743
    %v3760 = vmul.f32 %v3744, %v3744
    %v3761 = vmul.f32 %v3745, %v3745
    %v3762 = vmul.f32 %v3746, %v3746
    %v3763 = vmul.f32 %v3747, %v3747
    %v3764 = vmul.f32 %v3748, %v3748
    %v3765 = vmul.f32 %v3749, %v3749
    %v3766 = vmul.f32 %v3750, %v3750
    %v3767 = vmul.f32 %v3751, %v3751
    %v3768 = vmul.f32 %v3752, %v3752
    %v3769 = vmul.f32 %v3753, %v3753
    %v3770 = vmul.f32 %v3481, %v3481
    %3771 = vmatpush.msra.mxu0 %v3769
    %3772 = vmatpush.msra.mxu0 %v3768
    %3773 = vmatpush.msra.mxu0 %v3767
    %3774 = vmatpush.msra.mxu0 %v3766
    %3775 = vmatpush.msra.mxu0 %v3765
    %3776 = vmatpush.msra.mxu0 %v3764
    %3777 = vmatpush.msra.mxu0 %v3763
    %3778 = vmatpush.msra.mxu0 %v3762
    %3779 = vmatpush.msra.mxu0 %v3761
    %3780 = vmatpush.msra.mxu0 %v3760
    %3781 = vmatpush.msra.mxu0 %v3759
    %3782 = vmatpush.msra.mxu0 %v3758
    %3783 = vmatpush.msra.mxu0 %v3757
    %3784 = vmatpush.msra.mxu0 %v3756
    %3785 = vmatpush.msra.mxu0 %v3755
    %3786 = vmatpush.msra.mxu0 %v3754
    %3787 = vmatmul.f32.gmra.mxu0 %v3770
    %v3788 = vpop.f32.mrf.mxu0
    %v3789 = vadd.f32 1e-08, %v3788
    %3790 = vdwg.mxu0
    %v3791 = vrsqrt.pop %v3789
    %v3792 = vmul.f32 %v3791, %v3789
    %v3793 = vmul.f32 %v3792, %v3791
    %v3794 = vmul.f32 0.5, %v3793
    %v3795 = vsub.f32 1.5, %v3794
    %v3796 = vmul.f32 %v3791, %v3795
    %vm3797 = vweird.f32 %v3789
    %vm3798 = vweird.f32 %v3791
    %vm3799 = vmor %vm3797, %vm3798
    %v3800 = vsel %vm3799, %v3791, %v3796
    %v3801 = vperm.slane %v3477, 0
    %v3802 = vmul.f32 %v664, %v3801
    %v3803 = vmul.f32 %v819, %v3801
    %v3804 = vmul.f32 %v974, %v3801
    %v3805 = vmul.f32 %v1129, %v3801
    %v3806 = vmul.f32 %v1284, %v3801
    %v3807 = vmul.f32 %v1439, %v3801
    %v3808 = vmul.f32 %v1594, %v3801
    %v3809 = vmul.f32 %v1749, %v3801
    %v3810 = vmul.f32 %v1904, %v3801
    %v3811 = vmul.f32 %v2059, %v3801
    %v3812 = vmul.f32 %v2214, %v3801
    %v3813 = vmul.f32 %v2369, %v3801
    %v3814 = vmul.f32 %v2524, %v3801
    %v3815 = vmul.f32 %v2679, %v3801
    %v3816 = vmul.f32 %v2834, %v3801
    %v3817 = vmul.f32 %v2989, %v3801
    %3818 = vmatpush.msra.mxu0 %v3497
    %3819 = vmatpush.msra.mxu0 %v3496
    %3820 = vmatpush.msra.mxu0 %v3495
    %3821 = vmatpush.msra.mxu0 %v3494
    %3822 = vmatpush.msra.mxu0 %v3493
    %3823 = vmatpush.msra.mxu0 %v3492
    %3824 = vmatpush.msra.mxu0 %v3491
    %3825 = vmatpush.msra.mxu0 %v3490
    %3826 = vmatpush.msra.mxu0 %v3489
    %3827 = vmatpush.msra.mxu0 %v3488
    %3828 = vmatpush.msra.mxu0 %v3487
    %3829 = vmatpush.msra.mxu0 %v3486
    %3830 = vmatpush.msra.mxu0 %v3485
    %3831 = vmatpush.msra.mxu0 %v3484
    %3832 = vmatpush.msra.mxu0 %v3483
    %3833 = vmatpush.msra.mxu0 %v3482
    %3834 = vmatmul.f32.gmra.mxu0 %v3802
    %v3835 = vpop.f32.mrf.mxu0
    %v3836 = vadd.f32 0.0, %v3835
    %3837 = vmatmul.f32.gmra.mxu0 %v3803
    %v3838 = vpop.f32.mrf.mxu0
    %v3839 = vadd.f32 0.0, %v3838
    %3840 = vmatmul.f32.gmra.mxu0 %v3804
    %v3841 = vpop.f32.mrf.mxu0
    %v3842 = vadd.f32 0.0, %v3841
    %3843 = vmatmul.f32.gmra.mxu0 %v3805
    %v3844 = vpop.f32.mrf.mxu0
    %v3845 = vadd.f32 0.0, %v3844
    %3846 = vmatmul.f32.gmra.mxu0 %v3806
    %v3847 = vpop.f32.mrf.mxu0
    %v3848 = vadd.f32 0.0, %v3847
    %3849 = vmatmul.f32.gmra.mxu0 %v3807
    %v3850 = vpop.f32.mrf.mxu0
    %v3851 = vadd.f32 0.0, %v3850
    %3852 = vmatmul.f32.gmra.mxu0 %v3808
    %v3853 = vpop.f32.mrf.mxu0
    %v3854 = vadd.f32 0.0, %v3853
    %3855 = vmatmul.f32.gmra.mxu0 %v3809
    %v3856 = vpop.f32.mrf.mxu0
    %v3857 = vadd.f32 0.0, %v3856
    %3858 = vmatmul.f32.gmra.mxu0 %v3810
    %v3859 = vpop.f32.mrf.mxu0
    %v3860 = vadd.f32 0.0, %v3859
    %3861 = vmatmul.f32.gmra.mxu0 %v3811
    %v3862 = vpop.f32.mrf.mxu0
    %v3863 = vadd.f32 0.0, %v3862
    %3864 = vmatmul.f32.gmra.mxu0 %v3812
    %v3865 = vpop.f32.mrf.mxu0
    %v3866 = vadd.f32 0.0, %v3865
    %3867 = vmatmul.f32.gmra.mxu0 %v3813
    %v3868 = vpop.f32.mrf.mxu0
    %v3869 = vadd.f32 0.0, %v3868
    %3870 = vmatmul.f32.gmra.mxu0 %v3814
    %v3871 = vpop.f32.mrf.mxu0
    %v3872 = vadd.f32 0.0, %v3871
    %3873 = vmatmul.f32.gmra.mxu0 %v3815
    %v3874 = vpop.f32.mrf.mxu0
    %v3875 = vadd.f32 0.0, %v3874
    %3876 = vmatmul.f32.gmra.mxu0 %v3816
    %v3877 = vpop.f32.mrf.mxu0
    %v3878 = vadd.f32 0.0, %v3877
    %3879 = vmatmul.f32.gmra.mxu0 %v3817
    %v3880 = vpop.f32.mrf.mxu0
    %v3881 = vadd.f32 0.0, %v3880
    %3882 = vdwg.mxu0
    %v3883 = vperm.slane %v3544, 0
    %v3884 = vmul.f32 %v3836, %v3883
    %v3885 = vmul.f32 %v3839, %v3883
    %v3886 = vmul.f32 %v3842, %v3883
    %v3887 = vmul.f32 %v3845, %v3883
    %v3888 = vmul.f32 %v3848, %v3883
    %v3889 = vmul.f32 %v3851, %v3883
    %v3890 = vmul.f32 %v3854, %v3883
    %v3891 = vmul.f32 %v3857, %v3883
    %v3892 = vmul.f32 %v3860, %v3883
    %v3893 = vmul.f32 %v3863, %v3883
    %v3894 = vmul.f32 %v3866, %v3883
    %v3895 = vmul.f32 %v3869, %v3883
    %v3896 = vmul.f32 %v3872, %v3883
    %v3897 = vmul.f32 %v3875, %v3883
    %v3898 = vmul.f32 %v3878, %v3883
    %v3899 = vmul.f32 %v3881, %v3883
    %v3900 = vld [vmem:[%s9] sm:$0x1]
    %v3902 = vperm.slane %v3900, 0
    %v3904 = vadd.f32 %v3884, %v3902
    %v3905 = vadd.f32 %v3885, %v3902
    %v3906 = vadd.f32 %v3886, %v3902
    %v3907 = vadd.f32 %v3887, %v3902
    %v3908 = vadd.f32 %v3888, %v3902
    %v3909 = vadd.f32 %v3889, %v3902
    %v3910 = vadd.f32 %v3890, %v3902
    %v3911 = vadd.f32 %v3891, %v3902
    %v3912 = vadd.f32 %v3892, %v3902
    %v3913 = vadd.f32 %v3893, %v3902
    %v3914 = vadd.f32 %v3894, %v3902
    %v3915 = vadd.f32 %v3895, %v3902
    %v3916 = vadd.f32 %v3896, %v3902
    %v3917 = vadd.f32 %v3897, %v3902
    %v3918 = vadd.f32 %v3898, %v3902
    %v3919 = vadd.f32 %v3899, %v3902
    %vm3920 = vcmp.ge.f32.partialorder %v3904, 0.0
    %vm3921 = vcmp.ge.f32.partialorder %v3905, 0.0
    %vm3922 = vcmp.ge.f32.partialorder %v3906, 0.0
    %vm3923 = vcmp.ge.f32.partialorder %v3907, 0.0
    %vm3924 = vcmp.ge.f32.partialorder %v3908, 0.0
    %vm3925 = vcmp.ge.f32.partialorder %v3909, 0.0
    %vm3926 = vcmp.ge.f32.partialorder %v3910, 0.0
    %vm3927 = vcmp.ge.f32.partialorder %v3911, 0.0
    %vm3928 = vcmp.ge.f32.partialorder %v3912, 0.0
    %vm3929 = vcmp.ge.f32.partialorder %v3913, 0.0
    %vm3930 = vcmp.ge.f32.partialorder %v3914, 0.0
    %vm3931 = vcmp.ge.f32.partialorder %v3915, 0.0
    %vm3932 = vcmp.ge.f32.partialorder %v3916, 0.0
    %vm3933 = vcmp.ge.f32.partialorder %v3917, 0.0
    %vm3934 = vcmp.ge.f32.partialorder %v3918, 0.0
    %vm3935 = vcmp.ge.f32.partialorder %v3919, 0.0
    %v3936 = vmul.f32 %v3904, 0.2
    %v3937 = vmul.f32 %v3905, 0.2
    %v3938 = vmul.f32 %v3906, 0.2
    %v3939 = vmul.f32 %v3907, 0.2
    %v3940 = vmul.f32 %v3908, 0.2
    %v3941 = vmul.f32 %v3909, 0.2
    %v3942 = vmul.f32 %v3910, 0.2
    %v3943 = vmul.f32 %v3911, 0.2
    %v3944 = vmul.f32 %v3912, 0.2
    %v3945 = vmul.f32 %v3913, 0.2
    %v3946 = vmul.f32 %v3914, 0.2
    %v3947 = vmul.f32 %v3915, 0.2
    %v3948 = vmul.f32 %v3916, 0.2
    %v3949 = vmul.f32 %v3917, 0.2
    %v3950 = vmul.f32 %v3918, 0.2
    %v3951 = vmul.f32 %v3919, 0.2
    %v3952 = vsel %vm3920, %v3904, %v3936
    %v3953 = vsel %vm3921, %v3905, %v3937
    %v3954 = vsel %vm3922, %v3906, %v3938
    %v3955 = vsel %vm3923, %v3907, %v3939
    %v3956 = vsel %vm3924, %v3908, %v3940
    %v3957 = vsel %vm3925, %v3909, %v3941
    %v3958 = vsel %vm3926, %v3910, %v3942
    %v3959 = vsel %vm3927, %v3911, %v3943
    %v3960 = vsel %vm3928, %v3912, %v3944
    %v3961 = vsel %vm3929, %v3913, %v3945
    %v3962 = vsel %vm3930, %v3914, %v3946
    %v3963 = vsel %vm3931, %v3915, %v3947
    %v3964 = vsel %vm3932, %v3916, %v3948
    %v3965 = vsel %vm3933, %v3917, %v3949
    %v3966 = vsel %vm3934, %v3918, %v3950
    %v3967 = vsel %vm3935, %v3919, %v3951
    %v3968 = vmul.f32 %v3952, 1.4142135
    %v3969 = vmul.f32 %v3953, 1.4142135
    %v3970 = vmul.f32 %v3954, 1.4142135
    %v3971 = vmul.f32 %v3955, 1.4142135
    %v3972 = vmul.f32 %v3956, 1.4142135
    %v3973 = vmul.f32 %v3957, 1.4142135
    %v3974 = vmul.f32 %v3958, 1.4142135
    %v3975 = vmul.f32 %v3959, 1.4142135
    %v3976 = vmul.f32 %v3960, 1.4142135
    %v3977 = vmul.f32 %v3961, 1.4142135
    %v3978 = vmul.f32 %v3962, 1.4142135
    %v3979 = vmul.f32 %v3963, 1.4142135
    %v3980 = vmul.f32 %v3964, 1.4142135
    %v3981 = vmul.f32 %v3965, 1.4142135
    %v3982 = vmul.f32 %v3966, 1.4142135
    %v3983 = vmul.f32 %v3967, 1.4142135
    %v3984 = vperm.slane %v3478, 0
    %v3985 = vmul.f32 %v3968, %v3984
    %v3986 = vmul.f32 %v3969, %v3984
    %v3987 = vmul.f32 %v3970, %v3984
    %v3988 = vmul.f32 %v3971, %v3984
    %v3989 = vmul.f32 %v3972, %v3984
    %v3990 = vmul.f32 %v3973, %v3984
    %v3991 = vmul.f32 %v3974, %v3984
    %v3992 = vmul.f32 %v3975, %v3984
    %v3993 = vmul.f32 %v3976, %v3984
    %v3994 = vmul.f32 %v3977, %v3984
    %v3995 = vmul.f32 %v3978, %v3984
    %v3996 = vmul.f32 %v3979, %v3984
    %v3997 = vmul.f32 %v3980, %v3984
    %v3998 = vmul.f32 %v3981, %v3984
    %v3999 = vmul.f32 %v3982, %v3984
    %v4000 = vmul.f32 %v3983, %v3984
    %4001 = vmatpush.msra.mxu0 %v3561
    %4002 = vmatpush.msra.mxu0 %v3560
    %4003 = vmatpush.msra.mxu0 %v3559
    %4004 = vmatpush.msra.mxu0 %v3558
    %4005 = vmatpush.msra.mxu0 %v3557
    %4006 = vmatpush.msra.mxu0 %v3556
    %4007 = vmatpush.msra.mxu0 %v3555
    %4008 = vmatpush.msra.mxu0 %v3554
    %4009 = vmatpush.msra.mxu0 %v3553
    %4010 = vmatpush.msra.mxu0 %v3552
    %4011 = vmatpush.msra.mxu0 %v3551
    %4012 = vmatpush.msra.mxu0 %v3550
    %4013 = vmatpush.msra.mxu0 %v3549
    %4014 = vmatpush.msra.mxu0 %v3548
    %4015 = vmatpush.msra.mxu0 %v3547
    %4016 = vmatpush.msra.mxu0 %v3546
    %4017 = vmatmul.f32.gmra.mxu0 %v3985
    %v4018 = vpop.f32.mrf.mxu0
    %v4019 = vadd.f32 0.0, %v4018
    %4020 = vmatmul.f32.gmra.mxu0 %v3986
    %v4021 = vpop.f32.mrf.mxu0
    %v4022 = vadd.f32 0.0, %v4021
    %4023 = vmatmul.f32.gmra.mxu0 %v3987
    %v4024 = vpop.f32.mrf.mxu0
    %v4025 = vadd.f32 0.0, %v4024
    %4026 = vmatmul.f32.gmra.mxu0 %v3988
    %v4027 = vpop.f32.mrf.mxu0
    %v4028 = vadd.f32 0.0, %v4027
    %4029 = vmatmul.f32.gmra.mxu0 %v3989
    %v4030 = vpop.f32.mrf.mxu0
    %v4031 = vadd.f32 0.0, %v4030
    %4032 = vmatmul.f32.gmra.mxu0 %v3990
    %v4033 = vpop.f32.mrf.mxu0
    %v4034 = vadd.f32 0.0, %v4033
    %4035 = vmatmul.f32.gmra.mxu0 %v3991
    %v4036 = vpop.f32.mrf.mxu0
    %v4037 = vadd.f32 0.0, %v4036
    %4038 = vmatmul.f32.gmra.mxu0 %v3992
    %v4039 = vpop.f32.mrf.mxu0
    %v4040 = vadd.f32 0.0, %v4039
    %4041 = vmatmul.f32.gmra.mxu0 %v3993
    %v4042 = vpop.f32.mrf.mxu0
    %v4043 = vadd.f32 0.0, %v4042
    %4044 = vmatmul.f32.gmra.mxu0 %v3994
    %v4045 = vpop.f32.mrf.mxu0
    %v4046 = vadd.f32 0.0, %v4045
    %4047 = vmatmul.f32.gmra.mxu0 %v3995
    %v4048 = vpop.f32.mrf.mxu0
    %v4049 = vadd.f32 0.0, %v4048
    %4050 = vmatmul.f32.gmra.mxu0 %v3996
    %v4051 = vpop.f32.mrf.mxu0
    %v4052 = vadd.f32 0.0, %v4051
    %4053 = vmatmul.f32.gmra.mxu0 %v3997
    %v4054 = vpop.f32.mrf.mxu0
    %v4055 = vadd.f32 0.0, %v4054
    %4056 = vmatmul.f32.gmra.mxu0 %v3998
    %v4057 = vpop.f32.mrf.mxu0
    %v4058 = vadd.f32 0.0, %v4057
    %4059 = vmatmul.f32.gmra.mxu0 %v3999
    %v4060 = vpop.f32.mrf.mxu0
    %v4061 = vadd.f32 0.0, %v4060
    %4062 = vmatmul.f32.gmra.mxu0 %v4000
    %v4063 = vpop.f32.mrf.mxu0
    %v4064 = vadd.f32 0.0, %v4063
    %4065 = vdwg.mxu0
    %v4066 = vperm.slane %v3608, 0
    %v4067 = vmul.f32 %v4019, %v4066
    %v4068 = vmul.f32 %v4022, %v4066
    %v4069 = vmul.f32 %v4025, %v4066
    %v4070 = vmul.f32 %v4028, %v4066
    %v4071 = vmul.f32 %v4031, %v4066
    %v4072 = vmul.f32 %v4034, %v4066
    %v4073 = vmul.f32 %v4037, %v4066
    %v4074 = vmul.f32 %v4040, %v4066
    %v4075 = vmul.f32 %v4043, %v4066
    %v4076 = vmul.f32 %v4046, %v4066
    %v4077 = vmul.f32 %v4049, %v4066
    %v4078 = vmul.f32 %v4052, %v4066
    %v4079 = vmul.f32 %v4055, %v4066
    %v4080 = vmul.f32 %v4058, %v4066
    %v4081 = vmul.f32 %v4061, %v4066
    %v4082 = vmul.f32 %v4064, %v4066
    %s4083 = scalar_lea.vmem %s9, 1
    %v4084 = vld [vmem:[%s4083] sm:$0x1]
    %v4086 = vperm.slane %v4084, 0
    %v4088 = vadd.f32 %v4067, %v4086
    %v4089 = vadd.f32 %v4068, %v4086
    %v4090 = vadd.f32 %v4069, %v4086
    %v4091 = vadd.f32 %v4070, %v4086
    %v4092 = vadd.f32 %v4071, %v4086
    %v4093 = vadd.f32 %v4072, %v4086
    %v4094 = vadd.f32 %v4073, %v4086
    %v4095 = vadd.f32 %v4074, %v4086
    %v4096 = vadd.f32 %v4075, %v4086
    %v4097 = vadd.f32 %v4076, %v4086
    %v4098 = vadd.f32 %v4077, %v4086
    %v4099 = vadd.f32 %v4078, %v4086
    %v4100 = vadd.f32 %v4079, %v4086
    %v4101 = vadd.f32 %v4080, %v4086
    %v4102 = vadd.f32 %v4081, %v4086
    %v4103 = vadd.f32 %v4082, %v4086
    %vm4104 = vcmp.ge.f32.partialorder %v4088, 0.0
    %vm4105 = vcmp.ge.f32.partialorder %v4089, 0.0
    %vm4106 = vcmp.ge.f32.partialorder %v4090, 0.0
    %vm4107 = vcmp.ge.f32.partialorder %v4091, 0.0
    %vm4108 = vcmp.ge.f32.partialorder %v4092, 0.0
    %vm4109 = vcmp.ge.f32.partialorder %v4093, 0.0
    %vm4110 = vcmp.ge.f32.partialorder %v4094, 0.0
    %vm4111 = vcmp.ge.f32.partialorder %v4095, 0.0
    %vm4112 = vcmp.ge.f32.partialorder %v4096, 0.0
    %vm4113 = vcmp.ge.f32.partialorder %v4097, 0.0
    %vm4114 = vcmp.ge.f32.partialorder %v4098, 0.0
    %vm4115 = vcmp.ge.f32.partialorder %v4099, 0.0
    %vm4116 = vcmp.ge.f32.partialorder %v4100, 0.0
    %vm4117 = vcmp.ge.f32.partialorder %v4101, 0.0
    %vm4118 = vcmp.ge.f32.partialorder %v4102, 0.0
    %vm4119 = vcmp.ge.f32.partialorder %v4103, 0.0
    %v4120 = vmul.f32 %v4088, 0.2
    %v4121 = vmul.f32 %v4089, 0.2
    %v4122 = vmul.f32 %v4090, 0.2
    %v4123 = vmul.f32 %v4091, 0.2
    %v4124 = vmul.f32 %v4092, 0.2
    %v4125 = vmul.f32 %v4093, 0.2
    %v4126 = vmul.f32 %v4094, 0.2
    %v4127 = vmul.f32 %v4095, 0.2
    %v4128 = vmul.f32 %v4096, 0.2
    %v4129 = vmul.f32 %v4097, 0.2
    %v4130 = vmul.f32 %v4098, 0.2
    %v4131 = vmul.f32 %v4099, 0.2
    %v4132 = vmul.f32 %v4100, 0.2
    %v4133 = vmul.f32 %v4101, 0.2
    %v4134 = vmul.f32 %v4102, 0.2
    %v4135 = vmul.f32 %v4103, 0.2
    %v4136 = vsel %vm4104, %v4088, %v4120
    %v4137 = vsel %vm4105, %v4089, %v4121
    %v4138 = vsel %vm4106, %v4090, %v4122
    %v4139 = vsel %vm4107, %v4091, %v4123
    %v4140 = vsel %vm4108, %v4092, %v4124
    %v4141 = vsel %vm4109, %v4093, %v4125
    %v4142 = vsel %vm4110, %v4094, %v4126
    %v4143 = vsel %vm4111, %v4095, %v4127
    %v4144 = vsel %vm4112, %v4096, %v4128
    %v4145 = vsel %vm4113, %v4097, %v4129
    %v4146 = vsel %vm4114, %v4098, %v4130
    %v4147 = vsel %vm4115, %v4099, %v4131
    %v4148 = vsel %vm4116, %v4100, %v4132
    %v4149 = vsel %vm4117, %v4101, %v4133
    %v4150 = vsel %vm4118, %v4102, %v4134
    %v4151 = vsel %vm4119, %v4103, %v4135
    %v4152 = vmul.f32 %v4136, 1.4142135
    %v4153 = vmul.f32 %v4137, 1.4142135
    %v4154 = vmul.f32 %v4138, 1.4142135
    %v4155 = vmul.f32 %v4139, 1.4142135
    %v4156 = vmul.f32 %v4140, 1.4142135
    %v4157 = vmul.f32 %v4141, 1.4142135
    %v4158 = vmul.f32 %v4142, 1.4142135
    %v4159 = vmul.f32 %v4143, 1.4142135
    %v4160 = vmul.f32 %v4144, 1.4142135
    %v4161 = vmul.f32 %v4145, 1.4142135
    %v4162 = vmul.f32 %v4146, 1.4142135
    %v4163 = vmul.f32 %v4147, 1.4142135
    %v4164 = vmul.f32 %v4148, 1.4142135
    %v4165 = vmul.f32 %v4149, 1.4142135
    %v4166 = vmul.f32 %v4150, 1.4142135
    %v4167 = vmul.f32 %v4151, 1.4142135
    %v4168 = vperm.slane %v3479, 0
    %v4169 = vmul.f32 %v4152, %v4168
    %v4170 = vmul.f32 %v4153, %v4168
    %v4171 = vmul.f32 %v4154, %v4168
    %v4172 = vmul.f32 %v4155, %v4168
    %v4173 = vmul.f32 %v4156, %v4168
    %v4174 = vmul.f32 %v4157, %v4168
    %v4175 = vmul.f32 %v4158, %v4168
    %v4176 = vmul.f32 %v4159, %v4168
    %v4177 = vmul.f32 %v4160, %v4168
    %v4178 = vmul.f32 %v4161, %v4168
    %v4179 = vmul.f32 %v4162, %v4168
    %v4180 = vmul.f32 %v4163, %v4168
    %v4181 = vmul.f32 %v4164, %v4168
    %v4182 = vmul.f32 %v4165, %v4168
    %v4183 = vmul.f32 %v4166, %v4168
    %v4184 = vmul.f32 %v4167, %v4168
    %4185 = vmatpush.msra.mxu0 %v3625
    %4186 = vmatpush.msra.mxu0 %v3624
    %4187 = vmatpush.msra.mxu0 %v3623
    %4188 = vmatpush.msra.mxu0 %v3622
    %4189 = vmatpush.msra.mxu0 %v3621
    %4190 = vmatpush.msra.mxu0 %v3620
    %4191 = vmatpush.msra.mxu0 %v3619
    %4192 = vmatpush.msra.mxu0 %v3618
    %4193 = vmatpush.msra.mxu0 %v3617
    %4194 = vmatpush.msra.mxu0 %v3616
    %4195 = vmatpush.msra.mxu0 %v3615
    %4196 = vmatpush.msra.mxu0 %v3614
    %4197 = vmatpush.msra.mxu0 %v3613
    %4198 = vmatpush.msra.mxu0 %v3612
    %4199 = vmatpush.msra.mxu0 %v3611
    %4200 = vmatpush.msra.mxu0 %v3610
    %4201 = vmatmul.f32.gmra.mxu0 %v4169
    %v4202 = vpop.f32.mrf.mxu0
    %v4203 = vadd.f32 0.0, %v4202
    %4204 = vmatmul.f32.gmra.mxu0 %v4170
    %v4205 = vpop.f32.mrf.mxu0
    %v4206 = vadd.f32 0.0, %v4205
    %4207 = vmatmul.f32.gmra.mxu0 %v4171
    %v4208 = vpop.f32.mrf.mxu0
    %v4209 = vadd.f32 0.0, %v4208
    %4210 = vmatmul.f32.gmra.mxu0 %v4172
    %v4211 = vpop.f32.mrf.mxu0
    %v4212 = vadd.f32 0.0, %v4211
    %4213 = vmatmul.f32.gmra.mxu0 %v4173
    %v4214 = vpop.f32.mrf.mxu0
    %v4215 = vadd.f32 0.0, %v4214
    %4216 = vmatmul.f32.gmra.mxu0 %v4174
    %v4217 = vpop.f32.mrf.mxu0
    %v4218 = vadd.f32 0.0, %v4217
    %4219 = vmatmul.f32.gmra.mxu0 %v4175
    %v4220 = vpop.f32.mrf.mxu0
    %v4221 = vadd.f32 0.0, %v4220
    %4222 = vmatmul.f32.gmra.mxu0 %v4176
    %v4223 = vpop.f32.mrf.mxu0
    %v4224 = vadd.f32 0.0, %v4223
    %4225 = vmatmul.f32.gmra.mxu0 %v4177
    %v4226 = vpop.f32.mrf.mxu0
    %v4227 = vadd.f32 0.0, %v4226
    %4228 = vmatmul.f32.gmra.mxu0 %v4178
    %v4229 = vpop.f32.mrf.mxu0
    %v4230 = vadd.f32 0.0, %v4229
    %4231 = vmatmul.f32.gmra.mxu0 %v4179
    %v4232 = vpop.f32.mrf.mxu0
    %v4233 = vadd.f32 0.0, %v4232
    %4234 = vmatmul.f32.gmra.mxu0 %v4180
    %v4235 = vpop.f32.mrf.mxu0
    %v4236 = vadd.f32 0.0, %v4235
    %4237 = vmatmul.f32.gmra.mxu0 %v4181
    %v4238 = vpop.f32.mrf.mxu0
    %v4239 = vadd.f32 0.0, %v4238
    %4240 = vmatmul.f32.gmra.mxu0 %v4182
    %v4241 = vpop.f32.mrf.mxu0
    %v4242 = vadd.f32 0.0, %v4241
    %4243 = vmatmul.f32.gmra.mxu0 %v4183
    %v4244 = vpop.f32.mrf.mxu0
    %v4245 = vadd.f32 0.0, %v4244
    %4246 = vmatmul.f32.gmra.mxu0 %v4184
    %v4247 = vpop.f32.mrf.mxu0
    %v4248 = vadd.f32 0.0, %v4247
    %4249 = vdwg.mxu0
    %v4250 = vperm.slane %v3672, 0
    %v4251 = vmul.f32 %v4203, %v4250
    %v4252 = vmul.f32 %v4206, %v4250
    %v4253 = vmul.f32 %v4209, %v4250
    %v4254 = vmul.f32 %v4212, %v4250
    %v4255 = vmul.f32 %v4215, %v4250
    %v4256 = vmul.f32 %v4218, %v4250
    %v4257 = vmul.f32 %v4221, %v4250
    %v4258 = vmul.f32 %v4224, %v4250
    %v4259 = vmul.f32 %v4227, %v4250
    %v4260 = vmul.f32 %v4230, %v4250
    %v4261 = vmul.f32 %v4233, %v4250
    %v4262 = vmul.f32 %v4236, %v4250
    %v4263 = vmul.f32 %v4239, %v4250
    %v4264 = vmul.f32 %v4242, %v4250
    %v4265 = vmul.f32 %v4245, %v4250
    %v4266 = vmul.f32 %v4248, %v4250
    %s4267 = scalar_lea.vmem %s9, 2
    %v4268 = vld [vmem:[%s4267] sm:$0x1]
    %v4270 = vperm.slane %v4268, 0
    %v4272 = vadd.f32 %v4251, %v4270
    %v4273 = vadd.f32 %v4252, %v4270
    %v4274 = vadd.f32 %v4253, %v4270
    %v4275 = vadd.f32 %v4254, %v4270
    %v4276 = vadd.f32 %v4255, %v4270
    %v4277 = vadd.f32 %v4256, %v4270
    %v4278 = vadd.f32 %v4257, %v4270
    %v4279 = vadd.f32 %v4258, %v4270
    %v4280 = vadd.f32 %v4259, %v4270
    %v4281 = vadd.f32 %v4260, %v4270
    %v4282 = vadd.f32 %v4261, %v4270
    %v4283 = vadd.f32 %v4262, %v4270
    %v4284 = vadd.f32 %v4263, %v4270
    %v4285 = vadd.f32 %v4264, %v4270
    %v4286 = vadd.f32 %v4265, %v4270
    %v4287 = vadd.f32 %v4266, %v4270
    %vm4288 = vcmp.ge.f32.partialorder %v4272, 0.0
    %vm4289 = vcmp.ge.f32.partialorder %v4273, 0.0
    %vm4290 = vcmp.ge.f32.partialorder %v4274, 0.0
    %vm4291 = vcmp.ge.f32.partialorder %v4275, 0.0
    %vm4292 = vcmp.ge.f32.partialorder %v4276, 0.0
    %vm4293 = vcmp.ge.f32.partialorder %v4277, 0.0
    %vm4294 = vcmp.ge.f32.partialorder %v4278, 0.0
    %vm4295 = vcmp.ge.f32.partialorder %v4279, 0.0
    %vm4296 = vcmp.ge.f32.partialorder %v4280, 0.0
    %vm4297 = vcmp.ge.f32.partialorder %v4281, 0.0
    %vm4298 = vcmp.ge.f32.partialorder %v4282, 0.0
    %vm4299 = vcmp.ge.f32.partialorder %v4283, 0.0
    %vm4300 = vcmp.ge.f32.partialorder %v4284, 0.0
    %vm4301 = vcmp.ge.f32.partialorder %v4285, 0.0
    %vm4302 = vcmp.ge.f32.partialorder %v4286, 0.0
    %vm4303 = vcmp.ge.f32.partialorder %v4287, 0.0
    %v4304 = vmul.f32 %v4272, 0.2
    %v4305 = vmul.f32 %v4273, 0.2
    %v4306 = vmul.f32 %v4274, 0.2
    %v4307 = vmul.f32 %v4275, 0.2
    %v4308 = vmul.f32 %v4276, 0.2
    %v4309 = vmul.f32 %v4277, 0.2
    %v4310 = vmul.f32 %v4278, 0.2
    %v4311 = vmul.f32 %v4279, 0.2
    %v4312 = vmul.f32 %v4280, 0.2
    %v4313 = vmul.f32 %v4281, 0.2
    %v4314 = vmul.f32 %v4282, 0.2
    %v4315 = vmul.f32 %v4283, 0.2
    %v4316 = vmul.f32 %v4284, 0.2
    %v4317 = vmul.f32 %v4285, 0.2
    %v4318 = vmul.f32 %v4286, 0.2
    %v4319 = vmul.f32 %v4287, 0.2
    %v4320 = vsel %vm4288, %v4272, %v4304
    %v4321 = vsel %vm4289, %v4273, %v4305
    %v4322 = vsel %vm4290, %v4274, %v4306
    %v4323 = vsel %vm4291, %v4275, %v4307
    %v4324 = vsel %vm4292, %v4276, %v4308
    %v4325 = vsel %vm4293, %v4277, %v4309
    %v4326 = vsel %vm4294, %v4278, %v4310
    %v4327 = vsel %vm4295, %v4279, %v4311
    %v4328 = vsel %vm4296, %v4280, %v4312
    %v4329 = vsel %vm4297, %v4281, %v4313
    %v4330 = vsel %vm4298, %v4282, %v4314
    %v4331 = vsel %vm4299, %v4283, %v4315
    %v4332 = vsel %vm4300, %v4284, %v4316
    %v4333 = vsel %vm4301, %v4285, %v4317
    %v4334 = vsel %vm4302, %v4286, %v4318
    %v4335 = vsel %vm4303, %v4287, %v4319
    %v4336 = vmul.f32 %v4320, 1.4142135
    %v4337 = vmul.f32 %v4321, 1.4142135
    %v4338 = vmul.f32 %v4322, 1.4142135
    %v4339 = vmul.f32 %v4323, 1.4142135
    %v4340 = vmul.f32 %v4324, 1.4142135
    %v4341 = vmul.f32 %v4325, 1.4142135
    %v4342 = vmul.f32 %v4326, 1.4142135
    %v4343 = vmul.f32 %v4327, 1.4142135
    %v4344 = vmul.f32 %v4328, 1.4142135
    %v4345 = vmul.f32 %v4329, 1.4142135
    %v4346 = vmul.f32 %v4330, 1.4142135
    %v4347 = vmul.f32 %v4331, 1.4142135
    %v4348 = vmul.f32 %v4332, 1.4142135
    %v4349 = vmul.f32 %v4333, 1.4142135
    %v4350 = vmul.f32 %v4334, 1.4142135
    %v4351 = vmul.f32 %v4335, 1.4142135
    %v4352 = vperm.slane %v3480, 0
    %v4353 = vmul.f32 %v4336, %v4352
    %v4354 = vmul.f32 %v4337, %v4352
    %v4355 = vmul.f32 %v4338, %v4352
    %v4356 = vmul.f32 %v4339, %v4352
    %v4357 = vmul.f32 %v4340, %v4352
    %v4358 = vmul.f32 %v4341, %v4352
    %v4359 = vmul.f32 %v4342, %v4352
    %v4360 = vmul.f32 %v4343, %v4352
    %v4361 = vmul.f32 %v4344, %v4352
    %v4362 = vmul.f32 %v4345, %v4352
    %v4363 = vmul.f32 %v4346, %v4352
    %v4364 = vmul.f32 %v4347, %v4352
    %v4365 = vmul.f32 %v4348, %v4352
    %v4366 = vmul.f32 %v4349, %v4352
    %v4367 = vmul.f32 %v4350, %v4352
    %v4368 = vmul.f32 %v4351, %v4352
    %4369 = vmatpush.msra.mxu0 %v3689
    %4370 = vmatpush.msra.mxu0 %v3688
    %4371 = vmatpush.msra.mxu0 %v3687
    %4372 = vmatpush.msra.mxu0 %v3686
    %4373 = vmatpush.msra.mxu0 %v3685
    %4374 = vmatpush.msra.mxu0 %v3684
    %4375 = vmatpush.msra.mxu0 %v3683
    %4376 = vmatpush.msra.mxu0 %v3682
    %4377 = vmatpush.msra.mxu0 %v3681
    %4378 = vmatpush.msra.mxu0 %v3680
    %4379 = vmatpush.msra.mxu0 %v3679
    %4380 = vmatpush.msra.mxu0 %v3678
    %4381 = vmatpush.msra.mxu0 %v3677
    %4382 = vmatpush.msra.mxu0 %v3676
    %4383 = vmatpush.msra.mxu0 %v3675
    %4384 = vmatpush.msra.mxu0 %v3674
    %4385 = vmatmul.f32.gmra.mxu0 %v4353
    %v4386 = vpop.f32.mrf.mxu0
    %v4387 = vadd.f32 0.0, %v4386
    %4388 = vmatmul.f32.gmra.mxu0 %v4354
    %v4389 = vpop.f32.mrf.mxu0
    %v4390 = vadd.f32 0.0, %v4389
    %4391 = vmatmul.f32.gmra.mxu0 %v4355
    %v4392 = vpop.f32.mrf.mxu0
    %v4393 = vadd.f32 0.0, %v4392
    %4394 = vmatmul.f32.gmra.mxu0 %v4356
    %v4395 = vpop.f32.mrf.mxu0
    %v4396 = vadd.f32 0.0, %v4395
    %4397 = vmatmul.f32.gmra.mxu0 %v4357
    %v4398 = vpop.f32.mrf.mxu0
    %v4399 = vadd.f32 0.0, %v4398
    %4400 = vmatmul.f32.gmra.mxu0 %v4358
    %v4401 = vpop.f32.mrf.mxu0
    %v4402 = vadd.f32 0.0, %v4401
    %4403 = vmatmul.f32.gmra.mxu0 %v4359
    %v4404 = vpop.f32.mrf.mxu0
    %v4405 = vadd.f32 0.0, %v4404
    %4406 = vmatmul.f32.gmra.mxu0 %v4360
    %v4407 = vpop.f32.mrf.mxu0
    %v4408 = vadd.f32 0.0, %v4407
    %4409 = vmatmul.f32.gmra.mxu0 %v4361
    %v4410 = vpop.f32.mrf.mxu0
    %v4411 = vadd.f32 0.0, %v4410
    %4412 = vmatmul.f32.gmra.mxu0 %v4362
    %v4413 = vpop.f32.mrf.mxu0
    %v4414 = vadd.f32 0.0, %v4413
    %4415 = vmatmul.f32.gmra.mxu0 %v4363
    %v4416 = vpop.f32.mrf.mxu0
    %v4417 = vadd.f32 0.0, %v4416
    %4418 = vmatmul.f32.gmra.mxu0 %v4364
    %v4419 = vpop.f32.mrf.mxu0
    %v4420 = vadd.f32 0.0, %v4419
    %4421 = vmatmul.f32.gmra.mxu0 %v4365
    %v4422 = vpop.f32.mrf.mxu0
    %v4423 = vadd.f32 0.0, %v4422
    %4424 = vmatmul.f32.gmra.mxu0 %v4366
    %v4425 = vpop.f32.mrf.mxu0
    %v4426 = vadd.f32 0.0, %v4425
    %4427 = vmatmul.f32.gmra.mxu0 %v4367
    %v4428 = vpop.f32.mrf.mxu0
    %v4429 = vadd.f32 0.0, %v4428
    %4430 = vmatmul.f32.gmra.mxu0 %v4368
    %v4431 = vpop.f32.mrf.mxu0
    %v4432 = vadd.f32 0.0, %v4431
    %4433 = vdwg.mxu0
    %v4434 = vperm.slane %v3736, 0
    %v4435 = vmul.f32 %v4387, %v4434
    %v4436 = vmul.f32 %v4390, %v4434
    %v4437 = vmul.f32 %v4393, %v4434
    %v4438 = vmul.f32 %v4396, %v4434
    %v4439 = vmul.f32 %v4399, %v4434
    %v4440 = vmul.f32 %v4402, %v4434
    %v4441 = vmul.f32 %v4405, %v4434
    %v4442 = vmul.f32 %v4408, %v4434
    %v4443 = vmul.f32 %v4411, %v4434
    %v4444 = vmul.f32 %v4414, %v4434
    %v4445 = vmul.f32 %v4417, %v4434
    %v4446 = vmul.f32 %v4420, %v4434
    %v4447 = vmul.f32 %v4423, %v4434
    %v4448 = vmul.f32 %v4426, %v4434
    %v4449 = vmul.f32 %v4429, %v4434
    %v4450 = vmul.f32 %v4432, %v4434
    %s4451 = scalar_lea.vmem %s9, 3
    %v4452 = vld [vmem:[%s4451] sm:$0x1]
    %v4454 = vperm.slane %v4452, 0
    %v4456 = vadd.f32 %v4435, %v4454
    %v4457 = vadd.f32 %v4436, %v4454
    %v4458 = vadd.f32 %v4437, %v4454
    %v4459 = vadd.f32 %v4438, %v4454
    %v4460 = vadd.f32 %v4439, %v4454
    %v4461 = vadd.f32 %v4440, %v4454
    %v4462 = vadd.f32 %v4441, %v4454
    %v4463 = vadd.f32 %v4442, %v4454
    %v4464 = vadd.f32 %v4443, %v4454
    %v4465 = vadd.f32 %v4444, %v4454
    %v4466 = vadd.f32 %v4445, %v4454
    %v4467 = vadd.f32 %v4446, %v4454
    %v4468 = vadd.f32 %v4447, %v4454
    %v4469 = vadd.f32 %v4448, %v4454
    %v4470 = vadd.f32 %v4449, %v4454
    %v4471 = vadd.f32 %v4450, %v4454
    %vm4472 = vcmp.ge.f32.partialorder %v4456, 0.0
    %vm4473 = vcmp.ge.f32.partialorder %v4457, 0.0
    %vm4474 = vcmp.ge.f32.partialorder %v4458, 0.0
    %vm4475 = vcmp.ge.f32.partialorder %v4459, 0.0
    %vm4476 = vcmp.ge.f32.partialorder %v4460, 0.0
    %vm4477 = vcmp.ge.f32.partialorder %v4461, 0.0
    %vm4478 = vcmp.ge.f32.partialorder %v4462, 0.0
    %vm4479 = vcmp.ge.f32.partialorder %v4463, 0.0
    %vm4480 = vcmp.ge.f32.partialorder %v4464, 0.0
    %vm4481 = vcmp.ge.f32.partialorder %v4465, 0.0
    %vm4482 = vcmp.ge.f32.partialorder %v4466, 0.0
    %vm4483 = vcmp.ge.f32.partialorder %v4467, 0.0
    %vm4484 = vcmp.ge.f32.partialorder %v4468, 0.0
    %vm4485 = vcmp.ge.f32.partialorder %v4469, 0.0
    %vm4486 = vcmp.ge.f32.partialorder %v4470, 0.0
    %vm4487 = vcmp.ge.f32.partialorder %v4471, 0.0
    %v4488 = vmul.f32 %v4456, 0.2
    %v4489 = vmul.f32 %v4457, 0.2
    %v4490 = vmul.f32 %v4458, 0.2
    %v4491 = vmul.f32 %v4459, 0.2
    %v4492 = vmul.f32 %v4460, 0.2
    %v4493 = vmul.f32 %v4461, 0.2
    %v4494 = vmul.f32 %v4462, 0.2
    %v4495 = vmul.f32 %v4463, 0.2
    %v4496 = vmul.f32 %v4464, 0.2
    %v4497 = vmul.f32 %v4465, 0.2
    %v4498 = vmul.f32 %v4466, 0.2
    %v4499 = vmul.f32 %v4467, 0.2
    %v4500 = vmul.f32 %v4468, 0.2
    %v4501 = vmul.f32 %v4469, 0.2
    %v4502 = vmul.f32 %v4470, 0.2
    %v4503 = vmul.f32 %v4471, 0.2
    %v4504 = vsel %vm4472, %v4456, %v4488
    %v4505 = vsel %vm4473, %v4457, %v4489
    %v4506 = vsel %vm4474, %v4458, %v4490
    %v4507 = vsel %vm4475, %v4459, %v4491
    %v4508 = vsel %vm4476, %v4460, %v4492
    %v4509 = vsel %vm4477, %v4461, %v4493
    %v4510 = vsel %vm4478, %v4462, %v4494
    %v4511 = vsel %vm4479, %v4463, %v4495
    %v4512 = vsel %vm4480, %v4464, %v4496
    %v4513 = vsel %vm4481, %v4465, %v4497
    %v4514 = vsel %vm4482, %v4466, %v4498
    %v4515 = vsel %vm4483, %v4467, %v4499
    %v4516 = vsel %vm4484, %v4468, %v4500
    %v4517 = vsel %vm4485, %v4469, %v4501
    %v4518 = vsel %vm4486, %v4470, %v4502
    %v4519 = vsel %vm4487, %v4471, %v4503
    %v4520 = vmul.f32 %v4504, 1.4142135
    %v4521 = vmul.f32 %v4505, 1.4142135
    %v4522 = vmul.f32 %v4506, 1.4142135
    %v4523 = vmul.f32 %v4507, 1.4142135
    %v4524 = vmul.f32 %v4508, 1.4142135
    %v4525 = vmul.f32 %v4509, 1.4142135
    %v4526 = vmul.f32 %v4510, 1.4142135
    %v4527 = vmul.f32 %v4511, 1.4142135
    %v4528 = vmul.f32 %v4512, 1.4142135
    %v4529 = vmul.f32 %v4513, 1.4142135
    %v4530 = vmul.f32 %v4514, 1.4142135
    %v4531 = vmul.f32 %v4515, 1.4142135
    %v4532 = vmul.f32 %v4516, 1.4142135
    %v4533 = vmul.f32 %v4517, 1.4142135
    %v4534 = vmul.f32 %v4518, 1.4142135
    %v4535 = vmul.f32 %v4519, 1.4142135
    %v4536 = vperm.slane %v3481, 0
    %v4537 = vmul.f32 %v4520, %v4536
    %v4538 = vmul.f32 %v4521, %v4536
    %v4539 = vmul.f32 %v4522, %v4536
    %v4540 = vmul.f32 %v4523, %v4536
    %v4541 = vmul.f32 %v4524, %v4536
    %v4542 = vmul.f32 %v4525, %v4536
    %v4543 = vmul.f32 %v4526, %v4536
    %v4544 = vmul.f32 %v4527, %v4536
    %v4545 = vmul.f32 %v4528, %v4536
    %v4546 = vmul.f32 %v4529, %v4536
    %v4547 = vmul.f32 %v4530, %v4536
    %v4548 = vmul.f32 %v4531, %v4536
    %v4549 = vmul.f32 %v4532, %v4536
    %v4550 = vmul.f32 %v4533, %v4536
    %v4551 = vmul.f32 %v4534, %v4536
    %v4552 = vmul.f32 %v4535, %v4536
    %4553 = vmatpush.msra.mxu0 %v3753
    %4554 = vmatpush.msra.mxu0 %v3752
    %4555 = vmatpush.msra.mxu0 %v3751
    %4556 = vmatpush.msra.mxu0 %v3750
    %4557 = vmatpush.msra.mxu0 %v3749
    %4558 = vmatpush.msra.mxu0 %v3748
    %4559 = vmatpush.msra.mxu0 %v3747
    %4560 = vmatpush.msra.mxu0 %v3746
    %4561 = vmatpush.msra.mxu0 %v3745
    %4562 = vmatpush.msra.mxu0 %v3744
    %4563 = vmatpush.msra.mxu0 %v3743
    %4564 = vmatpush.msra.mxu0 %v3742
    %4565 = vmatpush.msra.mxu0 %v3741
    %4566 = vmatpush.msra.mxu0 %v3740
    %4567 = vmatpush.msra.mxu0 %v3739
    %4568 = vmatpush.msra.mxu0 %v3738
    %4569 = vmatmul.f32.gmra.mxu0 %v4537
    %v4570 = vpop.f32.mrf.mxu0
    %v4571 = vadd.f32 0.0, %v4570
    %4572 = vmatmul.f32.gmra.mxu0 %v4538
    %v4573 = vpop.f32.mrf.mxu0
    %v4574 = vadd.f32 0.0, %v4573
    %4575 = vmatmul.f32.gmra.mxu0 %v4539
    %v4576 = vpop.f32.mrf.mxu0
    %v4577 = vadd.f32 0.0, %v4576
    %4578 = vmatmul.f32.gmra.mxu0 %v4540
    %v4579 = vpop.f32.mrf.mxu0
    %v4580 = vadd.f32 0.0, %v4579
    %4581 = vmatmul.f32.gmra.mxu0 %v4541
    %v4582 = vpop.f32.mrf.mxu0
    %v4583 = vadd.f32 0.0, %v4582
    %4584 = vmatmul.f32.gmra.mxu0 %v4542
    %v4585 = vpop.f32.mrf.mxu0
    %v4586 = vadd.f32 0.0, %v4585
    %4587 = vmatmul.f32.gmra.mxu0 %v4543
    %v4588 = vpop.f32.mrf.mxu0
    %v4589 = vadd.f32 0.0, %v4588
    %4590 = vmatmul.f32.gmra.mxu0 %v4544
    %v4591 = vpop.f32.mrf.mxu0
    %v4592 = vadd.f32 0.0, %v4591
    %4593 = vmatmul.f32.gmra.mxu0 %v4545
    %v4594 = vpop.f32.mrf.mxu0
    %v4595 = vadd.f32 0.0, %v4594
    %4596 = vmatmul.f32.gmra.mxu0 %v4546
    %v4597 = vpop.f32.mrf.mxu0
    %v4598 = vadd.f32 0.0, %v4597
    %4599 = vmatmul.f32.gmra.mxu0 %v4547
    %v4600 = vpop.f32.mrf.mxu0
    %v4601 = vadd.f32 0.0, %v4600
    %4602 = vmatmul.f32.gmra.mxu0 %v4548
    %v4603 = vpop.f32.mrf.mxu0
    %v4604 = vadd.f32 0.0, %v4603
    %4605 = vmatmul.f32.gmra.mxu0 %v4549
    %v4606 = vpop.f32.mrf.mxu0
    %v4607 = vadd.f32 0.0, %v4606
    %4608 = vmatmul.f32.gmra.mxu0 %v4550
    %v4609 = vpop.f32.mrf.mxu0
    %v4610 = vadd.f32 0.0, %v4609
    %4611 = vmatmul.f32.gmra.mxu0 %v4551
    %v4612 = vpop.f32.mrf.mxu0
    %v4613 = vadd.f32 0.0, %v4612
    %4614 = vmatmul.f32.gmra.mxu0 %v4552
    %v4615 = vpop.f32.mrf.mxu0
    %v4616 = vadd.f32 0.0, %v4615
    %4617 = vdwg.mxu0
    %v4618 = vperm.slane %v3800, 0
    %v4619 = vmul.f32 %v4571, %v4618
    %v4620 = vmul.f32 %v4574, %v4618
    %v4621 = vmul.f32 %v4577, %v4618
    %v4622 = vmul.f32 %v4580, %v4618
    %v4623 = vmul.f32 %v4583, %v4618
    %v4624 = vmul.f32 %v4586, %v4618
    %v4625 = vmul.f32 %v4589, %v4618
    %v4626 = vmul.f32 %v4592, %v4618
    %v4627 = vmul.f32 %v4595, %v4618
    %v4628 = vmul.f32 %v4598, %v4618
    %v4629 = vmul.f32 %v4601, %v4618
    %v4630 = vmul.f32 %v4604, %v4618
    %v4631 = vmul.f32 %v4607, %v4618
    %v4632 = vmul.f32 %v4610, %v4618
    %v4633 = vmul.f32 %v4613, %v4618
    %v4634 = vmul.f32 %v4616, %v4618
    %s4635 = scalar_lea.vmem %s9, 4
    %v4636 = vld [vmem:[%s4635] sm:$0x1]
    %v4638 = vperm.slane %v4636, 0
    %v4640 = vadd.f32 %v4619, %v4638
    %v4641 = vadd.f32 %v4620, %v4638
    %v4642 = vadd.f32 %v4621, %v4638
    %v4643 = vadd.f32 %v4622, %v4638
    %v4644 = vadd.f32 %v4623, %v4638
    %v4645 = vadd.f32 %v4624, %v4638
    %v4646 = vadd.f32 %v4625, %v4638
    %v4647 = vadd.f32 %v4626, %v4638
    %v4648 = vadd.f32 %v4627, %v4638
    %v4649 = vadd.f32 %v4628, %v4638
    %v4650 = vadd.f32 %v4629, %v4638
    %v4651 = vadd.f32 %v4630, %v4638
    %v4652 = vadd.f32 %v4631, %v4638
    %v4653 = vadd.f32 %v4632, %v4638
    %v4654 = vadd.f32 %v4633, %v4638
    %v4655 = vadd.f32 %v4634, %v4638
    %v4656 = vxor.u32 %v4640, 2147483648
    %v4657 = vxor.u32 %v4641, 2147483648
    %v4658 = vxor.u32 %v4642, 2147483648
    %v4659 = vxor.u32 %v4643, 2147483648
    %v4660 = vxor.u32 %v4644, 2147483648
    %v4661 = vxor.u32 %v4645, 2147483648
    %v4662 = vxor.u32 %v4646, 2147483648
    %v4663 = vxor.u32 %v4647, 2147483648
    %v4664 = vxor.u32 %v4648, 2147483648
    %v4665 = vxor.u32 %v4649, 2147483648
    %v4666 = vxor.u32 %v4650, 2147483648
    %v4667 = vxor.u32 %v4651, 2147483648
    %v4668 = vxor.u32 %v4652, 2147483648
    %v4669 = vxor.u32 %v4653, 2147483648
    %v4670 = vxor.u32 %v4654, 2147483648
    %v4671 = vxor.u32 %v4655, 2147483648
    %v4672 = vmul.f32 %v4656, 1.442695
    %v4673 = vpow.pop %v4672
    %v4674 = vmul.f32 %v4657, 1.442695
    %v4675 = vpow.pop %v4674
    %v4676 = vmul.f32 %v4658, 1.442695
    %v4677 = vpow.pop %v4676
    %v4678 = vmul.f32 %v4659, 1.442695
    %v4679 = vpow.pop %v4678
    %v4680 = vmul.f32 %v4660, 1.442695
    %v4681 = vpow.pop %v4680
    %v4682 = vmul.f32 %v4661, 1.442695
    %v4683 = vpow.pop %v4682
    %v4684 = vmul.f32 %v4662, 1.442695
    %v4685 = vpow.pop %v4684
    %v4686 = vmul.f32 %v4663, 1.442695
    %v4687 = vpow.pop %v4686
    %v4688 = vmul.f32 %v4664, 1.442695
    %v4689 = vpow.pop %v4688
    %v4690 = vmul.f32 %v4665, 1.442695
    %v4691 = vpow.pop %v4690
    %v4692 = vmul.f32 %v4666, 1.442695
    %v4693 = vpow.pop %v4692
    %v4694 = vmul.f32 %v4667, 1.442695
    %v4695 = vpow.pop %v4694
    %v4696 = vmul.f32 %v4668, 1.442695
    %v4697 = vpow.pop %v4696
    %v4698 = vmul.f32 %v4669, 1.442695
    %v4699 = vpow.pop %v4698
    %v4700 = vmul.f32 %v4670, 1.442695
    %v4701 = vpow.pop %v4700
    %v4702 = vmul.f32 %v4671, 1.442695
    %v4703 = vpow.pop %v4702
    %v4704 = vadd.f32 %v4673, 1.0
    %v4705 = vadd.f32 %v4675, 1.0
    %v4706 = vadd.f32 %v4677, 1.0
    %v4707 = vadd.f32 %v4679, 1.0
    %v4708 = vadd.f32 %v4681, 1.0
    %v4709 = vadd.f32 %v4683, 1.0
    %v4710 = vadd.f32 %v4685, 1.0
    %v4711 = vadd.f32 %v4687, 1.0
    %v4712 = vadd.f32 %v4689, 1.0
    %v4713 = vadd.f32 %v4691, 1.0
    %v4714 = vadd.f32 %v4693, 1.0
    %v4715 = vadd.f32 %v4695, 1.0
    %v4716 = vadd.f32 %v4697, 1.0
    %v4717 = vadd.f32 %v4699, 1.0
    %v4718 = vadd.f32 %v4701, 1.0
    %v4719 = vadd.f32 %v4703, 1.0
    %v4720 = vrcp.pop %v4704
    %v4721 = vmul.f32 %v4704, %v4720
    %v4722 = vsub.f32 1.0, %v4721
    %v4723 = vmul.f32 %v4720, %v4722
    %v4724 = vadd.f32 %v4720, %v4723
    %vm4725 = vweird.f32 %v4704
    %vm4726 = vweird.f32 %v4720
    %vm4727 = vmor %vm4725, %vm4726
    %v4728 = vsel %vm4727, %v4720, %v4724
    %v4729 = vand.u32 2147483647, %v4704
    %vm4730 = vcmp.eq.f32.partialorder %v4729, 8.507059e+37
    %v4731 = vand.u32 %v4704, 2147483648
    %v4732 = vor.u32 1.1754944e-38, %v4731
    %v4733 = vsel %vm4730, %v4732, %v4728
    %v4734 = vmul.f32 1.0, %v4733
    %v4735 = vrcp.pop %v4705
    %v4736 = vmul.f32 %v4705, %v4735
    %v4737 = vsub.f32 1.0, %v4736
    %v4738 = vmul.f32 %v4735, %v4737
    %v4739 = vadd.f32 %v4735, %v4738
    %vm4740 = vweird.f32 %v4705
    %vm4741 = vweird.f32 %v4735
    %vm4742 = vmor %vm4740, %vm4741
    %v4743 = vsel %vm4742, %v4735, %v4739
    %v4744 = vand.u32 2147483647, %v4705
    %vm4745 = vcmp.eq.f32.partialorder %v4744, 8.507059e+37
    %v4746 = vand.u32 %v4705, 2147483648
    %v4747 = vor.u32 1.1754944e-38, %v4746
    %v4748 = vsel %vm4745, %v4747, %v4743
    %v4749 = vmul.f32 1.0, %v4748
    %v4750 = vrcp.pop %v4706
    %v4751 = vmul.f32 %v4706, %v4750
    %v4752 = vsub.f32 1.0, %v4751
    %v4753 = vmul.f32 %v4750, %v4752
    %v4754 = vadd.f32 %v4750, %v4753
    %vm4755 = vweird.f32 %v4706
    %vm4756 = vweird.f32 %v4750
    %vm4757 = vmor %vm4755, %vm4756
    %v4758 = vsel %vm4757, %v4750, %v4754
    %v4759 = vand.u32 2147483647, %v4706
    %vm4760 = vcmp.eq.f32.partialorder %v4759, 8.507059e+37
    %v4761 = vand.u32 %v4706, 2147483648
    %v4762 = vor.u32 1.1754944e-38, %v4761
    %v4763 = vsel %vm4760, %v4762, %v4758
    %v4764 = vmul.f32 1.0, %v4763
    %v4765 = vrcp.pop %v4707
    %v4766 = vmul.f32 %v4707, %v4765
    %v4767 = vsub.f32 1.0, %v4766
    %v4768 = vmul.f32 %v4765, %v4767
    %v4769 = vadd.f32 %v4765, %v4768
    %vm4770 = vweird.f32 %v4707
    %vm4771 = vweird.f32 %v4765
    %vm4772 = vmor %vm4770, %vm4771
    %v4773 = vsel %vm4772, %v4765, %v4769
    %v4774 = vand.u32 2147483647, %v4707
    %vm4775 = vcmp.eq.f32.partialorder %v4774, 8.507059e+37
    %v4776 = vand.u32 %v4707, 2147483648
    %v4777 = vor.u32 1.1754944e-38, %v4776
    %v4778 = vsel %vm4775, %v4777, %v4773
    %v4779 = vmul.f32 1.0, %v4778
    %v4780 = vrcp.pop %v4708
    %v4781 = vmul.f32 %v4708, %v4780
    %v4782 = vsub.f32 1.0, %v4781
    %v4783 = vmul.f32 %v4780, %v4782
    %v4784 = vadd.f32 %v4780, %v4783
    %vm4785 = vweird.f32 %v4708
    %vm4786 = vweird.f32 %v4780
    %vm4787 = vmor %vm4785, %vm4786
    %v4788 = vsel %vm4787, %v4780, %v4784
    %v4789 = vand.u32 2147483647, %v4708
    %vm4790 = vcmp.eq.f32.partialorder %v4789, 8.507059e+37
    %v4791 = vand.u32 %v4708, 2147483648
    %v4792 = vor.u32 1.1754944e-38, %v4791
    %v4793 = vsel %vm4790, %v4792, %v4788
    %v4794 = vmul.f32 1.0, %v4793
    %v4795 = vrcp.pop %v4709
    %v4796 = vmul.f32 %v4709, %v4795
    %v4797 = vsub.f32 1.0, %v4796
    %v4798 = vmul.f32 %v4795, %v4797
    %v4799 = vadd.f32 %v4795, %v4798
    %vm4800 = vweird.f32 %v4709
    %vm4801 = vweird.f32 %v4795
    %vm4802 = vmor %vm4800, %vm4801
    %v4803 = vsel %vm4802, %v4795, %v4799
    %v4804 = vand.u32 2147483647, %v4709
    %vm4805 = vcmp.eq.f32.partialorder %v4804, 8.507059e+37
    %v4806 = vand.u32 %v4709, 2147483648
    %v4807 = vor.u32 1.1754944e-38, %v4806
    %v4808 = vsel %vm4805, %v4807, %v4803
    %v4809 = vmul.f32 1.0, %v4808
    %v4810 = vrcp.pop %v4710
    %v4811 = vmul.f32 %v4710, %v4810
    %v4812 = vsub.f32 1.0, %v4811
    %v4813 = vmul.f32 %v4810, %v4812
    %v4814 = vadd.f32 %v4810, %v4813
    %vm4815 = vweird.f32 %v4710
    %vm4816 = vweird.f32 %v4810
    %vm4817 = vmor %vm4815, %vm4816
    %v4818 = vsel %vm4817, %v4810, %v4814
    %v4819 = vand.u32 2147483647, %v4710
    %vm4820 = vcmp.eq.f32.partialorder %v4819, 8.507059e+37
    %v4821 = vand.u32 %v4710, 2147483648
    %v4822 = vor.u32 1.1754944e-38, %v4821
    %v4823 = vsel %vm4820, %v4822, %v4818
    %v4824 = vmul.f32 1.0, %v4823
    %v4825 = vrcp.pop %v4711
    %v4826 = vmul.f32 %v4711, %v4825
    %v4827 = vsub.f32 1.0, %v4826
    %v4828 = vmul.f32 %v4825, %v4827
    %v4829 = vadd.f32 %v4825, %v4828
    %vm4830 = vweird.f32 %v4711
    %vm4831 = vweird.f32 %v4825
    %vm4832 = vmor %vm4830, %vm4831
    %v4833 = vsel %vm4832, %v4825, %v4829
    %v4834 = vand.u32 2147483647, %v4711
    %vm4835 = vcmp.eq.f32.partialorder %v4834, 8.507059e+37
    %v4836 = vand.u32 %v4711, 2147483648
    %v4837 = vor.u32 1.1754944e-38, %v4836
    %v4838 = vsel %vm4835, %v4837, %v4833
    %v4839 = vmul.f32 1.0, %v4838
    %v4840 = vrcp.pop %v4712
    %v4841 = vmul.f32 %v4712, %v4840
    %v4842 = vsub.f32 1.0, %v4841
    %v4843 = vmul.f32 %v4840, %v4842
    %v4844 = vadd.f32 %v4840, %v4843
    %vm4845 = vweird.f32 %v4712
    %vm4846 = vweird.f32 %v4840
    %vm4847 = vmor %vm4845, %vm4846
    %v4848 = vsel %vm4847, %v4840, %v4844
    %v4849 = vand.u32 2147483647, %v4712
    %vm4850 = vcmp.eq.f32.partialorder %v4849, 8.507059e+37
    %v4851 = vand.u32 %v4712, 2147483648
    %v4852 = vor.u32 1.1754944e-38, %v4851
    %v4853 = vsel %vm4850, %v4852, %v4848
    %v4854 = vmul.f32 1.0, %v4853
    %v4855 = vrcp.pop %v4713
    %v4856 = vmul.f32 %v4713, %v4855
    %v4857 = vsub.f32 1.0, %v4856
    %v4858 = vmul.f32 %v4855, %v4857
    %v4859 = vadd.f32 %v4855, %v4858
    %vm4860 = vweird.f32 %v4713
    %vm4861 = vweird.f32 %v4855
    %vm4862 = vmor %vm4860, %vm4861
    %v4863 = vsel %vm4862, %v4855, %v4859
    %v4864 = vand.u32 2147483647, %v4713
    %vm4865 = vcmp.eq.f32.partialorder %v4864, 8.507059e+37
    %v4866 = vand.u32 %v4713, 2147483648
    %v4867 = vor.u32 1.1754944e-38, %v4866
    %v4868 = vsel %vm4865, %v4867, %v4863
    %v4869 = vmul.f32 1.0, %v4868
    %v4870 = vrcp.pop %v4714
    %v4871 = vmul.f32 %v4714, %v4870
    %v4872 = vsub.f32 1.0, %v4871
    %v4873 = vmul.f32 %v4870, %v4872
    %v4874 = vadd.f32 %v4870, %v4873
    %vm4875 = vweird.f32 %v4714
    %vm4876 = vweird.f32 %v4870
    %vm4877 = vmor %vm4875, %vm4876
    %v4878 = vsel %vm4877, %v4870, %v4874
    %v4879 = vand.u32 2147483647, %v4714
    %vm4880 = vcmp.eq.f32.partialorder %v4879, 8.507059e+37
    %v4881 = vand.u32 %v4714, 2147483648
    %v4882 = vor.u32 1.1754944e-38, %v4881
    %v4883 = vsel %vm4880, %v4882, %v4878
    %v4884 = vmul.f32 1.0, %v4883
    %v4885 = vrcp.pop %v4715
    %v4886 = vmul.f32 %v4715, %v4885
    %v4887 = vsub.f32 1.0, %v4886
    %v4888 = vmul.f32 %v4885, %v4887
    %v4889 = vadd.f32 %v4885, %v4888
    %vm4890 = vweird.f32 %v4715
    %vm4891 = vweird.f32 %v4885
    %vm4892 = vmor %vm4890, %vm4891
    %v4893 = vsel %vm4892, %v4885, %v4889
    %v4894 = vand.u32 2147483647, %v4715
    %vm4895 = vcmp.eq.f32.partialorder %v4894, 8.507059e+37
    %v4896 = vand.u32 %v4715, 2147483648
    %v4897 = vor.u32 1.1754944e-38, %v4896
    %v4898 = vsel %vm4895, %v4897, %v4893
    %v4899 = vmul.f32 1.0, %v4898
    %v4900 = vrcp.pop %v4716
    %v4901 = vmul.f32 %v4716, %v4900
    %v4902 = vsub.f32 1.0, %v4901
    %v4903 = vmul.f32 %v4900, %v4902
    %v4904 = vadd.f32 %v4900, %v4903
    %vm4905 = vweird.f32 %v4716
    %vm4906 = vweird.f32 %v4900
    %vm4907 = vmor %vm4905, %vm4906
    %v4908 = vsel %vm4907, %v4900, %v4904
    %v4909 = vand.u32 2147483647, %v4716
    %vm4910 = vcmp.eq.f32.partialorder %v4909, 8.507059e+37
    %v4911 = vand.u32 %v4716, 2147483648
    %v4912 = vor.u32 1.1754944e-38, %v4911
    %v4913 = vsel %vm4910, %v4912, %v4908
    %v4914 = vmul.f32 1.0, %v4913
    %v4915 = vrcp.pop %v4717
    %v4916 = vmul.f32 %v4717, %v4915
    %v4917 = vsub.f32 1.0, %v4916
    %v4918 = vmul.f32 %v4915, %v4917
    %v4919 = vadd.f32 %v4915, %v4918
    %vm4920 = vweird.f32 %v4717
    %vm4921 = vweird.f32 %v4915
    %vm4922 = vmor %vm4920, %vm4921
    %v4923 = vsel %vm4922, %v4915, %v4919
    %v4924 = vand.u32 2147483647, %v4717
    %vm4925 = vcmp.eq.f32.partialorder %v4924, 8.507059e+37
    %v4926 = vand.u32 %v4717, 2147483648
    %v4927 = vor.u32 1.1754944e-38, %v4926
    %v4928 = vsel %vm4925, %v4927, %v4923
    %v4929 = vmul.f32 1.0, %v4928
    %v4930 = vrcp.pop %v4718
    %v4931 = vmul.f32 %v4718, %v4930
    %v4932 = vsub.f32 1.0, %v4931
    %v4933 = vmul.f32 %v4930, %v4932
    %v4934 = vadd.f32 %v4930, %v4933
    %vm4935 = vweird.f32 %v4718
    %vm4936 = vweird.f32 %v4930
    %vm4937 = vmor %vm4935, %vm4936
    %v4938 = vsel %vm4937, %v4930, %v4934
    %v4939 = vand.u32 2147483647, %v4718
    %vm4940 = vcmp.eq.f32.partialorder %v4939, 8.507059e+37
    %v4941 = vand.u32 %v4718, 2147483648
    %v4942 = vor.u32 1.1754944e-38, %v4941
    %v4943 = vsel %vm4940, %v4942, %v4938
    %v4944 = vmul.f32 1.0, %v4943
    %v4945 = vrcp.pop %v4719
    %v4946 = vmul.f32 %v4719, %v4945
    %v4947 = vsub.f32 1.0, %v4946
    %v4948 = vmul.f32 %v4945, %v4947
    %v4949 = vadd.f32 %v4945, %v4948
    %vm4950 = vweird.f32 %v4719
    %vm4951 = vweird.f32 %v4945
    %vm4952 = vmor %vm4950, %vm4951
    %v4953 = vsel %vm4952, %v4945, %v4949
    %v4954 = vand.u32 2147483647, %v4719
    %vm4955 = vcmp.eq.f32.partialorder %v4954, 8.507059e+37
    %v4956 = vand.u32 %v4719, 2147483648
    %v4957 = vor.u32 1.1754944e-38, %v4956
    %v4958 = vsel %vm4955, %v4957, %v4953
    %v4959 = vmul.f32 1.0, %v4958
    %4960 = vxpose.xlu0.b32.start [1/16] %v4734, 128
    %4961 = vxpose.xlu0.b32.cont [2/16] %v4749, 128
    %4962 = vxpose.xlu0.b32.cont [3/16] %v4764, 128
    %4963 = vxpose.xlu0.b32.cont [4/16] %v4779, 128
    %4964 = vxpose.xlu0.b32.cont [5/16] %v4794, 128
    %4965 = vxpose.xlu0.b32.cont [6/16] %v4809, 128
    %4966 = vxpose.xlu0.b32.cont [7/16] %v4824, 128
    %4967 = vxpose.xlu0.b32.cont [8/16] %v4839, 128
    %4968 = vxpose.xlu0.b32.cont [9/16] %v4854, 128
    %4969 = vxpose.xlu0.b32.cont [10/16] %v4869, 128
    %4970 = vxpose.xlu0.b32.cont [11/16] %v4884, 128
    %4971 = vxpose.xlu0.b32.cont [12/16] %v4899, 128
    %4972 = vxpose.xlu0.b32.cont [13/16] %v4914, 128
    %4973 = vxpose.xlu0.b32.cont [14/16] %v4929, 128
    %4974 = vxpose.xlu0.b32.cont [15/16] %v4944, 128
    %4975 = vxpose.xlu0.b32.end [16/16] %v4959, 128
    %v4976 = vpop.trf.xlu0
    %v4977 = vpop.trf.xlu0
    %v4978 = vpop.trf.xlu0
    %v4979 = vpop.trf.xlu0
    %v4980 = vpop.trf.xlu0
    %v4981 = vpop.trf.xlu0
    %v4982 = vpop.trf.xlu0
    %v4983 = vpop.trf.xlu0
    %v4984 = vpop.trf.xlu0
    %v4985 = vpop.trf.xlu0
    %v4986 = vpop.trf.xlu0
    %v4987 = vpop.trf.xlu0
    %v4988 = vpop.trf.xlu0
    %v4989 = vpop.trf.xlu0
    %v4990 = vpop.trf.xlu0
    %v4991 = vpop.trf.xlu0
    %4992 = vst [vmem:[%s10] sm:$0x7] %v4976
    %s4993 = scalar_lea.vmem %s10, 4
    %4994 = vst [vmem:[%s4993] sm:$0x7] %v4984
    // Predicated region
    $region54: #{bg_generator_forward.1} parent=1 // pred_check
      _
    $region55: #{bg_generator_forward.1} parent=1 // pred_check_branch
      %4996 = sbr.rel (0) target = $region57
    $region56: #{bg_generator_forward.1} parent=1 // pred_region
      _
    $region57: #{bg_generator_forward.1} parent=1 // pred_fallthru
      _
    // Predicated region
    $region58: #{bg_generator_forward.1} parent=1 // pred_check
      _
    $region59: #{bg_generator_forward.1} parent=1 // pred_check_branch
      %4998 = sbr.rel (0) target = $region61
    $region60: #{bg_generator_forward.1} parent=1 // pred_region
      _
    $region61: #{bg_generator_forward.1} parent=1 // pred_fallthru
      _
    %4999 = vsyncpa [#allocation3], 1
    %5000 = vsyncpa [#allocation5], 1

</llo_original>
